<compile_context>
chip_gen: v5e
topology: v5e:2x2
jax: 0.10.0
libtpu: 0.0.40
codegen_flags: <defaults>
</compile_context>

<pallas_src>
import jax
import jax.numpy as jnp
from jax import lax
from jax.experimental import pallas as pl
from jax.experimental.pallas import tpu as pltpu


# ----------------------------------------------------------------------------
# Fused kernel: one grid step == one batch element.
#   stage 1: im2col(3x3, pad 1) -> (H*W, 9*Cin) @ (9*Cin, Cmid)  + bias + ReLU
#   stage 2: im2col(3x3, pad 1) over h -> (H*W, 9*Cmid) @ (9*Cmid, 4*Cout)
#            (combined phase weight of the 4x4/s2/p1 transposed conv)
#            + bias + ReLU
# ----------------------------------------------------------------------------
def _decoder_block_kernel(x_ref, w1_ref, b1_ref, w2_ref, b2_ref, o_ref,
                          xp_ref, p1_ref, hp_ref, p2_ref):
    # x_ref : (1, H, W, Cin)
    # w1_ref: (9*Cin, Cmid)      b1_ref: (1, Cmid)
    # w2_ref: (9*Cmid, 4*Cout)   b2_ref: (1, 4*Cout)
    # o_ref : (1, H, W, 4*Cout)  -- phases (p, q) packed on the channel axis
    # scratch: xp (H+2, W+2, Cin), p1 (H, W, 9*Cin),
    #          hp (H+2, W+2, Cmid), p2 (H, W, 9*Cmid)
    H, W = x_ref.shape[1], x_ref.shape[2]
    cin = x_ref.shape[3]
    cmid = w1_ref.shape[1]

    # ---------------- stage 1: 3x3 same conv + bias + ReLU ----------------
    xp_ref[...] = jnp.zeros_like(xp_ref)          # zero halo (in-kernel pad)
    xp_ref[1:H + 1, 1:W + 1, :] = x_ref[0]
    xp = xp_ref[...]
    for kh in range(3):                           # build im2col patch in VMEM
        for kw in range(3):
            t = kh * 3 + kw
            p1_ref[:, :, t * cin:(t + 1) * cin] = xp[kh:kh + H, kw:kw + W, :]
    h = lax.dot_general(p1_ref[...], w1_ref[...],
                        (((2,), (0,)), ((), ())),
                        preferred_element_type=jnp.float32)   # (H, W, Cmid)
    h = jnp.maximum(h + b1_ref[0][None, None, :], 0.0)

    # ------ stage 2: ConvTranspose2d(4, s=2, p=1) + bias + ReLU -----------
    # Phase-decomposed: y[2r+p, 2c+q, co] = sum_{eh,ew,ci}
    #     hp[r+eh, c+ew, ci] * Wbig[eh, ew, ci, p, q, co]
    hp_ref[...] = jnp.zeros_like(hp_ref)
    hp_ref[1:H + 1, 1:W + 1, :] = h               # h never leaves VMEM
    hp = hp_ref[...]
    for kh in range(3):
        for kw in range(3):
            t = kh * 3 + kw
            p2_ref[:, :, t * cmid:(t + 1) * cmid] = hp[kh:kh + H, kw:kw + W, :]
    y = lax.dot_general(p2_ref[...], w2_ref[...],
                        (((2,), (0,)), ((), ())),
                        preferred_element_type=jnp.float32)   # (H, W, 4*Cout)
    y = jnp.maximum(y + b2_ref[0][None, None, :], 0.0)
    o_ref[0] = y.astype(o_ref.dtype)


def _decoder_block_pallas(x_nhwc, w1m, b1, w2m, b2):
    """x_nhwc: (N, H, W, Cin).  Returns (N, H, W, 2*2*Cout) phase-packed."""
    N, H, W, cin = x_nhwc.shape
    k1, cmid = w1m.shape
    k2, c2 = w2m.shape
    b1 = b1.reshape(1, cmid)
    b2 = b2.reshape(1, c2)

    return pl.pallas_call(
        _decoder_block_kernel,
        out_shape=jax.ShapeDtypeStruct((N, H, W, c2), x_nhwc.dtype),
        grid=(N,),
        in_specs=[
            pl.BlockSpec((1, H, W, cin), lambda n: (n, 0, 0, 0)),
            pl.BlockSpec((k1, cmid), lambda n: (0, 0)),
            pl.BlockSpec((1, cmid), lambda n: (0, 0)),
            pl.BlockSpec((k2, c2), lambda n: (0, 0)),
            pl.BlockSpec((1, c2), lambda n: (0, 0)),
        ],
        out_specs=pl.BlockSpec((1, H, W, c2), lambda n: (n, 0, 0, 0)),
        scratch_shapes=[
            pltpu.VMEM((H + 2, W + 2, cin), jnp.float32),   # padded x
            pltpu.VMEM((H, W, k1), jnp.float32),            # im2col patch 1
            pltpu.VMEM((H + 2, W + 2, cmid), jnp.float32),  # padded h
            pltpu.VMEM((H, W, k2), jnp.float32),            # im2col patch 2
        ],
        compiler_params=pltpu.CompilerParams(
            dimension_semantics=("parallel",)),
    )(x_nhwc, w1m, b1, w2m, b2)


# ----------------------------------------------------------------------------
# One-time parameter prep (outside the hot path): PyTorch layouts -> kernel
# matmul layouts, including the phase-packed transposed-conv weight.
# ----------------------------------------------------------------------------
def prepare_decoder_params(params):
    w1, b1, wt, bt = params["w1"], params["b1"], params["wt"], params["bt"]
    cmid, cin = w1.shape[0], w1.shape[1]
    cout = wt.shape[1]

    # Conv2d weight (Cmid, Cin, 3, 3) -> (9*Cin, Cmid), rows ordered (kh,kw,ci)
    w1m = jnp.transpose(w1, (2, 3, 1, 0)).reshape(9 * cin, cmid)

    # ConvTranspose2d weight (Cmid, Cout, 4, 4) -> combined phase weight
    # Wbig[eh, ew, ci, p, q, co] = wt[ci, co, 3-p-2*dh, 3-q-2*dw]
    #   where eh = p+dh, ew = q+dw, dh,dw in {0,1}; zero elsewhere.
    wbig = jnp.zeros((3, 3, cmid, 2, 2, cout), dtype=wt.dtype)
    for p in range(2):
        for q in range(2):
            for dh in range(2):
                for dw in range(2):
                    eh, ew = p + dh, q + dw
                    kh, kw = 3 - p - 2 * dh, 3 - q - 2 * dw
                    wbig = wbig.at[eh, ew, :, p, q, :].set(wt[:, :, kh, kw])
    w2m = wbig.reshape(9 * cmid, 2 * 2 * cout)
    b2 = jnp.tile(bt, 2 * 2)                      # bias per (p, q, co)

    return {"w1m": w1m, "b1": b1, "w2m": w2m, "b2": b2}


# ----------------------------------------------------------------------------
# DecoderBlock forward (is_deconv=True): NCHW in -> NCHW out.
# ----------------------------------------------------------------------------
@jax.jit
def decoder_block_forward(x_nchw, prepped):
    w1m, b1 = prepped["w1m"], prepped["b1"]
    w2m, b2 = prepped["w2m"], prepped["b2"]
    cout = b2.shape[0] // 4
    N, _, H, W = x_nchw.shape

    x = jnp.transpose(x_nchw, (0, 2, 3, 1))                 # NCHW -> NHWC
    yph = _decoder_block_pallas(x, w1m, b1, w2m, b2)        # (N, H, W, 4*Cout)

    # Interleave phases and go to NCHW in a single transpose+reshape.
    y = yph.reshape(N, H, W, 2, 2, cout)                    # [n, r, c, p, q, co]
    y = jnp.transpose(y, (0, 5, 1, 3, 2, 4))                # [n, co, r, p, c, q]
    return y.reshape(N, cout, 2 * H, 2 * W)


# ----------------------------------------------------------------------------
# Pure-JAX reference (XLA conv) for verification.
# ----------------------------------------------------------------------------
def decoder_block_reference(x_nchw, params):
    w1, b1, wt, bt = params["w1"], params["b1"], params["wt"], params["bt"]
    dn = ("NCHW", "OIHW", "NCHW")
    y1 = lax.conv_general_dilated(x_nchw, w1, (1, 1), ((1, 1), (1, 1)),
                                  dimension_numbers=dn)
    y1 = jnp.maximum(y1 + b1[None, :, None, None], 0.0)
    # ConvTranspose2d(k=4, s=2, p=1) via lhs dilation + flipped/swapped weight.
    wt_oihw = jnp.transpose(wt[:, :, ::-1, ::-1], (1, 0, 2, 3))
    y2 = lax.conv_general_dilated(y1, wt_oihw, (1, 1), ((2, 2), (2, 2)),
                                  lhs_dilation=(2, 2), dimension_numbers=dn)
    y2 = jnp.maximum(y2 + bt[None, :, None, None], 0.0)
    return y2


if __name__ == "__main__":
    # Small shapes consistent with the module.
    N, Cin, Cmid, Cout, H, W = 2, 4, 8, 4, 16, 16

    key = jax.random.PRNGKey(0)
    k_x, k_w1, k_b1, k_wt, k_bt = jax.random.split(key, 5)

    x = jax.random.normal(k_x, (N, Cin, H, W), dtype=jnp.float32)
    params = {
        # nn.Conv2d(Cin, Cmid, 3, padding=1): weight (Cmid, Cin, 3, 3), bias (Cmid,)
        "w1": 0.1 * jax.random.normal(k_w1, (Cmid, Cin, 3, 3), dtype=jnp.float32),
        "b1": 0.1 * jax.random.normal(k_b1, (Cmid,), dtype=jnp.float32),
        # nn.ConvTranspose2d(Cmid, Cout, 4, stride=2, padding=1):
        #   weight (Cmid, Cout, 4, 4), bias (Cout,)
        "wt": 0.1 * jax.random.normal(k_wt, (Cmid, Cout, 4, 4), dtype=jnp.float32),
        "bt": 0.1 * jax.random.normal(k_bt, (Cout,), dtype=jnp.float32),
    }

    # One-time weight reformatting (kept out of the per-call hot path).
    prepped = prepare_decoder_params(params)

    out = decoder_block_forward(x, prepped)
    out = jax.block_until_ready(out)
    assert out.shape == (N, Cout, 2 * H, 2 * W), out.shape

    ref = decoder_block_reference(x, params)
    ref = jax.block_until_ready(ref)
    max_err = float(jnp.max(jnp.abs(out - ref)))
    assert jnp.allclose(out, ref, atol=3e-4, rtol=3e-4), max_err

    print("KERNEL_OK")
</pallas_src>

<mosaic_0001>
module attributes {stable_mosaic.version = 11 : i64} {
  func.func @_decoder_block_kernel(%arg0: i32, %arg1: memref<1x16x16x4xf32, #tpu.memory_space<vmem>>, %arg2: memref<36x8xf32, #tpu.memory_space<vmem>>, %arg3: memref<1x8xf32, #tpu.memory_space<vmem>>, %arg4: memref<72x16xf32, #tpu.memory_space<vmem>>, %arg5: memref<1x16xf32, #tpu.memory_space<vmem>>, %arg6: memref<1x16x16x16xf32, #tpu.memory_space<vmem>>, %arg7: memref<18x18x4xf32, #tpu.memory_space<vmem>>, %arg8: memref<16x16x36xf32, #tpu.memory_space<vmem>>, %arg9: memref<18x18x8xf32, #tpu.memory_space<vmem>>, %arg10: memref<16x16x72xf32, #tpu.memory_space<vmem>>) attributes {dimension_semantics = [#tpu.dimension_semantics<parallel>], iteration_bounds = array<i64: 2>, scalar_prefetch = 0 : i64, scratch_operands = 4 : i64, tpu.core_type = #tpu.core_type<tc>, window_params = [{transform_indices = @transform_0, window_bounds = array<i64: 1, 16, 16, 4>}, {pipeline_mode = #tpu.pipeline_mode<synchronous>, transform_indices = @transform_1, window_bounds = array<i64: 36, 8>}, {pipeline_mode = #tpu.pipeline_mode<synchronous>, transform_indices = @transform_2, window_bounds = array<i64: 1, 8>}, {pipeline_mode = #tpu.pipeline_mode<synchronous>, transform_indices = @transform_3, window_bounds = array<i64: 72, 16>}, {pipeline_mode = #tpu.pipeline_mode<synchronous>, transform_indices = @transform_4, window_bounds = array<i64: 1, 16>}, {transform_indices = @transform_5, window_bounds = array<i64: 1, 16, 16, 16>}]} {
    %cst = arith.constant 0.000000e+00 : f32
    %0 = vector.broadcast %cst : f32 to vector<18x18x4xf32>
    %c0 = arith.constant 0 : index
    %c0_0 = arith.constant 0 : index
    %c0_1 = arith.constant 0 : index
    %1 = vector.load %arg7[%c0, %c0_0, %c0_1] : memref<18x18x4xf32, #tpu.memory_space<vmem>>, vector<18x18x4xf32>
    tpu.vector_store %arg7[%c0, %c0_0, %c0_1], %0 {strides = array<i32>} : memref<18x18x4xf32, #tpu.memory_space<vmem>>, vector<18x18x4xf32>,
    %c0_2 = arith.constant 0 : index
    %c0_3 = arith.constant 0 : index
    %c0_4 = arith.constant 0 : index
    %c0_5 = arith.constant 0 : index
    %2 = vector.load %arg1[%c0_2, %c0_3, %c0_4, %c0_5] : memref<1x16x16x4xf32, #tpu.memory_space<vmem>>, vector<1x16x16x4xf32>
    %3 = vector.shape_cast %2 : vector<1x16x16x4xf32> to vector<16x16x4xf32>
    %c1 = arith.constant 1 : index
    %c1_6 = arith.constant 1 : index
    %c0_7 = arith.constant 0 : index
    %4 = vector.load %arg7[%c1, %c1_6, %c0_7] : memref<18x18x4xf32, #tpu.memory_space<vmem>>, vector<16x16x4xf32>
    tpu.vector_store %arg7[%c1, %c1_6, %c0_7], %3 {strides = array<i32>} : memref<18x18x4xf32, #tpu.memory_space<vmem>>, vector<16x16x4xf32>,
    %c0_8 = arith.constant 0 : index
    %c0_9 = arith.constant 0 : index
    %c0_10 = arith.constant 0 : index
    %5 = vector.load %arg7[%c0_8, %c0_9, %c0_10] : memref<18x18x4xf32, #tpu.memory_space<vmem>>, vector<18x18x4xf32>
    %6 = vector.extract_strided_slice %5 {offsets = [0, 0, 0], sizes = [16, 16, 4], strides = [1, 1, 1]} : vector<18x18x4xf32> to vector<16x16x4xf32>
    %c0_11 = arith.constant 0 : index
    %c0_12 = arith.constant 0 : index
    %c0_13 = arith.constant 0 : index
    %7 = vector.load %arg8[%c0_11, %c0_12, %c0_13] : memref<16x16x36xf32, #tpu.memory_space<vmem>>, vector<16x16x4xf32>
    tpu.vector_store %arg8[%c0_11, %c0_12, %c0_13], %6 {strides = array<i32>} : memref<16x16x36xf32, #tpu.memory_space<vmem>>, vector<16x16x4xf32>,
    %8 = vector.extract_strided_slice %5 {offsets = [0, 1, 0], sizes = [16, 16, 4], strides = [1, 1, 1]} : vector<18x18x4xf32> to vector<16x16x4xf32>
    %c0_14 = arith.constant 0 : index
    %c0_15 = arith.constant 0 : index
    %c4 = arith.constant 4 : index
    %9 = vector.load %arg8[%c0_14, %c0_15, %c4] : memref<16x16x36xf32, #tpu.memory_space<vmem>>, vector<16x16x4xf32>
    tpu.vector_store %arg8[%c0_14, %c0_15, %c4], %8 {strides = array<i32>} : memref<16x16x36xf32, #tpu.memory_space<vmem>>, vector<16x16x4xf32>,
    %10 = vector.extract_strided_slice %5 {offsets = [0, 2, 0], sizes = [16, 16, 4], strides = [1, 1, 1]} : vector<18x18x4xf32> to vector<16x16x4xf32>
    %c0_16 = arith.constant 0 : index
    %c0_17 = arith.constant 0 : index
    %c8 = arith.constant 8 : index
    %11 = vector.load %arg8[%c0_16, %c0_17, %c8] : memref<16x16x36xf32, #tpu.memory_space<vmem>>, vector<16x16x4xf32>
    tpu.vector_store %arg8[%c0_16, %c0_17, %c8], %10 {strides = array<i32>} : memref<16x16x36xf32, #tpu.memory_space<vmem>>, vector<16x16x4xf32>,
    %12 = vector.extract_strided_slice %5 {offsets = [1, 0, 0], sizes = [16, 16, 4], strides = [1, 1, 1]} : vector<18x18x4xf32> to vector<16x16x4xf32>
    %c0_18 = arith.constant 0 : index
    %c0_19 = arith.constant 0 : index
    %c12 = arith.constant 12 : index
    %13 = vector.load %arg8[%c0_18, %c0_19, %c12] : memref<16x16x36xf32, #tpu.memory_space<vmem>>, vector<16x16x4xf32>
    tpu.vector_store %arg8[%c0_18, %c0_19, %c12], %12 {strides = array<i32>} : memref<16x16x36xf32, #tpu.memory_space<vmem>>, vector<16x16x4xf32>,
    %14 = vector.extract_strided_slice %5 {offsets = [1, 1, 0], sizes = [16, 16, 4], strides = [1, 1, 1]} : vector<18x18x4xf32> to vector<16x16x4xf32>
    %c0_20 = arith.constant 0 : index
    %c0_21 = arith.constant 0 : index
    %c16 = arith.constant 16 : index
    %15 = vector.load %arg8[%c0_20, %c0_21, %c16] : memref<16x16x36xf32, #tpu.memory_space<vmem>>, vector<16x16x4xf32>
    tpu.vector_store %arg8[%c0_20, %c0_21, %c16], %14 {strides = array<i32>} : memref<16x16x36xf32, #tpu.memory_space<vmem>>, vector<16x16x4xf32>,
    %16 = vector.extract_strided_slice %5 {offsets = [1, 2, 0], sizes = [16, 16, 4], strides = [1, 1, 1]} : vector<18x18x4xf32> to vector<16x16x4xf32>
    %c0_22 = arith.constant 0 : index
    %c0_23 = arith.constant 0 : index
    %c20 = arith.constant 20 : index
    %17 = vector.load %arg8[%c0_22, %c0_23, %c20] : memref<16x16x36xf32, #tpu.memory_space<vmem>>, vector<16x16x4xf32>
    tpu.vector_store %arg8[%c0_22, %c0_23, %c20], %16 {strides = array<i32>} : memref<16x16x36xf32, #tpu.memory_space<vmem>>, vector<16x16x4xf32>,
    %18 = vector.extract_strided_slice %5 {offsets = [2, 0, 0], sizes = [16, 16, 4], strides = [1, 1, 1]} : vector<18x18x4xf32> to vector<16x16x4xf32>
    %c0_24 = arith.constant 0 : index
    %c0_25 = arith.constant 0 : index
    %c24 = arith.constant 24 : index
    %19 = vector.load %arg8[%c0_24, %c0_25, %c24] : memref<16x16x36xf32, #tpu.memory_space<vmem>>, vector<16x16x4xf32>
    tpu.vector_store %arg8[%c0_24, %c0_25, %c24], %18 {strides = array<i32>} : memref<16x16x36xf32, #tpu.memory_space<vmem>>, vector<16x16x4xf32>,
    %20 = vector.extract_strided_slice %5 {offsets = [2, 1, 0], sizes = [16, 16, 4], strides = [1, 1, 1]} : vector<18x18x4xf32> to vector<16x16x4xf32>
    %c0_26 = arith.constant 0 : index
    %c0_27 = arith.constant 0 : index
    %c28 = arith.constant 28 : index
    %21 = vector.load %arg8[%c0_26, %c0_27, %c28] : memref<16x16x36xf32, #tpu.memory_space<vmem>>, vector<16x16x4xf32>
    tpu.vector_store %arg8[%c0_26, %c0_27, %c28], %20 {strides = array<i32>} : memref<16x16x36xf32, #tpu.memory_space<vmem>>, vector<16x16x4xf32>,
    %22 = vector.extract_strided_slice %5 {offsets = [2, 2, 0], sizes = [16, 16, 4], strides = [1, 1, 1]} : vector<18x18x4xf32> to vector<16x16x4xf32>
    %c0_28 = arith.constant 0 : index
    %c0_29 = arith.constant 0 : index
    %c32 = arith.constant 32 : index
    %23 = vector.load %arg8[%c0_28, %c0_29, %c32] : memref<16x16x36xf32, #tpu.memory_space<vmem>>, vector<16x16x4xf32>
    tpu.vector_store %arg8[%c0_28, %c0_29, %c32], %22 {strides = array<i32>} : memref<16x16x36xf32, #tpu.memory_space<vmem>>, vector<16x16x4xf32>,
    %c0_30 = arith.constant 0 : index
    %c0_31 = arith.constant 0 : index
    %c0_32 = arith.constant 0 : index
    %24 = vector.load %arg8[%c0_30, %c0_31, %c0_32] : memref<16x16x36xf32, #tpu.memory_space<vmem>>, vector<16x16x36xf32>
    %c0_33 = arith.constant 0 : index
    %c0_34 = arith.constant 0 : index
    %25 = vector.load %arg2[%c0_33, %c0_34] : memref<36x8xf32, #tpu.memory_space<vmem>>, vector<36x8xf32>
    %cst_35 = arith.constant dense<0.000000e+00> : vector<16x16x8xf32>
    %26 = tpu.matmul %24, %25, %cst_35 {dimension_numbers = #tpu.dot_dimension_numbers<[2], [0], [0, 1], [1], [0, 0, 0, 1, 1, 1], [], []>} : vector<16x16x36xf32>, vector<36x8xf32>, vector<16x16x8xf32> -> vector<16x16x8xf32>
    %c0_36 = arith.constant 0 : index
    %c0_37 = arith.constant 0 : index
    %27 = vector.load %arg3[%c0_36, %c0_37] : memref<1x8xf32, #tpu.memory_space<vmem>>, vector<1x8xf32>
    %28 = vector.shape_cast %27 : vector<1x8xf32> to vector<8xf32>
    %29 = vector.shape_cast %28 : vector<8xf32> to vector<1x1x8xf32>
    %30 = vector.broadcast %29 : vector<1x1x8xf32> to vector<16x16x8xf32>
    %31 = arith.addf %26, %30 : vector<16x16x8xf32>
    %cst_38 = arith.constant 0.000000e+00 : f32
    %32 = vector.broadcast %cst_38 : f32 to vector<16x16x8xf32>
    %33 = arith.maximumf %31, %32 : vector<16x16x8xf32>
    %cst_39 = arith.constant 0.000000e+00 : f32
    %34 = vector.broadcast %cst_39 : f32 to vector<18x18x8xf32>
    %c0_40 = arith.constant 0 : index
    %c0_41 = arith.constant 0 : index
    %c0_42 = arith.constant 0 : index
    %35 = vector.load %arg9[%c0_40, %c0_41, %c0_42] : memref<18x18x8xf32, #tpu.memory_space<vmem>>, vector<18x18x8xf32>
    tpu.vector_store %arg9[%c0_40, %c0_41, %c0_42], %34 {strides = array<i32>} : memref<18x18x8xf32, #tpu.memory_space<vmem>>, vector<18x18x8xf32>,
    %c1_43 = arith.constant 1 : index
    %c1_44 = arith.constant 1 : index
    %c0_45 = arith.constant 0 : index
    %36 = vector.load %arg9[%c1_43, %c1_44, %c0_45] : memref<18x18x8xf32, #tpu.memory_space<vmem>>, vector<16x16x8xf32>
    tpu.vector_store %arg9[%c1_43, %c1_44, %c0_45], %33 {strides = array<i32>} : memref<18x18x8xf32, #tpu.memory_space<vmem>>, vector<16x16x8xf32>,
    %c0_46 = arith.constant 0 : index
    %c0_47 = arith.constant 0 : index
    %c0_48 = arith.constant 0 : index
    %37 = vector.load %arg9[%c0_46, %c0_47, %c0_48] : memref<18x18x8xf32, #tpu.memory_space<vmem>>, vector<18x18x8xf32>
    %38 = vector.extract_strided_slice %37 {offsets = [0, 0, 0], sizes = [16, 16, 8], strides = [1, 1, 1]} : vector<18x18x8xf32> to vector<16x16x8xf32>
    %c0_49 = arith.constant 0 : index
    %c0_50 = arith.constant 0 : index
    %c0_51 = arith.constant 0 : index
    %39 = vector.load %arg10[%c0_49, %c0_50, %c0_51] : memref<16x16x72xf32, #tpu.memory_space<vmem>>, vector<16x16x8xf32>
    tpu.vector_store %arg10[%c0_49, %c0_50, %c0_51], %38 {strides = array<i32>} : memref<16x16x72xf32, #tpu.memory_space<vmem>>, vector<16x16x8xf32>,
    %40 = vector.extract_strided_slice %37 {offsets = [0, 1, 0], sizes = [16, 16, 8], strides = [1, 1, 1]} : vector<18x18x8xf32> to vector<16x16x8xf32>
    %c0_52 = arith.constant 0 : index
    %c0_53 = arith.constant 0 : index
    %c8_54 = arith.constant 8 : index
    %41 = vector.load %arg10[%c0_52, %c0_53, %c8_54] : memref<16x16x72xf32, #tpu.memory_space<vmem>>, vector<16x16x8xf32>
    tpu.vector_store %arg10[%c0_52, %c0_53, %c8_54], %40 {strides = array<i32>} : memref<16x16x72xf32, #tpu.memory_space<vmem>>, vector<16x16x8xf32>,
    %42 = vector.extract_strided_slice %37 {offsets = [0, 2, 0], sizes = [16, 16, 8], strides = [1, 1, 1]} : vector<18x18x8xf32> to vector<16x16x8xf32>
    %c0_55 = arith.constant 0 : index
    %c0_56 = arith.constant 0 : index
    %c16_57 = arith.constant 16 : index
    %43 = vector.load %arg10[%c0_55, %c0_56, %c16_57] : memref<16x16x72xf32, #tpu.memory_space<vmem>>, vector<16x16x8xf32>
    tpu.vector_store %arg10[%c0_55, %c0_56, %c16_57], %42 {strides = array<i32>} : memref<16x16x72xf32, #tpu.memory_space<vmem>>, vector<16x16x8xf32>,
    %44 = vector.extract_strided_slice %37 {offsets = [1, 0, 0], sizes = [16, 16, 8], strides = [1, 1, 1]} : vector<18x18x8xf32> to vector<16x16x8xf32>
    %c0_58 = arith.constant 0 : index
    %c0_59 = arith.constant 0 : index
    %c24_60 = arith.constant 24 : index
    %45 = vector.load %arg10[%c0_58, %c0_59, %c24_60] : memref<16x16x72xf32, #tpu.memory_space<vmem>>, vector<16x16x8xf32>
    tpu.vector_store %arg10[%c0_58, %c0_59, %c24_60], %44 {strides = array<i32>} : memref<16x16x72xf32, #tpu.memory_space<vmem>>, vector<16x16x8xf32>,
    %46 = vector.extract_strided_slice %37 {offsets = [1, 1, 0], sizes = [16, 16, 8], strides = [1, 1, 1]} : vector<18x18x8xf32> to vector<16x16x8xf32>
    %c0_61 = arith.constant 0 : index
    %c0_62 = arith.constant 0 : index
    %c32_63 = arith.constant 32 : index
    %47 = vector.load %arg10[%c0_61, %c0_62, %c32_63] : memref<16x16x72xf32, #tpu.memory_space<vmem>>, vector<16x16x8xf32>
    tpu.vector_store %arg10[%c0_61, %c0_62, %c32_63], %46 {strides = array<i32>} : memref<16x16x72xf32, #tpu.memory_space<vmem>>, vector<16x16x8xf32>,
    %48 = vector.extract_strided_slice %37 {offsets = [1, 2, 0], sizes = [16, 16, 8], strides = [1, 1, 1]} : vector<18x18x8xf32> to vector<16x16x8xf32>
    %c0_64 = arith.constant 0 : index
    %c0_65 = arith.constant 0 : index
    %c40 = arith.constant 40 : index
    %49 = vector.load %arg10[%c0_64, %c0_65, %c40] : memref<16x16x72xf32, #tpu.memory_space<vmem>>, vector<16x16x8xf32>
    tpu.vector_store %arg10[%c0_64, %c0_65, %c40], %48 {strides = array<i32>} : memref<16x16x72xf32, #tpu.memory_space<vmem>>, vector<16x16x8xf32>,
    %50 = vector.extract_strided_slice %37 {offsets = [2, 0, 0], sizes = [16, 16, 8], strides = [1, 1, 1]} : vector<18x18x8xf32> to vector<16x16x8xf32>
    %c0_66 = arith.constant 0 : index
    %c0_67 = arith.constant 0 : index
    %c48 = arith.constant 48 : index
    %51 = vector.load %arg10[%c0_66, %c0_67, %c48] : memref<16x16x72xf32, #tpu.memory_space<vmem>>, vector<16x16x8xf32>
    tpu.vector_store %arg10[%c0_66, %c0_67, %c48], %50 {strides = array<i32>} : memref<16x16x72xf32, #tpu.memory_space<vmem>>, vector<16x16x8xf32>,
    %52 = vector.extract_strided_slice %37 {offsets = [2, 1, 0], sizes = [16, 16, 8], strides = [1, 1, 1]} : vector<18x18x8xf32> to vector<16x16x8xf32>
    %c0_68 = arith.constant 0 : index
    %c0_69 = arith.constant 0 : index
    %c56 = arith.constant 56 : index
    %53 = vector.load %arg10[%c0_68, %c0_69, %c56] : memref<16x16x72xf32, #tpu.memory_space<vmem>>, vector<16x16x8xf32>
    tpu.vector_store %arg10[%c0_68, %c0_69, %c56], %52 {strides = array<i32>} : memref<16x16x72xf32, #tpu.memory_space<vmem>>, vector<16x16x8xf32>,
    %54 = vector.extract_strided_slice %37 {offsets = [2, 2, 0], sizes = [16, 16, 8], strides = [1, 1, 1]} : vector<18x18x8xf32> to vector<16x16x8xf32>
    %c0_70 = arith.constant 0 : index
    %c0_71 = arith.constant 0 : index
    %c64 = arith.constant 64 : index
    %55 = vector.load %arg10[%c0_70, %c0_71, %c64] : memref<16x16x72xf32, #tpu.memory_space<vmem>>, vector<16x16x8xf32>
    tpu.vector_store %arg10[%c0_70, %c0_71, %c64], %54 {strides = array<i32>} : memref<16x16x72xf32, #tpu.memory_space<vmem>>, vector<16x16x8xf32>,
    %c0_72 = arith.constant 0 : index
    %c0_73 = arith.constant 0 : index
    %c0_74 = arith.constant 0 : index
    %56 = vector.load %arg10[%c0_72, %c0_73, %c0_74] : memref<16x16x72xf32, #tpu.memory_space<vmem>>, vector<16x16x72xf32>
    %c0_75 = arith.constant 0 : index
    %c0_76 = arith.constant 0 : index
    %57 = vector.load %arg4[%c0_75, %c0_76] : memref<72x16xf32, #tpu.memory_space<vmem>>, vector<72x16xf32>
    %cst_77 = arith.constant dense<0.000000e+00> : vector<16x16x16xf32>
    %58 = tpu.matmul %56, %57, %cst_77 {dimension_numbers = #tpu.dot_dimension_numbers<[2], [0], [0, 1], [1], [0, 0, 0, 1, 1, 1], [], []>} : vector<16x16x72xf32>, vector<72x16xf32>, vector<16x16x16xf32> -> vector<16x16x16xf32>
    %c0_78 = arith.constant 0 : index
    %c0_79 = arith.constant 0 : index
    %59 = vector.load %arg5[%c0_78, %c0_79] : memref<1x16xf32, #tpu.memory_space<vmem>>, vector<1x16xf32>
    %60 = vector.shape_cast %59 : vector<1x16xf32> to vector<16xf32>
    %61 = vector.shape_cast %60 : vector<16xf32> to vector<1x1x16xf32>
    %62 = vector.broadcast %61 : vector<1x1x16xf32> to vector<16x16x16xf32>
    %63 = arith.addf %58, %62 : vector<16x16x16xf32>
    %cst_80 = arith.constant 0.000000e+00 : f32
    %64 = vector.broadcast %cst_80 : f32 to vector<16x16x16xf32>
    %65 = arith.maximumf %63, %64 : vector<16x16x16xf32>
    %c0_81 = arith.constant 0 : index
    %c0_82 = arith.constant 0 : index
    %c0_83 = arith.constant 0 : index
    %c0_84 = arith.constant 0 : index
    %66 = vector.load %arg6[%c0_81, %c0_82, %c0_83, %c0_84] : memref<1x16x16x16xf32, #tpu.memory_space<vmem>>, vector<1x16x16x16xf32>
    %67 = vector.shape_cast %66 : vector<1x16x16x16xf32> to vector<16x16x16xf32>
    %68 = vector.shape_cast %65 : vector<16x16x16xf32> to vector<1x16x16x16xf32>
    tpu.vector_store %arg6[%c0_81, %c0_82, %c0_83, %c0_84], %68 {strides = array<i32>} : memref<1x16x16x16xf32, #tpu.memory_space<vmem>>, vector<1x16x16x16xf32>,
    return
  }
  func.func @transform_0(%arg0: i32) -> (i32, i32, i32, i32) {
    %c0_i32 = arith.constant 0 : i32
    %c0_i32_0 = arith.constant 0 : i32
    %c0_i32_1 = arith.constant 0 : i32
    %c0_i32_2 = arith.constant 0 : i32
    return %arg0, %c0_i32, %c0_i32_0, %c0_i32_1 : i32, i32, i32, i32
  }
  func.func @transform_1(%arg0: i32) -> (i32, i32) {
    %c0_i32 = arith.constant 0 : i32
    %c0_i32_0 = arith.constant 0 : i32
    %c0_i32_1 = arith.constant 0 : i32
    return %c0_i32, %c0_i32_0 : i32, i32
  }
  func.func @transform_2(%arg0: i32) -> (i32, i32) {
    %c0_i32 = arith.constant 0 : i32
    %c0_i32_0 = arith.constant 0 : i32
    %c0_i32_1 = arith.constant 0 : i32
    return %c0_i32, %c0_i32_0 : i32, i32
  }
  func.func @transform_3(%arg0: i32) -> (i32, i32) {
    %c0_i32 = arith.constant 0 : i32
    %c0_i32_0 = arith.constant 0 : i32
    %c0_i32_1 = arith.constant 0 : i32
    return %c0_i32, %c0_i32_0 : i32, i32
  }
  func.func @transform_4(%arg0: i32) -> (i32, i32) {
    %c0_i32 = arith.constant 0 : i32
    %c0_i32_0 = arith.constant 0 : i32
    %c0_i32_1 = arith.constant 0 : i32
    return %c0_i32, %c0_i32_0 : i32, i32
  }
  func.func @transform_5(%arg0: i32) -> (i32, i32, i32, i32) {
    %c0_i32 = arith.constant 0 : i32
    %c0_i32_0 = arith.constant 0 : i32
    %c0_i32_1 = arith.constant 0 : i32
    %c0_i32_2 = arith.constant 0 : i32
    return %arg0, %c0_i32, %c0_i32_0, %c0_i32_1 : i32, i32, i32, i32
  }
}

</mosaic_0001>

<llo_original>
// kernel: decoder_block_forward.1
$region0: #{decoder_block_forward.1}
  #allocation0 [shape = 'u32[]', space=smem, size = 0x4, offset = 0x4, fixed_abs, tag = 'smem constant byte address 0x4 - core index']
  #allocation1 [shape = 'u32[72,128]{1,0:T(1,128)}', space=vmem, size = 0x9000, scoped, tag = 'internal scratch']
  #allocation2 [shape = 'f32[18,18,4]{2,1,0:T(8,128)}', space=vmem, size = 0x36000, scoped, tag = 'scratch operand']
  #allocation3 [shape = 'f32[16,16,36]{2,1,0:T(8,128)}', space=vmem, size = 0x20000, scoped, tag = 'scratch operand']
  #allocation4 [shape = 'f32[18,18,8]{2,1,0:T(8,128)}', space=vmem, size = 0x36000, scoped, tag = 'scratch operand']
  #allocation5 [shape = 'f32[16,16,72]{2,1,0:T(8,128)}', space=vmem, size = 0x20000, scoped, tag = 'scratch operand']
  %s0 = inlined_call_operand.vmem [shape: f32[2,16,16,4], index: 0, kind: input, shape index: {}]
  %s1 = inlined_call_operand.vmem [shape: f32[36,8], index: 1, kind: input, shape index: {}]
  %s2 = inlined_call_operand.vmem [shape: f32[1,8], index: 2, kind: input, shape index: {}]
  %s3 = inlined_call_operand.vmem [shape: f32[72,16], index: 3, kind: input, shape index: {}]
  %s4 = inlined_call_operand.vmem [shape: f32[1,16], index: 4, kind: input, shape index: {}]
  %s5 = inlined_call_operand.vmem [shape: f32[2,16,16,16], index: 5, kind: output, shape index: {}]
  %s6 = sld [smem:[#allocation0]]
  $region53: #{decoder_block_forward.1} parent=0
    _
  %s8 = ssub.s32 1, %s6
  %s9 = scalar_select 0, %s8, %s6
  loop: start=0, step=1, limit=4
  $region2: #{decoder_block_forward.1} parent=0 // loop_pre_header
    _
  $region3: #{decoder_block_forward.1} parent=0 // loop_header
    %s11 = sphi 0, %s15
    %p12 = scmp.ge.s32.totalorder %s11, 4
    %s21 = sphi 0, %s23
    %s24 = sphi 0, %s21
    %s25 = sphi 0, %s24
    %s41 = sphi 0, %s25
    %s45 = sphi 0, %s45
    %s47 = sphi 0, %s45
    %s48 = sphi 0, %s47
    %s62 = sphi 0, %s48
    %s66 = sphi 0, %s66
    %s68 = sphi 0, %s66
    %s69 = sphi 0, %s68
    %s83 = sphi 0, %s69
    %s87 = sphi 0, %s87
    %s89 = sphi 0, %s87
    %s90 = sphi 0, %s89
    %s104 = sphi 0, %s90
    %s108 = sphi 0, %s108
    %s110 = sphi 0, %s108
    %s111 = sphi 0, %s110
    %s125 = sphi 0, %s111
    %s131 = sphi 0, %s133
    %s134 = sphi 0, %s131
    %s135 = sphi 0, %s134
    %s151 = sphi 0, %s135
  $region4: #{decoder_block_forward.1} parent=0 // loop_header_branch
    %14 = sbr.rel (%p12) target = $region8
  $region5: #{decoder_block_forward.1} parent=0 // loop_body
    %s16 = ssub.s32 %s11, 1
    %s17 = ssub.s32 %s11, 2
    %s18 = sadd.s32 %s11, 1
    %s19 = ssub.s32 %s11, %s18
    %p20 = scmp.eq.s32.totalorder %s19, 0
    %s22 = sadd.s32 %s21, 1
    %s23 = scalar_select %p20, %s21, %s22
    %p26 = pneg %p20
    %p27 = scmp.eq.s32.totalorder %s11, 1
    %p28 = por %p26, %p27
    %p29 = scmp.ne.s32.totalorder %s21, %s24
    %p30 = scmp.eq.s32.totalorder %s11, 0
    %p31 = por %p29, %p30
    %p32 = scmp.ne.s32.totalorder %s21, %s24
    %p33 = scmp.eq.s32.totalorder %s16, 1
    %p34 = por %p32, %p33
    %p35 = scmp.ne.s32.totalorder %s24, %s25
    %p36 = scmp.eq.s32.totalorder %s16, 0
    %p37 = por %p35, %p36
    %p38 = scmp.ne.s32.totalorder %s24, %s25
    %p39 = scmp.eq.s32.totalorder %s17, 1
    %p40 = por %p38, %p39
    %p42 = scmp.ne.s32.totalorder %s25, %s41
    %p43 = scmp.eq.s32.totalorder %s17, 0
    %p44 = por %p42, %p43
    %s46 = sadd.s32 %s45, 1
    %p49 = scmp.eq.s32.totalorder %s11, 1
    %p50 = scmp.ne.s32.totalorder %s45, %s47
    %p51 = scmp.eq.s32.totalorder %s11, 0
    %p52 = por %p50, %p51
    %p53 = scmp.ne.s32.totalorder %s45, %s47
    %p54 = scmp.eq.s32.totalorder %s16, 1
    %p55 = por %p53, %p54
    %p56 = scmp.ne.s32.totalorder %s47, %s48
    %p57 = scmp.eq.s32.totalorder %s16, 0
    %p58 = por %p56, %p57
    %p59 = scmp.ne.s32.totalorder %s47, %s48
    %p60 = scmp.eq.s32.totalorder %s17, 1
    %p61 = por %p59, %p60
    %p63 = scmp.ne.s32.totalorder %s48, %s62
    %p64 = scmp.eq.s32.totalorder %s17, 0
    %p65 = por %p63, %p64
    %s67 = sadd.s32 %s66, 1
    %p70 = scmp.eq.s32.totalorder %s11, 1
    %p71 = scmp.ne.s32.totalorder %s66, %s68
    %p72 = scmp.eq.s32.totalorder %s11, 0
    %p73 = por %p71, %p72
    %p74 = scmp.ne.s32.totalorder %s66, %s68
    %p75 = scmp.eq.s32.totalorder %s16, 1
    %p76 = por %p74, %p75
    %p77 = scmp.ne.s32.totalorder %s68, %s69
    %p78 = scmp.eq.s32.totalorder %s16, 0
    %p79 = por %p77, %p78
    %p80 = scmp.ne.s32.totalorder %s68, %s69
    %p81 = scmp.eq.s32.totalorder %s17, 1
    %p82 = por %p80, %p81
    %p84 = scmp.ne.s32.totalorder %s69, %s83
    %p85 = scmp.eq.s32.totalorder %s17, 0
    %p86 = por %p84, %p85
    %s88 = sadd.s32 %s87, 1
    %p91 = scmp.eq.s32.totalorder %s11, 1
    %p92 = scmp.ne.s32.totalorder %s87, %s89
    %p93 = scmp.eq.s32.totalorder %s11, 0
    %p94 = por %p92, %p93
    %p95 = scmp.ne.s32.totalorder %s87, %s89
    %p96 = scmp.eq.s32.totalorder %s16, 1
    %p97 = por %p95, %p96
    %p98 = scmp.ne.s32.totalorder %s89, %s90
    %p99 = scmp.eq.s32.totalorder %s16, 0
    %p100 = por %p98, %p99
    %p101 = scmp.ne.s32.totalorder %s89, %s90
    %p102 = scmp.eq.s32.totalorder %s17, 1
    %p103 = por %p101, %p102
    %p105 = scmp.ne.s32.totalorder %s90, %s104
    %p106 = scmp.eq.s32.totalorder %s17, 0
    %p107 = por %p105, %p106
    %s109 = sadd.s32 %s108, 1
    %p112 = scmp.eq.s32.totalorder %s11, 1
    %p113 = scmp.ne.s32.totalorder %s108, %s110
    %p114 = scmp.eq.s32.totalorder %s11, 0
    %p115 = por %p113, %p114
    %p116 = scmp.ne.s32.totalorder %s108, %s110
    %p117 = scmp.eq.s32.totalorder %s16, 1
    %p118 = por %p116, %p117
    %p119 = scmp.ne.s32.totalorder %s110, %s111
    %p120 = scmp.eq.s32.totalorder %s16, 0
    %p121 = por %p119, %p120
    %p122 = scmp.ne.s32.totalorder %s110, %s111
    %p123 = scmp.eq.s32.totalorder %s17, 1
    %p124 = por %p122, %p123
    %p126 = scmp.ne.s32.totalorder %s111, %s125
    %p127 = scmp.eq.s32.totalorder %s17, 0
    %p128 = por %p126, %p127
    %s129 = ssub.s32 %s11, %s18
    %p130 = scmp.eq.s32.totalorder %s129, 0
    %s132 = sadd.s32 %s131, 1
    %s133 = scalar_select %p130, %s131, %s132
    %p136 = pneg %p130
    %p137 = scmp.eq.s32.totalorder %s11, 1
    %p138 = por %p136, %p137
    %p139 = scmp.ne.s32.totalorder %s131, %s134
    %p140 = scmp.eq.s32.totalorder %s11, 0
    %p141 = por %p139, %p140
    %p142 = scmp.ne.s32.totalorder %s131, %s134
    %p143 = scmp.eq.s32.totalorder %s16, 1
    %p144 = por %p142, %p143
    %p145 = scmp.ne.s32.totalorder %s134, %s135
    %p146 = scmp.eq.s32.totalorder %s16, 0
    %p147 = por %p145, %p146
    %p148 = scmp.ne.s32.totalorder %s134, %s135
    %p149 = scmp.eq.s32.totalorder %s17, 1
    %p150 = por %p148, %p149
    %p152 = scmp.ne.s32.totalorder %s135, %s151
    %p153 = scmp.eq.s32.totalorder %s17, 0
    %p154 = por %p152, %p153
    %p155 = scmp.le.s32.totalorder 1, %s11
    %p156 = scmp.lt.s32.totalorder %s11, 3
    %p157 = pnand %p155, %p156
    %p158 = pneg %p157
    // Predicated region
    $region9: #{decoder_block_forward.1} parent=5 // pred_check
      _
    $region10: #{decoder_block_forward.1} parent=5 // pred_check_branch
      %160 = sbr.rel (%p157) target = $region12
    $region11: #{decoder_block_forward.1} parent=5 // pred_region
      %s161 = ssub.s32 %s11, 1
      // Predicated region
      $region13: #{decoder_block_forward.1} parent=11 // pred_check
        %p162 = pneg %p58
      $region14: #{decoder_block_forward.1} parent=11 // pred_check_branch
        %164 = sbr.rel (%p162) target = $region16
      $region15: #{decoder_block_forward.1} parent=11 // pred_region
        _
      $region16: #{decoder_block_forward.1} parent=11 // pred_fallthru
        _
      // Predicated region
      $region17: #{decoder_block_forward.1} parent=11 // pred_check
        %p165 = pneg %p79
      $region18: #{decoder_block_forward.1} parent=11 // pred_check_branch
        %167 = sbr.rel (%p165) target = $region20
      $region19: #{decoder_block_forward.1} parent=11 // pred_region
        _
      $region20: #{decoder_block_forward.1} parent=11 // pred_fallthru
        _
      // Predicated region
      $region21: #{decoder_block_forward.1} parent=11 // pred_check
        %p168 = pneg %p100
      $region22: #{decoder_block_forward.1} parent=11 // pred_check_branch
        %170 = sbr.rel (%p168) target = $region24
      $region23: #{decoder_block_forward.1} parent=11 // pred_region
        _
      $region24: #{decoder_block_forward.1} parent=11 // pred_fallthru
        _
      // Predicated region
      $region25: #{decoder_block_forward.1} parent=11 // pred_check
        %p171 = pneg %p121
      $region26: #{decoder_block_forward.1} parent=11 // pred_check_branch
        %173 = sbr.rel (%p171) target = $region28
      $region27: #{decoder_block_forward.1} parent=11 // pred_region
        _
      $region28: #{decoder_block_forward.1} parent=11 // pred_fallthru
        _
    $region12: #{decoder_block_forward.1} parent=5 // pred_fallthru
      _
    %p174 = scmp.lt.s32.totalorder %s11, 2
    // Predicated region
    $region29: #{decoder_block_forward.1} parent=5 // pred_check
      %p175 = pneg %p174
    $region30: #{decoder_block_forward.1} parent=5 // pred_check_branch
      %177 = sbr.rel (%p175) target = $region32
    $region31: #{decoder_block_forward.1} parent=5 // pred_region
      // Predicated region
      $region33: #{decoder_block_forward.1} parent=31 // pred_check
        %p178 = pneg %p31
      $region34: #{decoder_block_forward.1} parent=31 // pred_check_branch
        %180 = sbr.rel (%p178) target = $region36
      $region35: #{decoder_block_forward.1} parent=31 // pred_region
        %p181 = scmp.lt.s32.totalorder %s11, 1
        %s182 = scalar_select %p181, %s11, 1
        %s183 = smul.addr %s182, 32
        %s184 = smul.addr %s183, 8
        %s185 = scalar_lea.vmem %s0, %s184
      $region36: #{decoder_block_forward.1} parent=31 // pred_fallthru
        _
    $region32: #{decoder_block_forward.1} parent=5 // pred_fallthru
      _
    %p186 = scmp.le.s32.totalorder 1, %s11
    %p187 = scmp.lt.s32.totalorder %s11, 3
    %p188 = pnand %p186, %p187
    %p189 = pneg %p188
    // Predicated region
    $region37: #{decoder_block_forward.1} parent=5 // pred_check
      _
    $region38: #{decoder_block_forward.1} parent=5 // pred_check_branch
      %191 = sbr.rel (%p188) target = $region40
    $region39: #{decoder_block_forward.1} parent=5 // pred_region
      %s192 = ssub.s32 %s11, 1
      %p193 = scmp.lt.s32.totalorder %s16, 1
      %s194 = scalar_select %p193, %s16, 1
      %s195 = smul.addr %s194, 32
      %s196 = smul.addr %s195, 8
      %s197 = scalar_lea.vmem %s0, %s196
      %p198 = pneg %p37
      %p199 = pneg %p34
      %p200 = pneg %p58
      %p201 = pneg %p55
      %p202 = pneg %p79
      %p203 = pneg %p76
      %p204 = pneg %p100
      %p205 = pneg %p97
      %p206 = pneg %p121
      %p207 = pneg %p118
      %p208 = pneg %p147
      %p209 = pneg %p144
      %p210 = scmp.lt.s32.totalorder %s16, 1
      %s211 = scalar_select %p210, %s16, 1
      %s212 = smul.addr %s211, 32
      %s213 = smul.addr %s212, 8
      %s214 = scalar_lea.vmem %s5, %s213
      %p215 = scmp.lt.s32.totalorder %s16, 1
      %s216 = scalar_select %p215, %s16, 1
      %s217 = smul.addr %s216, 32
      %s218 = smul.addr %s217, 8
      %s219 = scalar_lea.vmem %s0, %s218
      %p220 = scmp.lt.s32.totalorder %s16, 1
      %s221 = scalar_select %p220, %s16, 1
      %s222 = smul.addr %s221, 32
      %s223 = smul.addr %s222, 8
      %s224 = scalar_lea.vmem %s5, %s223
      %vm225 = vcmask 31744
      %226 = vst.msk [vmem:[#allocation2] sm:$0xff] %vm225, 0.0
      %227 = vst.msk [vmem:[#allocation2 + $0x8] sm:$0xff] %vm225, 0.0
      %vm228 = vcmask 25600
      %229 = vst.msk [vmem:[#allocation2 + $0x10] sm:$0x3] %vm228, 0.0
      %230 = vst.msk [vmem:[#allocation2 + $0x18] sm:$0xff] %vm225, 0.0
      %231 = vst.msk [vmem:[#allocation2 + $0x20] sm:$0xff] %vm225, 0.0
      %232 = vst.msk [vmem:[#allocation2 + $0x28] sm:$0x3] %vm228, 0.0
      %233 = vst.msk [vmem:[#allocation2 + $0x30] sm:$0xff] %vm225, 0.0
      %234 = vst.msk [vmem:[#allocation2 + $0x38] sm:$0xff] %vm225, 0.0
      %235 = vst.msk [vmem:[#allocation2 + $0x40] sm:$0x3] %vm228, 0.0
      %236 = vst.msk [vmem:[#allocation2 + $0x48] sm:$0xff] %vm225, 0.0
      %237 = vst.msk [vmem:[#allocation2 + $0x50] sm:$0xff] %vm225, 0.0
      %238 = vst.msk [vmem:[#allocation2 + $0x58] sm:$0x3] %vm228, 0.0
      %239 = vst.msk [vmem:[#allocation2 + $0x60] sm:$0xff] %vm225, 0.0
      %240 = vst.msk [vmem:[#allocation2 + $0x68] sm:$0xff] %vm225, 0.0
      %241 = vst.msk [vmem:[#allocation2 + $0x70] sm:$0x3] %vm228, 0.0
      %242 = vst.msk [vmem:[#allocation2 + $0x78] sm:$0xff] %vm225, 0.0
      %243 = vst.msk [vmem:[#allocation2 + $0x80] sm:$0xff] %vm225, 0.0
      %244 = vst.msk [vmem:[#allocation2 + $0x88] sm:$0x3] %vm228, 0.0
      %245 = vst.msk [vmem:[#allocation2 + $0x90] sm:$0xff] %vm225, 0.0
      %246 = vst.msk [vmem:[#allocation2 + $0x98] sm:$0xff] %vm225, 0.0
      %247 = vst.msk [vmem:[#allocation2 + $0xa0] sm:$0x3] %vm228, 0.0
      %248 = vst.msk [vmem:[#allocation2 + $0xa8] sm:$0xff] %vm225, 0.0
      %249 = vst.msk [vmem:[#allocation2 + $0xb0] sm:$0xff] %vm225, 0.0
      %250 = vst.msk [vmem:[#allocation2 + $0xb8] sm:$0x3] %vm228, 0.0
      %251 = vst.msk [vmem:[#allocation2 + $0xc0] sm:$0xff] %vm225, 0.0
      %252 = vst.msk [vmem:[#allocation2 + $0xc8] sm:$0xff] %vm225, 0.0
      %253 = vst.msk [vmem:[#allocation2 + $0xd0] sm:$0x3] %vm228, 0.0
      %254 = vst.msk [vmem:[#allocation2 + $0xd8] sm:$0xff] %vm225, 0.0
      %255 = vst.msk [vmem:[#allocation2 + $0xe0] sm:$0xff] %vm225, 0.0
      %256 = vst.msk [vmem:[#allocation2 + $0xe8] sm:$0x3] %vm228, 0.0
      %257 = vst.msk [vmem:[#allocation2 + $0xf0] sm:$0xff] %vm225, 0.0
      %258 = vst.msk [vmem:[#allocation2 + $0xf8] sm:$0xff] %vm225, 0.0
      %259 = vst.msk [vmem:[#allocation2 + $0x100] sm:$0x3] %vm228, 0.0
      %260 = vst.msk [vmem:[#allocation2 + $0x108] sm:$0xff] %vm225, 0.0
      %261 = vst.msk [vmem:[#allocation2 + $0x110] sm:$0xff] %vm225, 0.0
      %262 = vst.msk [vmem:[#allocation2 + $0x118] sm:$0x3] %vm228, 0.0
      %263 = vst.msk [vmem:[#allocation2 + $0x120] sm:$0xff] %vm225, 0.0
      %264 = vst.msk [vmem:[#allocation2 + $0x128] sm:$0xff] %vm225, 0.0
      %265 = vst.msk [vmem:[#allocation2 + $0x130] sm:$0x3] %vm228, 0.0
      %266 = vst.msk [vmem:[#allocation2 + $0x138] sm:$0xff] %vm225, 0.0
      %267 = vst.msk [vmem:[#allocation2 + $0x140] sm:$0xff] %vm225, 0.0
      %268 = vst.msk [vmem:[#allocation2 + $0x148] sm:$0x3] %vm228, 0.0
      %269 = vst.msk [vmem:[#allocation2 + $0x150] sm:$0xff] %vm225, 0.0
      %270 = vst.msk [vmem:[#allocation2 + $0x158] sm:$0xff] %vm225, 0.0
      %271 = vst.msk [vmem:[#allocation2 + $0x160] sm:$0x3] %vm228, 0.0
      %272 = vst.msk [vmem:[#allocation2 + $0x168] sm:$0xff] %vm225, 0.0
      %273 = vst.msk [vmem:[#allocation2 + $0x170] sm:$0xff] %vm225, 0.0
      %274 = vst.msk [vmem:[#allocation2 + $0x178] sm:$0x3] %vm228, 0.0
      %275 = vst.msk [vmem:[#allocation2 + $0x180] sm:$0xff] %vm225, 0.0
      %276 = vst.msk [vmem:[#allocation2 + $0x188] sm:$0xff] %vm225, 0.0
      %277 = vst.msk [vmem:[#allocation2 + $0x190] sm:$0x3] %vm228, 0.0
      %278 = vst.msk [vmem:[#allocation2 + $0x198] sm:$0xff] %vm225, 0.0
      %279 = vst.msk [vmem:[#allocation2 + $0x1a0] sm:$0xff] %vm225, 0.0
      %280 = vst.msk [vmem:[#allocation2 + $0x1a8] sm:$0x3] %vm228, 0.0
      %v281 = vld [vmem:[%s219] sm:$0xff]
      %v282 = vld [vmem:[%s219 + $0x8] sm:$0xff]
      %v283 = vld [vmem:[%s219 + $0x10] sm:$0xff]
      %v284 = vld [vmem:[%s219 + $0x18] sm:$0xff]
      %v285 = vld [vmem:[%s219 + $0x20] sm:$0xff]
      %v286 = vld [vmem:[%s219 + $0x28] sm:$0xff]
      %v287 = vld [vmem:[%s219 + $0x30] sm:$0xff]
      %v288 = vld [vmem:[%s219 + $0x38] sm:$0xff]
      %v289 = vld [vmem:[%s219 + $0x40] sm:$0xff]
      %v290 = vld [vmem:[%s219 + $0x48] sm:$0xff]
      %v291 = vld [vmem:[%s219 + $0x50] sm:$0xff]
      %v292 = vld [vmem:[%s219 + $0x58] sm:$0xff]
      %v293 = vld [vmem:[%s219 + $0x60] sm:$0xff]
      %v294 = vld [vmem:[%s219 + $0x68] sm:$0xff]
      %v295 = vld [vmem:[%s219 + $0x70] sm:$0xff]
      %v296 = vld [vmem:[%s219 + $0x78] sm:$0xff]
      %v297 = vld [vmem:[%s219 + $0x80] sm:$0xff]
      %v298 = vld [vmem:[%s219 + $0x88] sm:$0xff]
      %v299 = vld [vmem:[%s219 + $0x90] sm:$0xff]
      %v300 = vld [vmem:[%s219 + $0x98] sm:$0xff]
      %v301 = vld [vmem:[%s219 + $0xa0] sm:$0xff]
      %v302 = vld [vmem:[%s219 + $0xa8] sm:$0xff]
      %v303 = vld [vmem:[%s219 + $0xb0] sm:$0xff]
      %v304 = vld [vmem:[%s219 + $0xb8] sm:$0xff]
      %v305 = vld [vmem:[%s219 + $0xc0] sm:$0xff]
      %v306 = vld [vmem:[%s219 + $0xc8] sm:$0xff]
      %v307 = vld [vmem:[%s219 + $0xd0] sm:$0xff]
      %v308 = vld [vmem:[%s219 + $0xd8] sm:$0xff]
      %v309 = vld [vmem:[%s219 + $0xe0] sm:$0xff]
      %v310 = vld [vmem:[%s219 + $0xe8] sm:$0xff]
      %v311 = vld [vmem:[%s219 + $0xf0] sm:$0xff]
      %v312 = vld [vmem:[%s219 + $0xf8] sm:$0xff]
      %s313 = scalar_lea.vmem [#allocation2], 24
      %314 = vst.msk [vmem:[%s313 + $0x1] sm:$0xff] %vm225, %v281
      %315 = vst.msk [vmem:[%s313 + $0x9] sm:$0xff] %vm225, %v282
      %316 = vst.msk [vmem:[%s313 + $0x19] sm:$0xff] %vm225, %v283
      %317 = vst.msk [vmem:[%s313 + $0x21] sm:$0xff] %vm225, %v284
      %318 = vst.msk [vmem:[%s313 + $0x31] sm:$0xff] %vm225, %v285
      %319 = vst.msk [vmem:[%s313 + $0x39] sm:$0xff] %vm225, %v286
      %320 = vst.msk [vmem:[%s313 + $0x49] sm:$0xff] %vm225, %v287
      %321 = vst.msk [vmem:[%s313 + $0x51] sm:$0xff] %vm225, %v288
      %322 = vst.msk [vmem:[%s313 + $0x61] sm:$0xff] %vm225, %v289
      %323 = vst.msk [vmem:[%s313 + $0x69] sm:$0xff] %vm225, %v290
      %324 = vst.msk [vmem:[%s313 + $0x79] sm:$0xff] %vm225, %v291
      %325 = vst.msk [vmem:[%s313 + $0x81] sm:$0xff] %vm225, %v292
      %326 = vst.msk [vmem:[%s313 + $0x91] sm:$0xff] %vm225, %v293
      %327 = vst.msk [vmem:[%s313 + $0x99] sm:$0xff] %vm225, %v294
      %328 = vst.msk [vmem:[%s313 + $0xa9] sm:$0xff] %vm225, %v295
      %329 = vst.msk [vmem:[%s313 + $0xb1] sm:$0xff] %vm225, %v296
      %330 = vst.msk [vmem:[%s313 + $0xc1] sm:$0xff] %vm225, %v297
      %331 = vst.msk [vmem:[%s313 + $0xc9] sm:$0xff] %vm225, %v298
      %332 = vst.msk [vmem:[%s313 + $0xd9] sm:$0xff] %vm225, %v299
      %333 = vst.msk [vmem:[%s313 + $0xe1] sm:$0xff] %vm225, %v300
      %334 = vst.msk [vmem:[%s313 + $0xf1] sm:$0xff] %vm225, %v301
      %335 = vst.msk [vmem:[%s313 + $0xf9] sm:$0xff] %vm225, %v302
      %336 = vst.msk [vmem:[%s313 + $0x109] sm:$0xff] %vm225, %v303
      %337 = vst.msk [vmem:[%s313 + $0x111] sm:$0xff] %vm225, %v304
      %338 = vst.msk [vmem:[%s313 + $0x121] sm:$0xff] %vm225, %v305
      %339 = vst.msk [vmem:[%s313 + $0x129] sm:$0xff] %vm225, %v306
      %340 = vst.msk [vmem:[%s313 + $0x139] sm:$0xff] %vm225, %v307
      %341 = vst.msk [vmem:[%s313 + $0x141] sm:$0xff] %vm225, %v308
      %342 = vst.msk [vmem:[%s313 + $0x151] sm:$0xff] %vm225, %v309
      %343 = vst.msk [vmem:[%s313 + $0x159] sm:$0xff] %vm225, %v310
      %344 = vst.msk [vmem:[%s313 + $0x169] sm:$0xff] %vm225, %v311
      %345 = vst.msk [vmem:[%s313 + $0x171] sm:$0xff] %vm225, %v312
      %v346 = vld [vmem:[#allocation2] sm:$0xff]
      %v347 = vld [vmem:[#allocation2 + $0x8] sm:$0xff]
      %v348 = vld [vmem:[#allocation2 + $0x10] sm:$0x3]
      %v349 = vld [vmem:[#allocation2 + $0x18] sm:$0xff]
      %v350 = vld [vmem:[#allocation2 + $0x20] sm:$0xff]
      %v351 = vld [vmem:[#allocation2 + $0x28] sm:$0x3]
      %v352 = vld [vmem:[#allocation2 + $0x30] sm:$0xff]
      %v353 = vld [vmem:[#allocation2 + $0x38] sm:$0xff]
      %v354 = vld [vmem:[#allocation2 + $0x40] sm:$0x3]
      %v355 = vld [vmem:[#allocation2 + $0x48] sm:$0xff]
      %v356 = vld [vmem:[#allocation2 + $0x50] sm:$0xff]
      %v357 = vld [vmem:[#allocation2 + $0x58] sm:$0x3]
      %v358 = vld [vmem:[#allocation2 + $0x60] sm:$0xff]
      %v359 = vld [vmem:[#allocation2 + $0x68] sm:$0xff]
      %v360 = vld [vmem:[#allocation2 + $0x70] sm:$0x3]
      %v361 = vld [vmem:[#allocation2 + $0x78] sm:$0xff]
      %v362 = vld [vmem:[#allocation2 + $0x80] sm:$0xff]
      %v363 = vld [vmem:[#allocation2 + $0x88] sm:$0x3]
      %v364 = vld [vmem:[#allocation2 + $0x90] sm:$0xff]
      %v365 = vld [vmem:[#allocation2 + $0x98] sm:$0xff]
      %v366 = vld [vmem:[#allocation2 + $0xa0] sm:$0x3]
      %v367 = vld [vmem:[#allocation2 + $0xa8] sm:$0xff]
      %v368 = vld [vmem:[#allocation2 + $0xb0] sm:$0xff]
      %v369 = vld [vmem:[#allocation2 + $0xb8] sm:$0x3]
      %v370 = vld [vmem:[#allocation2 + $0xc0] sm:$0xff]
      %v371 = vld [vmem:[#allocation2 + $0xc8] sm:$0xff]
      %v372 = vld [vmem:[#allocation2 + $0xd0] sm:$0x3]
      %v373 = vld [vmem:[#allocation2 + $0xd8] sm:$0xff]
      %v374 = vld [vmem:[#allocation2 + $0xe0] sm:$0xff]
      %v375 = vld [vmem:[#allocation2 + $0xe8] sm:$0x3]
      %v376 = vld [vmem:[#allocation2 + $0xf0] sm:$0xff]
      %v377 = vld [vmem:[#allocation2 + $0xf8] sm:$0xff]
      %v378 = vld [vmem:[#allocation2 + $0x100] sm:$0x3]
      %v379 = vld [vmem:[#allocation2 + $0x108] sm:$0xff]
      %v380 = vld [vmem:[#allocation2 + $0x110] sm:$0xff]
      %v381 = vld [vmem:[#allocation2 + $0x118] sm:$0x3]
      %v382 = vld [vmem:[#allocation2 + $0x120] sm:$0xff]
      %v383 = vld [vmem:[#allocation2 + $0x128] sm:$0xff]
      %v384 = vld [vmem:[#allocation2 + $0x130] sm:$0x3]
      %v385 = vld [vmem:[#allocation2 + $0x138] sm:$0xff]
      %v386 = vld [vmem:[#allocation2 + $0x140] sm:$0xff]
      %v387 = vld [vmem:[#allocation2 + $0x148] sm:$0x3]
      %v388 = vld [vmem:[#allocation2 + $0x150] sm:$0xff]
      %v389 = vld [vmem:[#allocation2 + $0x158] sm:$0xff]
      %v390 = vld [vmem:[#allocation2 + $0x160] sm:$0x3]
      %v391 = vld [vmem:[#allocation2 + $0x168] sm:$0xff]
      %v392 = vld [vmem:[#allocation2 + $0x170] sm:$0xff]
      %v393 = vld [vmem:[#allocation2 + $0x178] sm:$0x3]
      %v394 = vld [vmem:[#allocation2 + $0x180] sm:$0xff]
      %v395 = vld [vmem:[#allocation2 + $0x188] sm:$0xff]
      %v396 = vld [vmem:[#allocation2 + $0x190] sm:$0x3]
      %v397 = vld [vmem:[#allocation2 + $0x198] sm:$0xff]
      %v398 = vld [vmem:[#allocation2 + $0x1a0] sm:$0xff]
      %v399 = vld [vmem:[#allocation2 + $0x1a8] sm:$0x3]
      %400 = vst.msk [vmem:[#allocation3] sm:$0xff] %vm225, %v346
      %401 = vst.msk [vmem:[#allocation3 + $0x8] sm:$0xff] %vm225, %v347
      %402 = vst.msk [vmem:[#allocation3 + $0x10] sm:$0xff] %vm225, %v349
      %403 = vst.msk [vmem:[#allocation3 + $0x18] sm:$0xff] %vm225, %v350
      %404 = vst.msk [vmem:[#allocation3 + $0x20] sm:$0xff] %vm225, %v352
      %405 = vst.msk [vmem:[#allocation3 + $0x28] sm:$0xff] %vm225, %v353
      %406 = vst.msk [vmem:[#allocation3 + $0x30] sm:$0xff] %vm225, %v355
      %407 = vst.msk [vmem:[#allocation3 + $0x38] sm:$0xff] %vm225, %v356
      %408 = vst.msk [vmem:[#allocation3 + $0x40] sm:$0xff] %vm225, %v358
      %409 = vst.msk [vmem:[#allocation3 + $0x48] sm:$0xff] %vm225, %v359
      %410 = vst.msk [vmem:[#allocation3 + $0x50] sm:$0xff] %vm225, %v361
      %411 = vst.msk [vmem:[#allocation3 + $0x58] sm:$0xff] %vm225, %v362
      %412 = vst.msk [vmem:[#allocation3 + $0x60] sm:$0xff] %vm225, %v364
      %413 = vst.msk [vmem:[#allocation3 + $0x68] sm:$0xff] %vm225, %v365
      %414 = vst.msk [vmem:[#allocation3 + $0x70] sm:$0xff] %vm225, %v367
      %415 = vst.msk [vmem:[#allocation3 + $0x78] sm:$0xff] %vm225, %v368
      %416 = vst.msk [vmem:[#allocation3 + $0x80] sm:$0xff] %vm225, %v370
      %417 = vst.msk [vmem:[#allocation3 + $0x88] sm:$0xff] %vm225, %v371
      %418 = vst.msk [vmem:[#allocation3 + $0x90] sm:$0xff] %vm225, %v373
      %419 = vst.msk [vmem:[#allocation3 + $0x98] sm:$0xff] %vm225, %v374
      %420 = vst.msk [vmem:[#allocation3 + $0xa0] sm:$0xff] %vm225, %v376
      %421 = vst.msk [vmem:[#allocation3 + $0xa8] sm:$0xff] %vm225, %v377
      %422 = vst.msk [vmem:[#allocation3 + $0xb0] sm:$0xff] %vm225, %v379
      %423 = vst.msk [vmem:[#allocation3 + $0xb8] sm:$0xff] %vm225, %v380
      %424 = vst.msk [vmem:[#allocation3 + $0xc0] sm:$0xff] %vm225, %v382
      %425 = vst.msk [vmem:[#allocation3 + $0xc8] sm:$0xff] %vm225, %v383
      %426 = vst.msk [vmem:[#allocation3 + $0xd0] sm:$0xff] %vm225, %v385
      %427 = vst.msk [vmem:[#allocation3 + $0xd8] sm:$0xff] %vm225, %v386
      %428 = vst.msk [vmem:[#allocation3 + $0xe0] sm:$0xff] %vm225, %v388
      %429 = vst.msk [vmem:[#allocation3 + $0xe8] sm:$0xff] %vm225, %v389
      %430 = vst.msk [vmem:[#allocation3 + $0xf0] sm:$0xff] %vm225, %v391
      %431 = vst.msk [vmem:[#allocation3 + $0xf8] sm:$0xff] %vm225, %v392
      %480 = vrot.lane.b32.xlu0 %v346, 4
      %v481 = vpop.permute.xlu0 %480
      %482 = vrot.lane.b32.xlu0 %v347, 4
      %v483 = vpop.permute.xlu0 %482
      %484 = vrot.lane.b32.xlu0 %v348, 4
      %v485 = vpop.permute.xlu0 %484
      %486 = vrot.lane.b32.xlu0 %v349, 4
      %v487 = vpop.permute.xlu0 %486
      %488 = vrot.lane.b32.xlu0 %v350, 4
      %v489 = vpop.permute.xlu0 %488
      %490 = vrot.lane.b32.xlu0 %v351, 4
      %v491 = vpop.permute.xlu0 %490
      %492 = vrot.lane.b32.xlu0 %v352, 4
      %v493 = vpop.permute.xlu0 %492
      %494 = vrot.lane.b32.xlu0 %v353, 4
      %v495 = vpop.permute.xlu0 %494
      %496 = vrot.lane.b32.xlu0 %v354, 4
      %v497 = vpop.permute.xlu0 %496
      %498 = vrot.lane.b32.xlu0 %v355, 4
      %v499 = vpop.permute.xlu0 %498
      %500 = vrot.lane.b32.xlu0 %v356, 4
      %v501 = vpop.permute.xlu0 %500
      %502 = vrot.lane.b32.xlu0 %v357, 4
      %v503 = vpop.permute.xlu0 %502
      %504 = vrot.lane.b32.xlu0 %v358, 4
      %v505 = vpop.permute.xlu0 %504
      %506 = vrot.lane.b32.xlu0 %v359, 4
      %v507 = vpop.permute.xlu0 %506
      %508 = vrot.lane.b32.xlu0 %v360, 4
      %v509 = vpop.permute.xlu0 %508
      %510 = vrot.lane.b32.xlu0 %v361, 4
      %v511 = vpop.permute.xlu0 %510
      %512 = vrot.lane.b32.xlu0 %v362, 4
      %v513 = vpop.permute.xlu0 %512
      %514 = vrot.lane.b32.xlu0 %v363, 4
      %v515 = vpop.permute.xlu0 %514
      %516 = vrot.lane.b32.xlu0 %v364, 4
      %v517 = vpop.permute.xlu0 %516
      %518 = vrot.lane.b32.xlu0 %v365, 4
      %v519 = vpop.permute.xlu0 %518
      %520 = vrot.lane.b32.xlu0 %v366, 4
      %v521 = vpop.permute.xlu0 %520
      %522 = vrot.lane.b32.xlu0 %v367, 4
      %v523 = vpop.permute.xlu0 %522
      %524 = vrot.lane.b32.xlu0 %v368, 4
      %v525 = vpop.permute.xlu0 %524
      %526 = vrot.lane.b32.xlu0 %v369, 4
      %v527 = vpop.permute.xlu0 %526
      %528 = vrot.lane.b32.xlu0 %v370, 4
      %v529 = vpop.permute.xlu0 %528
      %530 = vrot.lane.b32.xlu0 %v371, 4
      %v531 = vpop.permute.xlu0 %530
      %532 = vrot.lane.b32.xlu0 %v372, 4
      %v533 = vpop.permute.xlu0 %532
      %534 = vrot.lane.b32.xlu0 %v373, 4
      %v535 = vpop.permute.xlu0 %534
      %536 = vrot.lane.b32.xlu0 %v374, 4
      %v537 = vpop.permute.xlu0 %536
      %538 = vrot.lane.b32.xlu0 %v375, 4
      %v539 = vpop.permute.xlu0 %538
      %540 = vrot.lane.b32.xlu0 %v376, 4
      %v541 = vpop.permute.xlu0 %540
      %542 = vrot.lane.b32.xlu0 %v377, 4
      %v543 = vpop.permute.xlu0 %542
      %544 = vrot.lane.b32.xlu0 %v378, 4
      %v545 = vpop.permute.xlu0 %544
      %546 = vrot.lane.b32.xlu0 %v379, 4
      %v547 = vpop.permute.xlu0 %546
      %548 = vrot.lane.b32.xlu0 %v380, 4
      %v549 = vpop.permute.xlu0 %548
      %550 = vrot.lane.b32.xlu0 %v381, 4
      %v551 = vpop.permute.xlu0 %550
      %552 = vrot.lane.b32.xlu0 %v382, 4
      %v553 = vpop.permute.xlu0 %552
      %554 = vrot.lane.b32.xlu0 %v383, 4
      %v555 = vpop.permute.xlu0 %554
      %556 = vrot.lane.b32.xlu0 %v384, 4
      %v557 = vpop.permute.xlu0 %556
      %558 = vrot.lane.b32.xlu0 %v385, 4
      %v559 = vpop.permute.xlu0 %558
      %560 = vrot.lane.b32.xlu0 %v386, 4
      %v561 = vpop.permute.xlu0 %560
      %562 = vrot.lane.b32.xlu0 %v387, 4
      %v563 = vpop.permute.xlu0 %562
      %564 = vrot.lane.b32.xlu0 %v388, 4
      %v565 = vpop.permute.xlu0 %564
      %566 = vrot.lane.b32.xlu0 %v389, 4
      %v567 = vpop.permute.xlu0 %566
      %568 = vrot.lane.b32.xlu0 %v390, 4
      %v569 = vpop.permute.xlu0 %568
      %570 = vrot.lane.b32.xlu0 %v391, 4
      %v571 = vpop.permute.xlu0 %570
      %572 = vrot.lane.b32.xlu0 %v392, 4
      %v573 = vpop.permute.xlu0 %572
      %574 = vrot.lane.b32.xlu0 %v393, 4
      %v575 = vpop.permute.xlu0 %574
      %vm624 = vcmask 64545
      %625 = vst.msk [vmem:[#allocation3 - $0x1] sm:$0xfe] %vm624, %v481
      %vm626 = vcmask 64544
      %627 = vst.msk [vmem:[#allocation3 + $0x7] sm:$0xff] %vm626, %v483
      %vm628 = vcmask 57376
      %629 = vst.msk [vmem:[#allocation3 + $0xf] sm:$0x1] %vm628, %v485
      %630 = vst.msk [vmem:[#allocation3 + $0xf] sm:$0xfe] %vm624, %v487
      %631 = vst.msk [vmem:[#allocation3 + $0x17] sm:$0xff] %vm626, %v489
      %632 = vst.msk [vmem:[#allocation3 + $0x1f] sm:$0x1] %vm628, %v491
      %633 = vst.msk [vmem:[#allocation3 + $0x1f] sm:$0xfe] %vm624, %v493
      %634 = vst.msk [vmem:[#allocation3 + $0x27] sm:$0xff] %vm626, %v495
      %635 = vst.msk [vmem:[#allocation3 + $0x2f] sm:$0x1] %vm628, %v497
      %636 = vst.msk [vmem:[#allocation3 + $0x2f] sm:$0xfe] %vm624, %v499
      %637 = vst.msk [vmem:[#allocation3 + $0x37] sm:$0xff] %vm626, %v501
      %638 = vst.msk [vmem:[#allocation3 + $0x3f] sm:$0x1] %vm628, %v503
      %639 = vst.msk [vmem:[#allocation3 + $0x3f] sm:$0xfe] %vm624, %v505
      %640 = vst.msk [vmem:[#allocation3 + $0x47] sm:$0xff] %vm626, %v507
      %641 = vst.msk [vmem:[#allocation3 + $0x4f] sm:$0x1] %vm628, %v509
      %642 = vst.msk [vmem:[#allocation3 + $0x4f] sm:$0xfe] %vm624, %v511
      %643 = vst.msk [vmem:[#allocation3 + $0x57] sm:$0xff] %vm626, %v513
      %644 = vst.msk [vmem:[#allocation3 + $0x5f] sm:$0x1] %vm628, %v515
      %645 = vst.msk [vmem:[#allocation3 + $0x5f] sm:$0xfe] %vm624, %v517
      %646 = vst.msk [vmem:[#allocation3 + $0x67] sm:$0xff] %vm626, %v519
      %647 = vst.msk [vmem:[#allocation3 + $0x6f] sm:$0x1] %vm628, %v521
      %648 = vst.msk [vmem:[#allocation3 + $0x6f] sm:$0xfe] %vm624, %v523
      %649 = vst.msk [vmem:[#allocation3 + $0x77] sm:$0xff] %vm626, %v525
      %650 = vst.msk [vmem:[#allocation3 + $0x7f] sm:$0x1] %vm628, %v527
      %651 = vst.msk [vmem:[#allocation3 + $0x7f] sm:$0xfe] %vm624, %v529
      %652 = vst.msk [vmem:[#allocation3 + $0x87] sm:$0xff] %vm626, %v531
      %653 = vst.msk [vmem:[#allocation3 + $0x8f] sm:$0x1] %vm628, %v533
      %654 = vst.msk [vmem:[#allocation3 + $0x8f] sm:$0xfe] %vm624, %v535
      %655 = vst.msk [vmem:[#allocation3 + $0x97] sm:$0xff] %vm626, %v537
      %656 = vst.msk [vmem:[#allocation3 + $0x9f] sm:$0x1] %vm628, %v539
      %657 = vst.msk [vmem:[#allocation3 + $0x9f] sm:$0xfe] %vm624, %v541
      %658 = vst.msk [vmem:[#allocation3 + $0xa7] sm:$0xff] %vm626, %v543
      %659 = vst.msk [vmem:[#allocation3 + $0xaf] sm:$0x1] %vm628, %v545
      %660 = vst.msk [vmem:[#allocation3 + $0xaf] sm:$0xfe] %vm624, %v547
      %661 = vst.msk [vmem:[#allocation3 + $0xb7] sm:$0xff] %vm626, %v549
      %662 = vst.msk [vmem:[#allocation3 + $0xbf] sm:$0x1] %vm628, %v551
      %663 = vst.msk [vmem:[#allocation3 + $0xbf] sm:$0xfe] %vm624, %v553
      %664 = vst.msk [vmem:[#allocation3 + $0xc7] sm:$0xff] %vm626, %v555
      %665 = vst.msk [vmem:[#allocation3 + $0xcf] sm:$0x1] %vm628, %v557
      %666 = vst.msk [vmem:[#allocation3 + $0xcf] sm:$0xfe] %vm624, %v559
      %667 = vst.msk [vmem:[#allocation3 + $0xd7] sm:$0xff] %vm626, %v561
      %668 = vst.msk [vmem:[#allocation3 + $0xdf] sm:$0x1] %vm628, %v563
      %669 = vst.msk [vmem:[#allocation3 + $0xdf] sm:$0xfe] %vm624, %v565
      %670 = vst.msk [vmem:[#allocation3 + $0xe7] sm:$0xff] %vm626, %v567
      %671 = vst.msk [vmem:[#allocation3 + $0xef] sm:$0x1] %vm628, %v569
      %672 = vst.msk [vmem:[#allocation3 + $0xef] sm:$0xfe] %vm624, %v571
      %673 = vst.msk [vmem:[#allocation3 + $0xf7] sm:$0xff] %vm626, %v573
      %674 = vst.msk [vmem:[#allocation3 + $0xff] sm:$0x1] %vm628, %v575
      %675 = vrot.lane.b32.xlu0 %v346, 8
      %v676 = vpop.permute.xlu0 %675
      %677 = vrot.lane.b32.xlu0 %v347, 8
      %v678 = vpop.permute.xlu0 %677
      %679 = vrot.lane.b32.xlu0 %v348, 8
      %v680 = vpop.permute.xlu0 %679
      %681 = vrot.lane.b32.xlu0 %v349, 8
      %v682 = vpop.permute.xlu0 %681
      %683 = vrot.lane.b32.xlu0 %v350, 8
      %v684 = vpop.permute.xlu0 %683
      %685 = vrot.lane.b32.xlu0 %v351, 8
      %v686 = vpop.permute.xlu0 %685
      %687 = vrot.lane.b32.xlu0 %v352, 8
      %v688 = vpop.permute.xlu0 %687
      %689 = vrot.lane.b32.xlu0 %v353, 8
      %v690 = vpop.permute.xlu0 %689
      %691 = vrot.lane.b32.xlu0 %v354, 8
      %v692 = vpop.permute.xlu0 %691
      %693 = vrot.lane.b32.xlu0 %v355, 8
      %v694 = vpop.permute.xlu0 %693
      %695 = vrot.lane.b32.xlu0 %v356, 8
      %v696 = vpop.permute.xlu0 %695
      %697 = vrot.lane.b32.xlu0 %v357, 8
      %v698 = vpop.permute.xlu0 %697
      %699 = vrot.lane.b32.xlu0 %v358, 8
      %v700 = vpop.permute.xlu0 %699
      %701 = vrot.lane.b32.xlu0 %v359, 8
      %v702 = vpop.permute.xlu0 %701
      %703 = vrot.lane.b32.xlu0 %v360, 8
      %v704 = vpop.permute.xlu0 %703
      %705 = vrot.lane.b32.xlu0 %v361, 8
      %v706 = vpop.permute.xlu0 %705
      %707 = vrot.lane.b32.xlu0 %v362, 8
      %v708 = vpop.permute.xlu0 %707
      %709 = vrot.lane.b32.xlu0 %v363, 8
      %v710 = vpop.permute.xlu0 %709
      %711 = vrot.lane.b32.xlu0 %v364, 8
      %v712 = vpop.permute.xlu0 %711
      %713 = vrot.lane.b32.xlu0 %v365, 8
      %v714 = vpop.permute.xlu0 %713
      %715 = vrot.lane.b32.xlu0 %v366, 8
      %v716 = vpop.permute.xlu0 %715
      %717 = vrot.lane.b32.xlu0 %v367, 8
      %v718 = vpop.permute.xlu0 %717
      %719 = vrot.lane.b32.xlu0 %v368, 8
      %v720 = vpop.permute.xlu0 %719
      %721 = vrot.lane.b32.xlu0 %v369, 8
      %v722 = vpop.permute.xlu0 %721
      %723 = vrot.lane.b32.xlu0 %v370, 8
      %v724 = vpop.permute.xlu0 %723
      %725 = vrot.lane.b32.xlu0 %v371, 8
      %v726 = vpop.permute.xlu0 %725
      %727 = vrot.lane.b32.xlu0 %v372, 8
      %v728 = vpop.permute.xlu0 %727
      %729 = vrot.lane.b32.xlu0 %v373, 8
      %v730 = vpop.permute.xlu0 %729
      %731 = vrot.lane.b32.xlu0 %v374, 8
      %v732 = vpop.permute.xlu0 %731
      %733 = vrot.lane.b32.xlu0 %v375, 8
      %v734 = vpop.permute.xlu0 %733
      %735 = vrot.lane.b32.xlu0 %v376, 8
      %v736 = vpop.permute.xlu0 %735
      %737 = vrot.lane.b32.xlu0 %v377, 8
      %v738 = vpop.permute.xlu0 %737
      %739 = vrot.lane.b32.xlu0 %v378, 8
      %v740 = vpop.permute.xlu0 %739
      %741 = vrot.lane.b32.xlu0 %v379, 8
      %v742 = vpop.permute.xlu0 %741
      %743 = vrot.lane.b32.xlu0 %v380, 8
      %v744 = vpop.permute.xlu0 %743
      %745 = vrot.lane.b32.xlu0 %v381, 8
      %v746 = vpop.permute.xlu0 %745
      %747 = vrot.lane.b32.xlu0 %v382, 8
      %v748 = vpop.permute.xlu0 %747
      %749 = vrot.lane.b32.xlu0 %v383, 8
      %v750 = vpop.permute.xlu0 %749
      %751 = vrot.lane.b32.xlu0 %v384, 8
      %v752 = vpop.permute.xlu0 %751
      %753 = vrot.lane.b32.xlu0 %v385, 8
      %v754 = vpop.permute.xlu0 %753
      %755 = vrot.lane.b32.xlu0 %v386, 8
      %v756 = vpop.permute.xlu0 %755
      %757 = vrot.lane.b32.xlu0 %v387, 8
      %v758 = vpop.permute.xlu0 %757
      %759 = vrot.lane.b32.xlu0 %v388, 8
      %v760 = vpop.permute.xlu0 %759
      %761 = vrot.lane.b32.xlu0 %v389, 8
      %v762 = vpop.permute.xlu0 %761
      %763 = vrot.lane.b32.xlu0 %v390, 8
      %v764 = vpop.permute.xlu0 %763
      %765 = vrot.lane.b32.xlu0 %v391, 8
      %v766 = vpop.permute.xlu0 %765
      %767 = vrot.lane.b32.xlu0 %v392, 8
      %v768 = vpop.permute.xlu0 %767
      %769 = vrot.lane.b32.xlu0 %v393, 8
      %v770 = vpop.permute.xlu0 %769
      %vm819 = vcmask 97346
      %820 = vst.msk [vmem:[#allocation3 - $0x2] sm:$0xfc] %vm819, %v676
      %vm821 = vcmask 97344
      %822 = vst.msk [vmem:[#allocation3 + $0x6] sm:$0xff] %vm821, %v678
      %vm823 = vcmask 91200
      %824 = vst.msk [vmem:[#allocation3 + $0xe] sm:$0x3] %vm823, %v680
      %825 = vst.msk [vmem:[#allocation3 + $0xe] sm:$0xfc] %vm819, %v682
      %826 = vst.msk [vmem:[#allocation3 + $0x16] sm:$0xff] %vm821, %v684
      %827 = vst.msk [vmem:[#allocation3 + $0x1e] sm:$0x3] %vm823, %v686
      %828 = vst.msk [vmem:[#allocation3 + $0x1e] sm:$0xfc] %vm819, %v688
      %829 = vst.msk [vmem:[#allocation3 + $0x26] sm:$0xff] %vm821, %v690
      %830 = vst.msk [vmem:[#allocation3 + $0x2e] sm:$0x3] %vm823, %v692
      %831 = vst.msk [vmem:[#allocation3 + $0x2e] sm:$0xfc] %vm819, %v694
      %832 = vst.msk [vmem:[#allocation3 + $0x36] sm:$0xff] %vm821, %v696
      %833 = vst.msk [vmem:[#allocation3 + $0x3e] sm:$0x3] %vm823, %v698
      %834 = vst.msk [vmem:[#allocation3 + $0x3e] sm:$0xfc] %vm819, %v700
      %835 = vst.msk [vmem:[#allocation3 + $0x46] sm:$0xff] %vm821, %v702
      %836 = vst.msk [vmem:[#allocation3 + $0x4e] sm:$0x3] %vm823, %v704
      %837 = vst.msk [vmem:[#allocation3 + $0x4e] sm:$0xfc] %vm819, %v706
      %838 = vst.msk [vmem:[#allocation3 + $0x56] sm:$0xff] %vm821, %v708
      %839 = vst.msk [vmem:[#allocation3 + $0x5e] sm:$0x3] %vm823, %v710
      %840 = vst.msk [vmem:[#allocation3 + $0x5e] sm:$0xfc] %vm819, %v712
      %841 = vst.msk [vmem:[#allocation3 + $0x66] sm:$0xff] %vm821, %v714
      %842 = vst.msk [vmem:[#allocation3 + $0x6e] sm:$0x3] %vm823, %v716
      %843 = vst.msk [vmem:[#allocation3 + $0x6e] sm:$0xfc] %vm819, %v718
      %844 = vst.msk [vmem:[#allocation3 + $0x76] sm:$0xff] %vm821, %v720
      %845 = vst.msk [vmem:[#allocation3 + $0x7e] sm:$0x3] %vm823, %v722
      %846 = vst.msk [vmem:[#allocation3 + $0x7e] sm:$0xfc] %vm819, %v724
      %847 = vst.msk [vmem:[#allocation3 + $0x86] sm:$0xff] %vm821, %v726
      %848 = vst.msk [vmem:[#allocation3 + $0x8e] sm:$0x3] %vm823, %v728
      %849 = vst.msk [vmem:[#allocation3 + $0x8e] sm:$0xfc] %vm819, %v730
      %850 = vst.msk [vmem:[#allocation3 + $0x96] sm:$0xff] %vm821, %v732
      %851 = vst.msk [vmem:[#allocation3 + $0x9e] sm:$0x3] %vm823, %v734
      %852 = vst.msk [vmem:[#allocation3 + $0x9e] sm:$0xfc] %vm819, %v736
      %853 = vst.msk [vmem:[#allocation3 + $0xa6] sm:$0xff] %vm821, %v738
      %854 = vst.msk [vmem:[#allocation3 + $0xae] sm:$0x3] %vm823, %v740
      %855 = vst.msk [vmem:[#allocation3 + $0xae] sm:$0xfc] %vm819, %v742
      %856 = vst.msk [vmem:[#allocation3 + $0xb6] sm:$0xff] %vm821, %v744
      %857 = vst.msk [vmem:[#allocation3 + $0xbe] sm:$0x3] %vm823, %v746
      %858 = vst.msk [vmem:[#allocation3 + $0xbe] sm:$0xfc] %vm819, %v748
      %859 = vst.msk [vmem:[#allocation3 + $0xc6] sm:$0xff] %vm821, %v750
      %860 = vst.msk [vmem:[#allocation3 + $0xce] sm:$0x3] %vm823, %v752
      %861 = vst.msk [vmem:[#allocation3 + $0xce] sm:$0xfc] %vm819, %v754
      %862 = vst.msk [vmem:[#allocation3 + $0xd6] sm:$0xff] %vm821, %v756
      %863 = vst.msk [vmem:[#allocation3 + $0xde] sm:$0x3] %vm823, %v758
      %864 = vst.msk [vmem:[#allocation3 + $0xde] sm:$0xfc] %vm819, %v760
      %865 = vst.msk [vmem:[#allocation3 + $0xe6] sm:$0xff] %vm821, %v762
      %866 = vst.msk [vmem:[#allocation3 + $0xee] sm:$0x3] %vm823, %v764
      %867 = vst.msk [vmem:[#allocation3 + $0xee] sm:$0xfc] %vm819, %v766
      %868 = vst.msk [vmem:[#allocation3 + $0xf6] sm:$0xff] %vm821, %v768
      %869 = vst.msk [vmem:[#allocation3 + $0xfe] sm:$0x3] %vm823, %v770
      %872 = vrot.lane.b32.xlu0 %v349, 12
      %v873 = vpop.permute.xlu0 %872
      %874 = vrot.lane.b32.xlu0 %v350, 12
      %v875 = vpop.permute.xlu0 %874
      %876 = vrot.lane.b32.xlu0 %v352, 12
      %v877 = vpop.permute.xlu0 %876
      %878 = vrot.lane.b32.xlu0 %v353, 12
      %v879 = vpop.permute.xlu0 %878
      %880 = vrot.lane.b32.xlu0 %v355, 12
      %v881 = vpop.permute.xlu0 %880
      %882 = vrot.lane.b32.xlu0 %v356, 12
      %v883 = vpop.permute.xlu0 %882
      %884 = vrot.lane.b32.xlu0 %v358, 12
      %v885 = vpop.permute.xlu0 %884
      %886 = vrot.lane.b32.xlu0 %v359, 12
      %v887 = vpop.permute.xlu0 %886
      %888 = vrot.lane.b32.xlu0 %v361, 12
      %v889 = vpop.permute.xlu0 %888
      %890 = vrot.lane.b32.xlu0 %v362, 12
      %v891 = vpop.permute.xlu0 %890
      %892 = vrot.lane.b32.xlu0 %v364, 12
      %v893 = vpop.permute.xlu0 %892
      %894 = vrot.lane.b32.xlu0 %v365, 12
      %v895 = vpop.permute.xlu0 %894
      %896 = vrot.lane.b32.xlu0 %v367, 12
      %v897 = vpop.permute.xlu0 %896
      %898 = vrot.lane.b32.xlu0 %v368, 12
      %v899 = vpop.permute.xlu0 %898
      %900 = vrot.lane.b32.xlu0 %v370, 12
      %v901 = vpop.permute.xlu0 %900
      %902 = vrot.lane.b32.xlu0 %v371, 12
      %v903 = vpop.permute.xlu0 %902
      %904 = vrot.lane.b32.xlu0 %v373, 12
      %v905 = vpop.permute.xlu0 %904
      %906 = vrot.lane.b32.xlu0 %v374, 12
      %v907 = vpop.permute.xlu0 %906
      %908 = vrot.lane.b32.xlu0 %v376, 12
      %v909 = vpop.permute.xlu0 %908
      %910 = vrot.lane.b32.xlu0 %v377, 12
      %v911 = vpop.permute.xlu0 %910
      %912 = vrot.lane.b32.xlu0 %v379, 12
      %v913 = vpop.permute.xlu0 %912
      %914 = vrot.lane.b32.xlu0 %v380, 12
      %v915 = vpop.permute.xlu0 %914
      %916 = vrot.lane.b32.xlu0 %v382, 12
      %v917 = vpop.permute.xlu0 %916
      %918 = vrot.lane.b32.xlu0 %v383, 12
      %v919 = vpop.permute.xlu0 %918
      %920 = vrot.lane.b32.xlu0 %v385, 12
      %v921 = vpop.permute.xlu0 %920
      %922 = vrot.lane.b32.xlu0 %v386, 12
      %v923 = vpop.permute.xlu0 %922
      %924 = vrot.lane.b32.xlu0 %v388, 12
      %v925 = vpop.permute.xlu0 %924
      %926 = vrot.lane.b32.xlu0 %v389, 12
      %v927 = vpop.permute.xlu0 %926
      %928 = vrot.lane.b32.xlu0 %v391, 12
      %v929 = vpop.permute.xlu0 %928
      %930 = vrot.lane.b32.xlu0 %v392, 12
      %v931 = vpop.permute.xlu0 %930
      %932 = vrot.lane.b32.xlu0 %v394, 12
      %v933 = vpop.permute.xlu0 %932
      %934 = vrot.lane.b32.xlu0 %v395, 12
      %v935 = vpop.permute.xlu0 %934
      %vm968 = vcmask 130144
      %969 = vst.msk [vmem:[#allocation3] sm:$0xff] %vm968, %v873
      %970 = vst.msk [vmem:[#allocation3 + $0x8] sm:$0xff] %vm968, %v875
      %971 = vst.msk [vmem:[#allocation3 + $0x10] sm:$0xff] %vm968, %v877
      %972 = vst.msk [vmem:[#allocation3 + $0x18] sm:$0xff] %vm968, %v879
      %973 = vst.msk [vmem:[#allocation3 + $0x20] sm:$0xff] %vm968, %v881
      %974 = vst.msk [vmem:[#allocation3 + $0x28] sm:$0xff] %vm968, %v883
      %975 = vst.msk [vmem:[#allocation3 + $0x30] sm:$0xff] %vm968, %v885
      %976 = vst.msk [vmem:[#allocation3 + $0x38] sm:$0xff] %vm968, %v887
      %977 = vst.msk [vmem:[#allocation3 + $0x40] sm:$0xff] %vm968, %v889
      %978 = vst.msk [vmem:[#allocation3 + $0x48] sm:$0xff] %vm968, %v891
      %979 = vst.msk [vmem:[#allocation3 + $0x50] sm:$0xff] %vm968, %v893
      %980 = vst.msk [vmem:[#allocation3 + $0x58] sm:$0xff] %vm968, %v895
      %981 = vst.msk [vmem:[#allocation3 + $0x60] sm:$0xff] %vm968, %v897
      %982 = vst.msk [vmem:[#allocation3 + $0x68] sm:$0xff] %vm968, %v899
      %983 = vst.msk [vmem:[#allocation3 + $0x70] sm:$0xff] %vm968, %v901
      %984 = vst.msk [vmem:[#allocation3 + $0x78] sm:$0xff] %vm968, %v903
      %985 = vst.msk [vmem:[#allocation3 + $0x80] sm:$0xff] %vm968, %v905
      %986 = vst.msk [vmem:[#allocation3 + $0x88] sm:$0xff] %vm968, %v907
      %987 = vst.msk [vmem:[#allocation3 + $0x90] sm:$0xff] %vm968, %v909
      %988 = vst.msk [vmem:[#allocation3 + $0x98] sm:$0xff] %vm968, %v911
      %989 = vst.msk [vmem:[#allocation3 + $0xa0] sm:$0xff] %vm968, %v913
      %990 = vst.msk [vmem:[#allocation3 + $0xa8] sm:$0xff] %vm968, %v915
      %991 = vst.msk [vmem:[#allocation3 + $0xb0] sm:$0xff] %vm968, %v917
      %992 = vst.msk [vmem:[#allocation3 + $0xb8] sm:$0xff] %vm968, %v919
      %993 = vst.msk [vmem:[#allocation3 + $0xc0] sm:$0xff] %vm968, %v921
      %994 = vst.msk [vmem:[#allocation3 + $0xc8] sm:$0xff] %vm968, %v923
      %995 = vst.msk [vmem:[#allocation3 + $0xd0] sm:$0xff] %vm968, %v925
      %996 = vst.msk [vmem:[#allocation3 + $0xd8] sm:$0xff] %vm968, %v927
      %997 = vst.msk [vmem:[#allocation3 + $0xe0] sm:$0xff] %vm968, %v929
      %998 = vst.msk [vmem:[#allocation3 + $0xe8] sm:$0xff] %vm968, %v931
      %999 = vst.msk [vmem:[#allocation3 + $0xf0] sm:$0xff] %vm968, %v933
      %1000 = vst.msk [vmem:[#allocation3 + $0xf8] sm:$0xff] %vm968, %v935
      %1002 = vrot.lane.b32.xlu0 %v349, 16
      %v1003 = vpop.permute.xlu0 %1002
      %1004 = vrot.lane.b32.xlu0 %v350, 16
      %v1005 = vpop.permute.xlu0 %1004
      %1006 = vrot.lane.b32.xlu0 %v351, 16
      %v1007 = vpop.permute.xlu0 %1006
      %1008 = vrot.lane.b32.xlu0 %v352, 16
      %v1009 = vpop.permute.xlu0 %1008
      %1010 = vrot.lane.b32.xlu0 %v353, 16
      %v1011 = vpop.permute.xlu0 %1010
      %1012 = vrot.lane.b32.xlu0 %v354, 16
      %v1013 = vpop.permute.xlu0 %1012
      %1014 = vrot.lane.b32.xlu0 %v355, 16
      %v1015 = vpop.permute.xlu0 %1014
      %1016 = vrot.lane.b32.xlu0 %v356, 16
      %v1017 = vpop.permute.xlu0 %1016
      %1018 = vrot.lane.b32.xlu0 %v357, 16
      %v1019 = vpop.permute.xlu0 %1018
      %1020 = vrot.lane.b32.xlu0 %v358, 16
      %v1021 = vpop.permute.xlu0 %1020
      %1022 = vrot.lane.b32.xlu0 %v359, 16
      %v1023 = vpop.permute.xlu0 %1022
      %1024 = vrot.lane.b32.xlu0 %v360, 16
      %v1025 = vpop.permute.xlu0 %1024
      %1026 = vrot.lane.b32.xlu0 %v361, 16
      %v1027 = vpop.permute.xlu0 %1026
      %1028 = vrot.lane.b32.xlu0 %v362, 16
      %v1029 = vpop.permute.xlu0 %1028
      %1030 = vrot.lane.b32.xlu0 %v363, 16
      %v1031 = vpop.permute.xlu0 %1030
      %1032 = vrot.lane.b32.xlu0 %v364, 16
      %v1033 = vpop.permute.xlu0 %1032
      %1034 = vrot.lane.b32.xlu0 %v365, 16
      %v1035 = vpop.permute.xlu0 %1034
      %1036 = vrot.lane.b32.xlu0 %v366, 16
      %v1037 = vpop.permute.xlu0 %1036
      %1038 = vrot.lane.b32.xlu0 %v367, 16
      %v1039 = vpop.permute.xlu0 %1038
      %1040 = vrot.lane.b32.xlu0 %v368, 16
      %v1041 = vpop.permute.xlu0 %1040
      %1042 = vrot.lane.b32.xlu0 %v369, 16
      %v1043 = vpop.permute.xlu0 %1042
      %1044 = vrot.lane.b32.xlu0 %v370, 16
      %v1045 = vpop.permute.xlu0 %1044
      %1046 = vrot.lane.b32.xlu0 %v371, 16
      %v1047 = vpop.permute.xlu0 %1046
      %1048 = vrot.lane.b32.xlu0 %v372, 16
      %v1049 = vpop.permute.xlu0 %1048
      %1050 = vrot.lane.b32.xlu0 %v373, 16
      %v1051 = vpop.permute.xlu0 %1050
      %1052 = vrot.lane.b32.xlu0 %v374, 16
      %v1053 = vpop.permute.xlu0 %1052
      %1054 = vrot.lane.b32.xlu0 %v375, 16
      %v1055 = vpop.permute.xlu0 %1054
      %1056 = vrot.lane.b32.xlu0 %v376, 16
      %v1057 = vpop.permute.xlu0 %1056
      %1058 = vrot.lane.b32.xlu0 %v377, 16
      %v1059 = vpop.permute.xlu0 %1058
      %1060 = vrot.lane.b32.xlu0 %v378, 16
      %v1061 = vpop.permute.xlu0 %1060
      %1062 = vrot.lane.b32.xlu0 %v379, 16
      %v1063 = vpop.permute.xlu0 %1062
      %1064 = vrot.lane.b32.xlu0 %v380, 16
      %v1065 = vpop.permute.xlu0 %1064
      %1066 = vrot.lane.b32.xlu0 %v381, 16
      %v1067 = vpop.permute.xlu0 %1066
      %1068 = vrot.lane.b32.xlu0 %v382, 16
      %v1069 = vpop.permute.xlu0 %1068
      %1070 = vrot.lane.b32.xlu0 %v383, 16
      %v1071 = vpop.permute.xlu0 %1070
      %1072 = vrot.lane.b32.xlu0 %v384, 16
      %v1073 = vpop.permute.xlu0 %1072
      %1074 = vrot.lane.b32.xlu0 %v385, 16
      %v1075 = vpop.permute.xlu0 %1074
      %1076 = vrot.lane.b32.xlu0 %v386, 16
      %v1077 = vpop.permute.xlu0 %1076
      %1078 = vrot.lane.b32.xlu0 %v387, 16
      %v1079 = vpop.permute.xlu0 %1078
      %1080 = vrot.lane.b32.xlu0 %v388, 16
      %v1081 = vpop.permute.xlu0 %1080
      %1082 = vrot.lane.b32.xlu0 %v389, 16
      %v1083 = vpop.permute.xlu0 %1082
      %1084 = vrot.lane.b32.xlu0 %v390, 16
      %v1085 = vpop.permute.xlu0 %1084
      %1086 = vrot.lane.b32.xlu0 %v391, 16
      %v1087 = vpop.permute.xlu0 %1086
      %1088 = vrot.lane.b32.xlu0 %v392, 16
      %v1089 = vpop.permute.xlu0 %1088
      %1090 = vrot.lane.b32.xlu0 %v393, 16
      %v1091 = vpop.permute.xlu0 %1090
      %1092 = vrot.lane.b32.xlu0 %v394, 16
      %v1093 = vpop.permute.xlu0 %1092
      %1094 = vrot.lane.b32.xlu0 %v395, 16
      %v1095 = vpop.permute.xlu0 %1094
      %1096 = vrot.lane.b32.xlu0 %v396, 16
      %v1097 = vpop.permute.xlu0 %1096
      %vm1146 = vcmask 162945
      %1147 = vst.msk [vmem:[#allocation3 - $0x1] sm:$0xfe] %vm1146, %v1003
      %vm1148 = vcmask 162944
      %1149 = vst.msk [vmem:[#allocation3 + $0x7] sm:$0xff] %vm1148, %v1005
      %vm1150 = vcmask 155776
      %1151 = vst.msk [vmem:[#allocation3 + $0xf] sm:$0x1] %vm1150, %v1007
      %1152 = vst.msk [vmem:[#allocation3 + $0xf] sm:$0xfe] %vm1146, %v1009
      %1153 = vst.msk [vmem:[#allocation3 + $0x17] sm:$0xff] %vm1148, %v1011
      %1154 = vst.msk [vmem:[#allocation3 + $0x1f] sm:$0x1] %vm1150, %v1013
      %1155 = vst.msk [vmem:[#allocation3 + $0x1f] sm:$0xfe] %vm1146, %v1015
      %1156 = vst.msk [vmem:[#allocation3 + $0x27] sm:$0xff] %vm1148, %v1017
      %1157 = vst.msk [vmem:[#allocation3 + $0x2f] sm:$0x1] %vm1150, %v1019
      %1158 = vst.msk [vmem:[#allocation3 + $0x2f] sm:$0xfe] %vm1146, %v1021
      %1159 = vst.msk [vmem:[#allocation3 + $0x37] sm:$0xff] %vm1148, %v1023
      %1160 = vst.msk [vmem:[#allocation3 + $0x3f] sm:$0x1] %vm1150, %v1025
      %1161 = vst.msk [vmem:[#allocation3 + $0x3f] sm:$0xfe] %vm1146, %v1027
      %1162 = vst.msk [vmem:[#allocation3 + $0x47] sm:$0xff] %vm1148, %v1029
      %1163 = vst.msk [vmem:[#allocation3 + $0x4f] sm:$0x1] %vm1150, %v1031
      %1164 = vst.msk [vmem:[#allocation3 + $0x4f] sm:$0xfe] %vm1146, %v1033
      %1165 = vst.msk [vmem:[#allocation3 + $0x57] sm:$0xff] %vm1148, %v1035
      %1166 = vst.msk [vmem:[#allocation3 + $0x5f] sm:$0x1] %vm1150, %v1037
      %1167 = vst.msk [vmem:[#allocation3 + $0x5f] sm:$0xfe] %vm1146, %v1039
      %1168 = vst.msk [vmem:[#allocation3 + $0x67] sm:$0xff] %vm1148, %v1041
      %1169 = vst.msk [vmem:[#allocation3 + $0x6f] sm:$0x1] %vm1150, %v1043
      %1170 = vst.msk [vmem:[#allocation3 + $0x6f] sm:$0xfe] %vm1146, %v1045
      %1171 = vst.msk [vmem:[#allocation3 + $0x77] sm:$0xff] %vm1148, %v1047
      %1172 = vst.msk [vmem:[#allocation3 + $0x7f] sm:$0x1] %vm1150, %v1049
      %1173 = vst.msk [vmem:[#allocation3 + $0x7f] sm:$0xfe] %vm1146, %v1051
      %1174 = vst.msk [vmem:[#allocation3 + $0x87] sm:$0xff] %vm1148, %v1053
      %1175 = vst.msk [vmem:[#allocation3 + $0x8f] sm:$0x1] %vm1150, %v1055
      %1176 = vst.msk [vmem:[#allocation3 + $0x8f] sm:$0xfe] %vm1146, %v1057
      %1177 = vst.msk [vmem:[#allocation3 + $0x97] sm:$0xff] %vm1148, %v1059
      %1178 = vst.msk [vmem:[#allocation3 + $0x9f] sm:$0x1] %vm1150, %v1061
      %1179 = vst.msk [vmem:[#allocation3 + $0x9f] sm:$0xfe] %vm1146, %v1063
      %1180 = vst.msk [vmem:[#allocation3 + $0xa7] sm:$0xff] %vm1148, %v1065
      %1181 = vst.msk [vmem:[#allocation3 + $0xaf] sm:$0x1] %vm1150, %v1067
      %1182 = vst.msk [vmem:[#allocation3 + $0xaf] sm:$0xfe] %vm1146, %v1069
      %1183 = vst.msk [vmem:[#allocation3 + $0xb7] sm:$0xff] %vm1148, %v1071
      %1184 = vst.msk [vmem:[#allocation3 + $0xbf] sm:$0x1] %vm1150, %v1073
      %1185 = vst.msk [vmem:[#allocation3 + $0xbf] sm:$0xfe] %vm1146, %v1075
      %1186 = vst.msk [vmem:[#allocation3 + $0xc7] sm:$0xff] %vm1148, %v1077
      %1187 = vst.msk [vmem:[#allocation3 + $0xcf] sm:$0x1] %vm1150, %v1079
      %1188 = vst.msk [vmem:[#allocation3 + $0xcf] sm:$0xfe] %vm1146, %v1081
      %1189 = vst.msk [vmem:[#allocation3 + $0xd7] sm:$0xff] %vm1148, %v1083
      %1190 = vst.msk [vmem:[#allocation3 + $0xdf] sm:$0x1] %vm1150, %v1085
      %1191 = vst.msk [vmem:[#allocation3 + $0xdf] sm:$0xfe] %vm1146, %v1087
      %1192 = vst.msk [vmem:[#allocation3 + $0xe7] sm:$0xff] %vm1148, %v1089
      %1193 = vst.msk [vmem:[#allocation3 + $0xef] sm:$0x1] %vm1150, %v1091
      %1194 = vst.msk [vmem:[#allocation3 + $0xef] sm:$0xfe] %vm1146, %v1093
      %1195 = vst.msk [vmem:[#allocation3 + $0xf7] sm:$0xff] %vm1148, %v1095
      %1196 = vst.msk [vmem:[#allocation3 + $0xff] sm:$0x1] %vm1150, %v1097
      %1197 = vrot.lane.b32.xlu0 %v349, 20
      %v1198 = vpop.permute.xlu0 %1197
      %1199 = vrot.lane.b32.xlu0 %v350, 20
      %v1200 = vpop.permute.xlu0 %1199
      %1201 = vrot.lane.b32.xlu0 %v351, 20
      %v1202 = vpop.permute.xlu0 %1201
      %1203 = vrot.lane.b32.xlu0 %v352, 20
      %v1204 = vpop.permute.xlu0 %1203
      %1205 = vrot.lane.b32.xlu0 %v353, 20
      %v1206 = vpop.permute.xlu0 %1205
      %1207 = vrot.lane.b32.xlu0 %v354, 20
      %v1208 = vpop.permute.xlu0 %1207
      %1209 = vrot.lane.b32.xlu0 %v355, 20
      %v1210 = vpop.permute.xlu0 %1209
      %1211 = vrot.lane.b32.xlu0 %v356, 20
      %v1212 = vpop.permute.xlu0 %1211
      %1213 = vrot.lane.b32.xlu0 %v357, 20
      %v1214 = vpop.permute.xlu0 %1213
      %1215 = vrot.lane.b32.xlu0 %v358, 20
      %v1216 = vpop.permute.xlu0 %1215
      %1217 = vrot.lane.b32.xlu0 %v359, 20
      %v1218 = vpop.permute.xlu0 %1217
      %1219 = vrot.lane.b32.xlu0 %v360, 20
      %v1220 = vpop.permute.xlu0 %1219
      %1221 = vrot.lane.b32.xlu0 %v361, 20
      %v1222 = vpop.permute.xlu0 %1221
      %1223 = vrot.lane.b32.xlu0 %v362, 20
      %v1224 = vpop.permute.xlu0 %1223
      %1225 = vrot.lane.b32.xlu0 %v363, 20
      %v1226 = vpop.permute.xlu0 %1225
      %1227 = vrot.lane.b32.xlu0 %v364, 20
      %v1228 = vpop.permute.xlu0 %1227
      %1229 = vrot.lane.b32.xlu0 %v365, 20
      %v1230 = vpop.permute.xlu0 %1229
      %1231 = vrot.lane.b32.xlu0 %v366, 20
      %v1232 = vpop.permute.xlu0 %1231
      %1233 = vrot.lane.b32.xlu0 %v367, 20
      %v1234 = vpop.permute.xlu0 %1233
      %1235 = vrot.lane.b32.xlu0 %v368, 20
      %v1236 = vpop.permute.xlu0 %1235
      %1237 = vrot.lane.b32.xlu0 %v369, 20
      %v1238 = vpop.permute.xlu0 %1237
      %1239 = vrot.lane.b32.xlu0 %v370, 20
      %v1240 = vpop.permute.xlu0 %1239
      %1241 = vrot.lane.b32.xlu0 %v371, 20
      %v1242 = vpop.permute.xlu0 %1241
      %1243 = vrot.lane.b32.xlu0 %v372, 20
      %v1244 = vpop.permute.xlu0 %1243
      %1245 = vrot.lane.b32.xlu0 %v373, 20
      %v1246 = vpop.permute.xlu0 %1245
      %1247 = vrot.lane.b32.xlu0 %v374, 20
      %v1248 = vpop.permute.xlu0 %1247
      %1249 = vrot.lane.b32.xlu0 %v375, 20
      %v1250 = vpop.permute.xlu0 %1249
      %1251 = vrot.lane.b32.xlu0 %v376, 20
      %v1252 = vpop.permute.xlu0 %1251
      %1253 = vrot.lane.b32.xlu0 %v377, 20
      %v1254 = vpop.permute.xlu0 %1253
      %1255 = vrot.lane.b32.xlu0 %v378, 20
      %v1256 = vpop.permute.xlu0 %1255
      %1257 = vrot.lane.b32.xlu0 %v379, 20
      %v1258 = vpop.permute.xlu0 %1257
      %1259 = vrot.lane.b32.xlu0 %v380, 20
      %v1260 = vpop.permute.xlu0 %1259
      %1261 = vrot.lane.b32.xlu0 %v381, 20
      %v1262 = vpop.permute.xlu0 %1261
      %1263 = vrot.lane.b32.xlu0 %v382, 20
      %v1264 = vpop.permute.xlu0 %1263
      %1265 = vrot.lane.b32.xlu0 %v383, 20
      %v1266 = vpop.permute.xlu0 %1265
      %1267 = vrot.lane.b32.xlu0 %v384, 20
      %v1268 = vpop.permute.xlu0 %1267
      %1269 = vrot.lane.b32.xlu0 %v385, 20
      %v1270 = vpop.permute.xlu0 %1269
      %1271 = vrot.lane.b32.xlu0 %v386, 20
      %v1272 = vpop.permute.xlu0 %1271
      %1273 = vrot.lane.b32.xlu0 %v387, 20
      %v1274 = vpop.permute.xlu0 %1273
      %1275 = vrot.lane.b32.xlu0 %v388, 20
      %v1276 = vpop.permute.xlu0 %1275
      %1277 = vrot.lane.b32.xlu0 %v389, 20
      %v1278 = vpop.permute.xlu0 %1277
      %1279 = vrot.lane.b32.xlu0 %v390, 20
      %v1280 = vpop.permute.xlu0 %1279
      %1281 = vrot.lane.b32.xlu0 %v391, 20
      %v1282 = vpop.permute.xlu0 %1281
      %1283 = vrot.lane.b32.xlu0 %v392, 20
      %v1284 = vpop.permute.xlu0 %1283
      %1285 = vrot.lane.b32.xlu0 %v393, 20
      %v1286 = vpop.permute.xlu0 %1285
      %1287 = vrot.lane.b32.xlu0 %v394, 20
      %v1288 = vpop.permute.xlu0 %1287
      %1289 = vrot.lane.b32.xlu0 %v395, 20
      %v1290 = vpop.permute.xlu0 %1289
      %1291 = vrot.lane.b32.xlu0 %v396, 20
      %v1292 = vpop.permute.xlu0 %1291
      %vm1341 = vcmask 195746
      %1342 = vst.msk [vmem:[#allocation3 - $0x2] sm:$0xfc] %vm1341, %v1198
      %vm1343 = vcmask 195744
      %1344 = vst.msk [vmem:[#allocation3 + $0x6] sm:$0xff] %vm1343, %v1200
      %vm1345 = vcmask 189600
      %1346 = vst.msk [vmem:[#allocation3 + $0xe] sm:$0x3] %vm1345, %v1202
      %1347 = vst.msk [vmem:[#allocation3 + $0xe] sm:$0xfc] %vm1341, %v1204
      %1348 = vst.msk [vmem:[#allocation3 + $0x16] sm:$0xff] %vm1343, %v1206
      %1349 = vst.msk [vmem:[#allocation3 + $0x1e] sm:$0x3] %vm1345, %v1208
      %1350 = vst.msk [vmem:[#allocation3 + $0x1e] sm:$0xfc] %vm1341, %v1210
      %1351 = vst.msk [vmem:[#allocation3 + $0x26] sm:$0xff] %vm1343, %v1212
      %1352 = vst.msk [vmem:[#allocation3 + $0x2e] sm:$0x3] %vm1345, %v1214
      %1353 = vst.msk [vmem:[#allocation3 + $0x2e] sm:$0xfc] %vm1341, %v1216
      %1354 = vst.msk [vmem:[#allocation3 + $0x36] sm:$0xff] %vm1343, %v1218
      %1355 = vst.msk [vmem:[#allocation3 + $0x3e] sm:$0x3] %vm1345, %v1220
      %1356 = vst.msk [vmem:[#allocation3 + $0x3e] sm:$0xfc] %vm1341, %v1222
      %1357 = vst.msk [vmem:[#allocation3 + $0x46] sm:$0xff] %vm1343, %v1224
      %1358 = vst.msk [vmem:[#allocation3 + $0x4e] sm:$0x3] %vm1345, %v1226
      %1359 = vst.msk [vmem:[#allocation3 + $0x4e] sm:$0xfc] %vm1341, %v1228
      %1360 = vst.msk [vmem:[#allocation3 + $0x56] sm:$0xff] %vm1343, %v1230
      %1361 = vst.msk [vmem:[#allocation3 + $0x5e] sm:$0x3] %vm1345, %v1232
      %1362 = vst.msk [vmem:[#allocation3 + $0x5e] sm:$0xfc] %vm1341, %v1234
      %1363 = vst.msk [vmem:[#allocation3 + $0x66] sm:$0xff] %vm1343, %v1236
      %1364 = vst.msk [vmem:[#allocation3 + $0x6e] sm:$0x3] %vm1345, %v1238
      %1365 = vst.msk [vmem:[#allocation3 + $0x6e] sm:$0xfc] %vm1341, %v1240
      %1366 = vst.msk [vmem:[#allocation3 + $0x76] sm:$0xff] %vm1343, %v1242
      %1367 = vst.msk [vmem:[#allocation3 + $0x7e] sm:$0x3] %vm1345, %v1244
      %1368 = vst.msk [vmem:[#allocation3 + $0x7e] sm:$0xfc] %vm1341, %v1246
      %1369 = vst.msk [vmem:[#allocation3 + $0x86] sm:$0xff] %vm1343, %v1248
      %1370 = vst.msk [vmem:[#allocation3 + $0x8e] sm:$0x3] %vm1345, %v1250
      %1371 = vst.msk [vmem:[#allocation3 + $0x8e] sm:$0xfc] %vm1341, %v1252
      %1372 = vst.msk [vmem:[#allocation3 + $0x96] sm:$0xff] %vm1343, %v1254
      %1373 = vst.msk [vmem:[#allocation3 + $0x9e] sm:$0x3] %vm1345, %v1256
      %1374 = vst.msk [vmem:[#allocation3 + $0x9e] sm:$0xfc] %vm1341, %v1258
      %1375 = vst.msk [vmem:[#allocation3 + $0xa6] sm:$0xff] %vm1343, %v1260
      %1376 = vst.msk [vmem:[#allocation3 + $0xae] sm:$0x3] %vm1345, %v1262
      %1377 = vst.msk [vmem:[#allocation3 + $0xae] sm:$0xfc] %vm1341, %v1264
      %1378 = vst.msk [vmem:[#allocation3 + $0xb6] sm:$0xff] %vm1343, %v1266
      %1379 = vst.msk [vmem:[#allocation3 + $0xbe] sm:$0x3] %vm1345, %v1268
      %1380 = vst.msk [vmem:[#allocation3 + $0xbe] sm:$0xfc] %vm1341, %v1270
      %1381 = vst.msk [vmem:[#allocation3 + $0xc6] sm:$0xff] %vm1343, %v1272
      %1382 = vst.msk [vmem:[#allocation3 + $0xce] sm:$0x3] %vm1345, %v1274
      %1383 = vst.msk [vmem:[#allocation3 + $0xce] sm:$0xfc] %vm1341, %v1276
      %1384 = vst.msk [vmem:[#allocation3 + $0xd6] sm:$0xff] %vm1343, %v1278
      %1385 = vst.msk [vmem:[#allocation3 + $0xde] sm:$0x3] %vm1345, %v1280
      %1386 = vst.msk [vmem:[#allocation3 + $0xde] sm:$0xfc] %vm1341, %v1282
      %1387 = vst.msk [vmem:[#allocation3 + $0xe6] sm:$0xff] %vm1343, %v1284
      %1388 = vst.msk [vmem:[#allocation3 + $0xee] sm:$0x3] %vm1345, %v1286
      %1389 = vst.msk [vmem:[#allocation3 + $0xee] sm:$0xfc] %vm1341, %v1288
      %1390 = vst.msk [vmem:[#allocation3 + $0xf6] sm:$0xff] %vm1343, %v1290
      %1391 = vst.msk [vmem:[#allocation3 + $0xfe] sm:$0x3] %vm1345, %v1292
      %1394 = vrot.lane.b32.xlu0 %v352, 24
      %v1395 = vpop.permute.xlu0 %1394
      %1396 = vrot.lane.b32.xlu0 %v353, 24
      %v1397 = vpop.permute.xlu0 %1396
      %1398 = vrot.lane.b32.xlu0 %v355, 24
      %v1399 = vpop.permute.xlu0 %1398
      %1400 = vrot.lane.b32.xlu0 %v356, 24
      %v1401 = vpop.permute.xlu0 %1400
      %1402 = vrot.lane.b32.xlu0 %v358, 24
      %v1403 = vpop.permute.xlu0 %1402
      %1404 = vrot.lane.b32.xlu0 %v359, 24
      %v1405 = vpop.permute.xlu0 %1404
      %1406 = vrot.lane.b32.xlu0 %v361, 24
      %v1407 = vpop.permute.xlu0 %1406
      %1408 = vrot.lane.b32.xlu0 %v362, 24
      %v1409 = vpop.permute.xlu0 %1408
      %1410 = vrot.lane.b32.xlu0 %v364, 24
      %v1411 = vpop.permute.xlu0 %1410
      %1412 = vrot.lane.b32.xlu0 %v365, 24
      %v1413 = vpop.permute.xlu0 %1412
      %1414 = vrot.lane.b32.xlu0 %v367, 24
      %v1415 = vpop.permute.xlu0 %1414
      %1416 = vrot.lane.b32.xlu0 %v368, 24
      %v1417 = vpop.permute.xlu0 %1416
      %1418 = vrot.lane.b32.xlu0 %v370, 24
      %v1419 = vpop.permute.xlu0 %1418
      %1420 = vrot.lane.b32.xlu0 %v371, 24
      %v1421 = vpop.permute.xlu0 %1420
      %1422 = vrot.lane.b32.xlu0 %v373, 24
      %v1423 = vpop.permute.xlu0 %1422
      %1424 = vrot.lane.b32.xlu0 %v374, 24
      %v1425 = vpop.permute.xlu0 %1424
      %1426 = vrot.lane.b32.xlu0 %v376, 24
      %v1427 = vpop.permute.xlu0 %1426
      %1428 = vrot.lane.b32.xlu0 %v377, 24
      %v1429 = vpop.permute.xlu0 %1428
      %1430 = vrot.lane.b32.xlu0 %v379, 24
      %v1431 = vpop.permute.xlu0 %1430
      %1432 = vrot.lane.b32.xlu0 %v380, 24
      %v1433 = vpop.permute.xlu0 %1432
      %1434 = vrot.lane.b32.xlu0 %v382, 24
      %v1435 = vpop.permute.xlu0 %1434
      %1436 = vrot.lane.b32.xlu0 %v383, 24
      %v1437 = vpop.permute.xlu0 %1436
      %1438 = vrot.lane.b32.xlu0 %v385, 24
      %v1439 = vpop.permute.xlu0 %1438
      %1440 = vrot.lane.b32.xlu0 %v386, 24
      %v1441 = vpop.permute.xlu0 %1440
      %1442 = vrot.lane.b32.xlu0 %v388, 24
      %v1443 = vpop.permute.xlu0 %1442
      %1444 = vrot.lane.b32.xlu0 %v389, 24
      %v1445 = vpop.permute.xlu0 %1444
      %1446 = vrot.lane.b32.xlu0 %v391, 24
      %v1447 = vpop.permute.xlu0 %1446
      %1448 = vrot.lane.b32.xlu0 %v392, 24
      %v1449 = vpop.permute.xlu0 %1448
      %1450 = vrot.lane.b32.xlu0 %v394, 24
      %v1451 = vpop.permute.xlu0 %1450
      %1452 = vrot.lane.b32.xlu0 %v395, 24
      %v1453 = vpop.permute.xlu0 %1452
      %1454 = vrot.lane.b32.xlu0 %v397, 24
      %v1455 = vpop.permute.xlu0 %1454
      %1456 = vrot.lane.b32.xlu0 %v398, 24
      %v1457 = vpop.permute.xlu0 %1456
      %vm1490 = vcmask 228544
      %1491 = vst.msk [vmem:[#allocation3] sm:$0xff] %vm1490, %v1395
      %1492 = vst.msk [vmem:[#allocation3 + $0x8] sm:$0xff] %vm1490, %v1397
      %1493 = vst.msk [vmem:[#allocation3 + $0x10] sm:$0xff] %vm1490, %v1399
      %1494 = vst.msk [vmem:[#allocation3 + $0x18] sm:$0xff] %vm1490, %v1401
      %1495 = vst.msk [vmem:[#allocation3 + $0x20] sm:$0xff] %vm1490, %v1403
      %1496 = vst.msk [vmem:[#allocation3 + $0x28] sm:$0xff] %vm1490, %v1405
      %1497 = vst.msk [vmem:[#allocation3 + $0x30] sm:$0xff] %vm1490, %v1407
      %1498 = vst.msk [vmem:[#allocation3 + $0x38] sm:$0xff] %vm1490, %v1409
      %1499 = vst.msk [vmem:[#allocation3 + $0x40] sm:$0xff] %vm1490, %v1411
      %1500 = vst.msk [vmem:[#allocation3 + $0x48] sm:$0xff] %vm1490, %v1413
      %1501 = vst.msk [vmem:[#allocation3 + $0x50] sm:$0xff] %vm1490, %v1415
      %1502 = vst.msk [vmem:[#allocation3 + $0x58] sm:$0xff] %vm1490, %v1417
      %1503 = vst.msk [vmem:[#allocation3 + $0x60] sm:$0xff] %vm1490, %v1419
      %1504 = vst.msk [vmem:[#allocation3 + $0x68] sm:$0xff] %vm1490, %v1421
      %1505 = vst.msk [vmem:[#allocation3 + $0x70] sm:$0xff] %vm1490, %v1423
      %1506 = vst.msk [vmem:[#allocation3 + $0x78] sm:$0xff] %vm1490, %v1425
      %1507 = vst.msk [vmem:[#allocation3 + $0x80] sm:$0xff] %vm1490, %v1427
      %1508 = vst.msk [vmem:[#allocation3 + $0x88] sm:$0xff] %vm1490, %v1429
      %1509 = vst.msk [vmem:[#allocation3 + $0x90] sm:$0xff] %vm1490, %v1431
      %1510 = vst.msk [vmem:[#allocation3 + $0x98] sm:$0xff] %vm1490, %v1433
      %1511 = vst.msk [vmem:[#allocation3 + $0xa0] sm:$0xff] %vm1490, %v1435
      %1512 = vst.msk [vmem:[#allocation3 + $0xa8] sm:$0xff] %vm1490, %v1437
      %1513 = vst.msk [vmem:[#allocation3 + $0xb0] sm:$0xff] %vm1490, %v1439
      %1514 = vst.msk [vmem:[#allocation3 + $0xb8] sm:$0xff] %vm1490, %v1441
      %1515 = vst.msk [vmem:[#allocation3 + $0xc0] sm:$0xff] %vm1490, %v1443
      %1516 = vst.msk [vmem:[#allocation3 + $0xc8] sm:$0xff] %vm1490, %v1445
      %1517 = vst.msk [vmem:[#allocation3 + $0xd0] sm:$0xff] %vm1490, %v1447
      %1518 = vst.msk [vmem:[#allocation3 + $0xd8] sm:$0xff] %vm1490, %v1449
      %1519 = vst.msk [vmem:[#allocation3 + $0xe0] sm:$0xff] %vm1490, %v1451
      %1520 = vst.msk [vmem:[#allocation3 + $0xe8] sm:$0xff] %vm1490, %v1453
      %1521 = vst.msk [vmem:[#allocation3 + $0xf0] sm:$0xff] %vm1490, %v1455
      %1522 = vst.msk [vmem:[#allocation3 + $0xf8] sm:$0xff] %vm1490, %v1457
      %1524 = vrot.lane.b32.xlu0 %v352, 28
      %v1525 = vpop.permute.xlu0 %1524
      %1526 = vrot.lane.b32.xlu0 %v353, 28
      %v1527 = vpop.permute.xlu0 %1526
      %1528 = vrot.lane.b32.xlu0 %v354, 28
      %v1529 = vpop.permute.xlu0 %1528
      %1530 = vrot.lane.b32.xlu0 %v355, 28
      %v1531 = vpop.permute.xlu0 %1530
      %1532 = vrot.lane.b32.xlu0 %v356, 28
      %v1533 = vpop.permute.xlu0 %1532
      %1534 = vrot.lane.b32.xlu0 %v357, 28
      %v1535 = vpop.permute.xlu0 %1534
      %1536 = vrot.lane.b32.xlu0 %v358, 28
      %v1537 = vpop.permute.xlu0 %1536
      %1538 = vrot.lane.b32.xlu0 %v359, 28
      %v1539 = vpop.permute.xlu0 %1538
      %1540 = vrot.lane.b32.xlu0 %v360, 28
      %v1541 = vpop.permute.xlu0 %1540
      %1542 = vrot.lane.b32.xlu0 %v361, 28
      %v1543 = vpop.permute.xlu0 %1542
      %1544 = vrot.lane.b32.xlu0 %v362, 28
      %v1545 = vpop.permute.xlu0 %1544
      %1546 = vrot.lane.b32.xlu0 %v363, 28
      %v1547 = vpop.permute.xlu0 %1546
      %1548 = vrot.lane.b32.xlu0 %v364, 28
      %v1549 = vpop.permute.xlu0 %1548
      %1550 = vrot.lane.b32.xlu0 %v365, 28
      %v1551 = vpop.permute.xlu0 %1550
      %1552 = vrot.lane.b32.xlu0 %v366, 28
      %v1553 = vpop.permute.xlu0 %1552
      %1554 = vrot.lane.b32.xlu0 %v367, 28
      %v1555 = vpop.permute.xlu0 %1554
      %1556 = vrot.lane.b32.xlu0 %v368, 28
      %v1557 = vpop.permute.xlu0 %1556
      %1558 = vrot.lane.b32.xlu0 %v369, 28
      %v1559 = vpop.permute.xlu0 %1558
      %1560 = vrot.lane.b32.xlu0 %v370, 28
      %v1561 = vpop.permute.xlu0 %1560
      %1562 = vrot.lane.b32.xlu0 %v371, 28
      %v1563 = vpop.permute.xlu0 %1562
      %1564 = vrot.lane.b32.xlu0 %v372, 28
      %v1565 = vpop.permute.xlu0 %1564
      %1566 = vrot.lane.b32.xlu0 %v373, 28
      %v1567 = vpop.permute.xlu0 %1566
      %1568 = vrot.lane.b32.xlu0 %v374, 28
      %v1569 = vpop.permute.xlu0 %1568
      %1570 = vrot.lane.b32.xlu0 %v375, 28
      %v1571 = vpop.permute.xlu0 %1570
      %1572 = vrot.lane.b32.xlu0 %v376, 28
      %v1573 = vpop.permute.xlu0 %1572
      %1574 = vrot.lane.b32.xlu0 %v377, 28
      %v1575 = vpop.permute.xlu0 %1574
      %1576 = vrot.lane.b32.xlu0 %v378, 28
      %v1577 = vpop.permute.xlu0 %1576
      %1578 = vrot.lane.b32.xlu0 %v379, 28
      %v1579 = vpop.permute.xlu0 %1578
      %1580 = vrot.lane.b32.xlu0 %v380, 28
      %v1581 = vpop.permute.xlu0 %1580
      %1582 = vrot.lane.b32.xlu0 %v381, 28
      %v1583 = vpop.permute.xlu0 %1582
      %1584 = vrot.lane.b32.xlu0 %v382, 28
      %v1585 = vpop.permute.xlu0 %1584
      %1586 = vrot.lane.b32.xlu0 %v383, 28
      %v1587 = vpop.permute.xlu0 %1586
      %1588 = vrot.lane.b32.xlu0 %v384, 28
      %v1589 = vpop.permute.xlu0 %1588
      %1590 = vrot.lane.b32.xlu0 %v385, 28
      %v1591 = vpop.permute.xlu0 %1590
      %1592 = vrot.lane.b32.xlu0 %v386, 28
      %v1593 = vpop.permute.xlu0 %1592
      %1594 = vrot.lane.b32.xlu0 %v387, 28
      %v1595 = vpop.permute.xlu0 %1594
      %1596 = vrot.lane.b32.xlu0 %v388, 28
      %v1597 = vpop.permute.xlu0 %1596
      %1598 = vrot.lane.b32.xlu0 %v389, 28
      %v1599 = vpop.permute.xlu0 %1598
      %1600 = vrot.lane.b32.xlu0 %v390, 28
      %v1601 = vpop.permute.xlu0 %1600
      %1602 = vrot.lane.b32.xlu0 %v391, 28
      %v1603 = vpop.permute.xlu0 %1602
      %1604 = vrot.lane.b32.xlu0 %v392, 28
      %v1605 = vpop.permute.xlu0 %1604
      %1606 = vrot.lane.b32.xlu0 %v393, 28
      %v1607 = vpop.permute.xlu0 %1606
      %1608 = vrot.lane.b32.xlu0 %v394, 28
      %v1609 = vpop.permute.xlu0 %1608
      %1610 = vrot.lane.b32.xlu0 %v395, 28
      %v1611 = vpop.permute.xlu0 %1610
      %1612 = vrot.lane.b32.xlu0 %v396, 28
      %v1613 = vpop.permute.xlu0 %1612
      %1614 = vrot.lane.b32.xlu0 %v397, 28
      %v1615 = vpop.permute.xlu0 %1614
      %1616 = vrot.lane.b32.xlu0 %v398, 28
      %v1617 = vpop.permute.xlu0 %1616
      %1618 = vrot.lane.b32.xlu0 %v399, 28
      %v1619 = vpop.permute.xlu0 %1618
      %vm1668 = vcmask 261345
      %1669 = vst.msk [vmem:[#allocation3 - $0x1] sm:$0xfe] %vm1668, %v1525
      %vm1670 = vcmask 261344
      %1671 = vst.msk [vmem:[#allocation3 + $0x7] sm:$0xff] %vm1670, %v1527
      %vm1672 = vcmask 254176
      %1673 = vst.msk [vmem:[#allocation3 + $0xf] sm:$0x1] %vm1672, %v1529
      %1674 = vst.msk [vmem:[#allocation3 + $0xf] sm:$0xfe] %vm1668, %v1531
      %1675 = vst.msk [vmem:[#allocation3 + $0x17] sm:$0xff] %vm1670, %v1533
      %1676 = vst.msk [vmem:[#allocation3 + $0x1f] sm:$0x1] %vm1672, %v1535
      %1677 = vst.msk [vmem:[#allocation3 + $0x1f] sm:$0xfe] %vm1668, %v1537
      %1678 = vst.msk [vmem:[#allocation3 + $0x27] sm:$0xff] %vm1670, %v1539
      %1679 = vst.msk [vmem:[#allocation3 + $0x2f] sm:$0x1] %vm1672, %v1541
      %1680 = vst.msk [vmem:[#allocation3 + $0x2f] sm:$0xfe] %vm1668, %v1543
      %1681 = vst.msk [vmem:[#allocation3 + $0x37] sm:$0xff] %vm1670, %v1545
      %1682 = vst.msk [vmem:[#allocation3 + $0x3f] sm:$0x1] %vm1672, %v1547
      %1683 = vst.msk [vmem:[#allocation3 + $0x3f] sm:$0xfe] %vm1668, %v1549
      %1684 = vst.msk [vmem:[#allocation3 + $0x47] sm:$0xff] %vm1670, %v1551
      %1685 = vst.msk [vmem:[#allocation3 + $0x4f] sm:$0x1] %vm1672, %v1553
      %1686 = vst.msk [vmem:[#allocation3 + $0x4f] sm:$0xfe] %vm1668, %v1555
      %1687 = vst.msk [vmem:[#allocation3 + $0x57] sm:$0xff] %vm1670, %v1557
      %1688 = vst.msk [vmem:[#allocation3 + $0x5f] sm:$0x1] %vm1672, %v1559
      %1689 = vst.msk [vmem:[#allocation3 + $0x5f] sm:$0xfe] %vm1668, %v1561
      %1690 = vst.msk [vmem:[#allocation3 + $0x67] sm:$0xff] %vm1670, %v1563
      %1691 = vst.msk [vmem:[#allocation3 + $0x6f] sm:$0x1] %vm1672, %v1565
      %1692 = vst.msk [vmem:[#allocation3 + $0x6f] sm:$0xfe] %vm1668, %v1567
      %1693 = vst.msk [vmem:[#allocation3 + $0x77] sm:$0xff] %vm1670, %v1569
      %1694 = vst.msk [vmem:[#allocation3 + $0x7f] sm:$0x1] %vm1672, %v1571
      %1695 = vst.msk [vmem:[#allocation3 + $0x7f] sm:$0xfe] %vm1668, %v1573
      %1696 = vst.msk [vmem:[#allocation3 + $0x87] sm:$0xff] %vm1670, %v1575
      %1697 = vst.msk [vmem:[#allocation3 + $0x8f] sm:$0x1] %vm1672, %v1577
      %1698 = vst.msk [vmem:[#allocation3 + $0x8f] sm:$0xfe] %vm1668, %v1579
      %1699 = vst.msk [vmem:[#allocation3 + $0x97] sm:$0xff] %vm1670, %v1581
      %1700 = vst.msk [vmem:[#allocation3 + $0x9f] sm:$0x1] %vm1672, %v1583
      %1701 = vst.msk [vmem:[#allocation3 + $0x9f] sm:$0xfe] %vm1668, %v1585
      %1702 = vst.msk [vmem:[#allocation3 + $0xa7] sm:$0xff] %vm1670, %v1587
      %1703 = vst.msk [vmem:[#allocation3 + $0xaf] sm:$0x1] %vm1672, %v1589
      %1704 = vst.msk [vmem:[#allocation3 + $0xaf] sm:$0xfe] %vm1668, %v1591
      %1705 = vst.msk [vmem:[#allocation3 + $0xb7] sm:$0xff] %vm1670, %v1593
      %1706 = vst.msk [vmem:[#allocation3 + $0xbf] sm:$0x1] %vm1672, %v1595
      %1707 = vst.msk [vmem:[#allocation3 + $0xbf] sm:$0xfe] %vm1668, %v1597
      %1708 = vst.msk [vmem:[#allocation3 + $0xc7] sm:$0xff] %vm1670, %v1599
      %1709 = vst.msk [vmem:[#allocation3 + $0xcf] sm:$0x1] %vm1672, %v1601
      %1710 = vst.msk [vmem:[#allocation3 + $0xcf] sm:$0xfe] %vm1668, %v1603
      %1711 = vst.msk [vmem:[#allocation3 + $0xd7] sm:$0xff] %vm1670, %v1605
      %1712 = vst.msk [vmem:[#allocation3 + $0xdf] sm:$0x1] %vm1672, %v1607
      %1713 = vst.msk [vmem:[#allocation3 + $0xdf] sm:$0xfe] %vm1668, %v1609
      %1714 = vst.msk [vmem:[#allocation3 + $0xe7] sm:$0xff] %vm1670, %v1611
      %1715 = vst.msk [vmem:[#allocation3 + $0xef] sm:$0x1] %vm1672, %v1613
      %1716 = vst.msk [vmem:[#allocation3 + $0xef] sm:$0xfe] %vm1668, %v1615
      %1717 = vst.msk [vmem:[#allocation3 + $0xf7] sm:$0xff] %vm1670, %v1617
      %1718 = vst.msk [vmem:[#allocation3 + $0xff] sm:$0x1] %vm1672, %v1619
      %1719 = vrot.lane.b32.xlu0 %v352, 32
      %v1720 = vpop.permute.xlu0 %1719
      %1721 = vrot.lane.b32.xlu0 %v353, 32
      %v1722 = vpop.permute.xlu0 %1721
      %1723 = vrot.lane.b32.xlu0 %v354, 32
      %v1724 = vpop.permute.xlu0 %1723
      %1725 = vrot.lane.b32.xlu0 %v355, 32
      %v1726 = vpop.permute.xlu0 %1725
      %1727 = vrot.lane.b32.xlu0 %v356, 32
      %v1728 = vpop.permute.xlu0 %1727
      %1729 = vrot.lane.b32.xlu0 %v357, 32
      %v1730 = vpop.permute.xlu0 %1729
      %1731 = vrot.lane.b32.xlu0 %v358, 32
      %v1732 = vpop.permute.xlu0 %1731
      %1733 = vrot.lane.b32.xlu0 %v359, 32
      %v1734 = vpop.permute.xlu0 %1733
      %1735 = vrot.lane.b32.xlu0 %v360, 32
      %v1736 = vpop.permute.xlu0 %1735
      %1737 = vrot.lane.b32.xlu0 %v361, 32
      %v1738 = vpop.permute.xlu0 %1737
      %1739 = vrot.lane.b32.xlu0 %v362, 32
      %v1740 = vpop.permute.xlu0 %1739
      %1741 = vrot.lane.b32.xlu0 %v363, 32
      %v1742 = vpop.permute.xlu0 %1741
      %1743 = vrot.lane.b32.xlu0 %v364, 32
      %v1744 = vpop.permute.xlu0 %1743
      %1745 = vrot.lane.b32.xlu0 %v365, 32
      %v1746 = vpop.permute.xlu0 %1745
      %1747 = vrot.lane.b32.xlu0 %v366, 32
      %v1748 = vpop.permute.xlu0 %1747
      %1749 = vrot.lane.b32.xlu0 %v367, 32
      %v1750 = vpop.permute.xlu0 %1749
      %1751 = vrot.lane.b32.xlu0 %v368, 32
      %v1752 = vpop.permute.xlu0 %1751
      %1753 = vrot.lane.b32.xlu0 %v369, 32
      %v1754 = vpop.permute.xlu0 %1753
      %1755 = vrot.lane.b32.xlu0 %v370, 32
      %v1756 = vpop.permute.xlu0 %1755
      %1757 = vrot.lane.b32.xlu0 %v371, 32
      %v1758 = vpop.permute.xlu0 %1757
      %1759 = vrot.lane.b32.xlu0 %v372, 32
      %v1760 = vpop.permute.xlu0 %1759
      %1761 = vrot.lane.b32.xlu0 %v373, 32
      %v1762 = vpop.permute.xlu0 %1761
      %1763 = vrot.lane.b32.xlu0 %v374, 32
      %v1764 = vpop.permute.xlu0 %1763
      %1765 = vrot.lane.b32.xlu0 %v375, 32
      %v1766 = vpop.permute.xlu0 %1765
      %1767 = vrot.lane.b32.xlu0 %v376, 32
      %v1768 = vpop.permute.xlu0 %1767
      %1769 = vrot.lane.b32.xlu0 %v377, 32
      %v1770 = vpop.permute.xlu0 %1769
      %1771 = vrot.lane.b32.xlu0 %v378, 32
      %v1772 = vpop.permute.xlu0 %1771
      %1773 = vrot.lane.b32.xlu0 %v379, 32
      %v1774 = vpop.permute.xlu0 %1773
      %1775 = vrot.lane.b32.xlu0 %v380, 32
      %v1776 = vpop.permute.xlu0 %1775
      %1777 = vrot.lane.b32.xlu0 %v381, 32
      %v1778 = vpop.permute.xlu0 %1777
      %1779 = vrot.lane.b32.xlu0 %v382, 32
      %v1780 = vpop.permute.xlu0 %1779
      %1781 = vrot.lane.b32.xlu0 %v383, 32
      %v1782 = vpop.permute.xlu0 %1781
      %1783 = vrot.lane.b32.xlu0 %v384, 32
      %v1784 = vpop.permute.xlu0 %1783
      %1785 = vrot.lane.b32.xlu0 %v385, 32
      %v1786 = vpop.permute.xlu0 %1785
      %1787 = vrot.lane.b32.xlu0 %v386, 32
      %v1788 = vpop.permute.xlu0 %1787
      %1789 = vrot.lane.b32.xlu0 %v387, 32
      %v1790 = vpop.permute.xlu0 %1789
      %1791 = vrot.lane.b32.xlu0 %v388, 32
      %v1792 = vpop.permute.xlu0 %1791
      %1793 = vrot.lane.b32.xlu0 %v389, 32
      %v1794 = vpop.permute.xlu0 %1793
      %1795 = vrot.lane.b32.xlu0 %v390, 32
      %v1796 = vpop.permute.xlu0 %1795
      %1797 = vrot.lane.b32.xlu0 %v391, 32
      %v1798 = vpop.permute.xlu0 %1797
      %1799 = vrot.lane.b32.xlu0 %v392, 32
      %v1800 = vpop.permute.xlu0 %1799
      %1801 = vrot.lane.b32.xlu0 %v393, 32
      %v1802 = vpop.permute.xlu0 %1801
      %1803 = vrot.lane.b32.xlu0 %v394, 32
      %v1804 = vpop.permute.xlu0 %1803
      %1805 = vrot.lane.b32.xlu0 %v395, 32
      %v1806 = vpop.permute.xlu0 %1805
      %1807 = vrot.lane.b32.xlu0 %v396, 32
      %v1808 = vpop.permute.xlu0 %1807
      %1809 = vrot.lane.b32.xlu0 %v397, 32
      %v1810 = vpop.permute.xlu0 %1809
      %1811 = vrot.lane.b32.xlu0 %v398, 32
      %v1812 = vpop.permute.xlu0 %1811
      %1813 = vrot.lane.b32.xlu0 %v399, 32
      %v1814 = vpop.permute.xlu0 %1813
      %vm1863 = vcmask 294146
      %1864 = vst.msk [vmem:[#allocation3 - $0x2] sm:$0xfc] %vm1863, %v1720
      %vm1865 = vcmask 294144
      %1866 = vst.msk [vmem:[#allocation3 + $0x6] sm:$0xff] %vm1865, %v1722
      %vm1867 = vcmask 288000
      %1868 = vst.msk [vmem:[#allocation3 + $0xe] sm:$0x3] %vm1867, %v1724
      %1869 = vst.msk [vmem:[#allocation3 + $0xe] sm:$0xfc] %vm1863, %v1726
      %1870 = vst.msk [vmem:[#allocation3 + $0x16] sm:$0xff] %vm1865, %v1728
      %1871 = vst.msk [vmem:[#allocation3 + $0x1e] sm:$0x3] %vm1867, %v1730
      %1872 = vst.msk [vmem:[#allocation3 + $0x1e] sm:$0xfc] %vm1863, %v1732
      %1873 = vst.msk [vmem:[#allocation3 + $0x26] sm:$0xff] %vm1865, %v1734
      %1874 = vst.msk [vmem:[#allocation3 + $0x2e] sm:$0x3] %vm1867, %v1736
      %1875 = vst.msk [vmem:[#allocation3 + $0x2e] sm:$0xfc] %vm1863, %v1738
      %1876 = vst.msk [vmem:[#allocation3 + $0x36] sm:$0xff] %vm1865, %v1740
      %1877 = vst.msk [vmem:[#allocation3 + $0x3e] sm:$0x3] %vm1867, %v1742
      %1878 = vst.msk [vmem:[#allocation3 + $0x3e] sm:$0xfc] %vm1863, %v1744
      %1879 = vst.msk [vmem:[#allocation3 + $0x46] sm:$0xff] %vm1865, %v1746
      %1880 = vst.msk [vmem:[#allocation3 + $0x4e] sm:$0x3] %vm1867, %v1748
      %1881 = vst.msk [vmem:[#allocation3 + $0x4e] sm:$0xfc] %vm1863, %v1750
      %1882 = vst.msk [vmem:[#allocation3 + $0x56] sm:$0xff] %vm1865, %v1752
      %1883 = vst.msk [vmem:[#allocation3 + $0x5e] sm:$0x3] %vm1867, %v1754
      %1884 = vst.msk [vmem:[#allocation3 + $0x5e] sm:$0xfc] %vm1863, %v1756
      %1885 = vst.msk [vmem:[#allocation3 + $0x66] sm:$0xff] %vm1865, %v1758
      %1886 = vst.msk [vmem:[#allocation3 + $0x6e] sm:$0x3] %vm1867, %v1760
      %1887 = vst.msk [vmem:[#allocation3 + $0x6e] sm:$0xfc] %vm1863, %v1762
      %1888 = vst.msk [vmem:[#allocation3 + $0x76] sm:$0xff] %vm1865, %v1764
      %1889 = vst.msk [vmem:[#allocation3 + $0x7e] sm:$0x3] %vm1867, %v1766
      %1890 = vst.msk [vmem:[#allocation3 + $0x7e] sm:$0xfc] %vm1863, %v1768
      %1891 = vst.msk [vmem:[#allocation3 + $0x86] sm:$0xff] %vm1865, %v1770
      %1892 = vst.msk [vmem:[#allocation3 + $0x8e] sm:$0x3] %vm1867, %v1772
      %1893 = vst.msk [vmem:[#allocation3 + $0x8e] sm:$0xfc] %vm1863, %v1774
      %1894 = vst.msk [vmem:[#allocation3 + $0x96] sm:$0xff] %vm1865, %v1776
      %1895 = vst.msk [vmem:[#allocation3 + $0x9e] sm:$0x3] %vm1867, %v1778
      %1896 = vst.msk [vmem:[#allocation3 + $0x9e] sm:$0xfc] %vm1863, %v1780
      %1897 = vst.msk [vmem:[#allocation3 + $0xa6] sm:$0xff] %vm1865, %v1782
      %1898 = vst.msk [vmem:[#allocation3 + $0xae] sm:$0x3] %vm1867, %v1784
      %1899 = vst.msk [vmem:[#allocation3 + $0xae] sm:$0xfc] %vm1863, %v1786
      %1900 = vst.msk [vmem:[#allocation3 + $0xb6] sm:$0xff] %vm1865, %v1788
      %1901 = vst.msk [vmem:[#allocation3 + $0xbe] sm:$0x3] %vm1867, %v1790
      %1902 = vst.msk [vmem:[#allocation3 + $0xbe] sm:$0xfc] %vm1863, %v1792
      %1903 = vst.msk [vmem:[#allocation3 + $0xc6] sm:$0xff] %vm1865, %v1794
      %1904 = vst.msk [vmem:[#allocation3 + $0xce] sm:$0x3] %vm1867, %v1796
      %1905 = vst.msk [vmem:[#allocation3 + $0xce] sm:$0xfc] %vm1863, %v1798
      %1906 = vst.msk [vmem:[#allocation3 + $0xd6] sm:$0xff] %vm1865, %v1800
      %1907 = vst.msk [vmem:[#allocation3 + $0xde] sm:$0x3] %vm1867, %v1802
      %1908 = vst.msk [vmem:[#allocation3 + $0xde] sm:$0xfc] %vm1863, %v1804
      %1909 = vst.msk [vmem:[#allocation3 + $0xe6] sm:$0xff] %vm1865, %v1806
      %1910 = vst.msk [vmem:[#allocation3 + $0xee] sm:$0x3] %vm1867, %v1808
      %1911 = vst.msk [vmem:[#allocation3 + $0xee] sm:$0xfc] %vm1863, %v1810
      %1912 = vst.msk [vmem:[#allocation3 + $0xf6] sm:$0xff] %vm1865, %v1812
      %1913 = vst.msk [vmem:[#allocation3 + $0xfe] sm:$0x3] %vm1867, %v1814
      %v1914 = vld [vmem:[#allocation3] sm:$0xff]
      %v1915 = vld [vmem:[#allocation3 + $0x8] sm:$0xff]
      %v1916 = vld [vmem:[#allocation3 + $0x10] sm:$0xff]
      %v1917 = vld [vmem:[#allocation3 + $0x18] sm:$0xff]
      %v1918 = vld [vmem:[#allocation3 + $0x20] sm:$0xff]
      %v1919 = vld [vmem:[#allocation3 + $0x28] sm:$0xff]
      %v1920 = vld [vmem:[#allocation3 + $0x30] sm:$0xff]
      %v1921 = vld [vmem:[#allocation3 + $0x38] sm:$0xff]
      %v1922 = vld [vmem:[#allocation3 + $0x40] sm:$0xff]
      %v1923 = vld [vmem:[#allocation3 + $0x48] sm:$0xff]
      %v1924 = vld [vmem:[#allocation3 + $0x50] sm:$0xff]
      %v1925 = vld [vmem:[#allocation3 + $0x58] sm:$0xff]
      %v1926 = vld [vmem:[#allocation3 + $0x60] sm:$0xff]
      %v1927 = vld [vmem:[#allocation3 + $0x68] sm:$0xff]
      %v1928 = vld [vmem:[#allocation3 + $0x70] sm:$0xff]
      %v1929 = vld [vmem:[#allocation3 + $0x78] sm:$0xff]
      %v1930 = vld [vmem:[#allocation3 + $0x80] sm:$0xff]
      %v1931 = vld [vmem:[#allocation3 + $0x88] sm:$0xff]
      %v1932 = vld [vmem:[#allocation3 + $0x90] sm:$0xff]
      %v1933 = vld [vmem:[#allocation3 + $0x98] sm:$0xff]
      %v1934 = vld [vmem:[#allocation3 + $0xa0] sm:$0xff]
      %v1935 = vld [vmem:[#allocation3 + $0xa8] sm:$0xff]
      %v1936 = vld [vmem:[#allocation3 + $0xb0] sm:$0xff]
      %v1937 = vld [vmem:[#allocation3 + $0xb8] sm:$0xff]
      %v1938 = vld [vmem:[#allocation3 + $0xc0] sm:$0xff]
      %v1939 = vld [vmem:[#allocation3 + $0xc8] sm:$0xff]
      %v1940 = vld [vmem:[#allocation3 + $0xd0] sm:$0xff]
      %v1941 = vld [vmem:[#allocation3 + $0xd8] sm:$0xff]
      %v1942 = vld [vmem:[#allocation3 + $0xe0] sm:$0xff]
      %v1943 = vld [vmem:[#allocation3 + $0xe8] sm:$0xff]
      %v1944 = vld [vmem:[#allocation3 + $0xf0] sm:$0xff]
      %v1945 = vld [vmem:[#allocation3 + $0xf8] sm:$0xff]
      %v1946 = vld [vmem:[%s1] sm:$0xff]
      %v1947 = vld [vmem:[%s1 + $0x8] sm:$0xff]
      %v1948 = vld [vmem:[%s1 + $0x10] sm:$0xff]
      %v1949 = vld [vmem:[%s1 + $0x18] sm:$0xff]
      %v1950 = vld [vmem:[%s1 + $0x20] sm:$0xf]
      %v1951 = vld [vmem:[%s2] sm:$0x1]
      %v1953 = vperm.slane %v1951, 0
      %vm1955 = vcmask 293888
      %v1957 = vsel %vm1955, %v1914, 0
      %v1960 = vsel %vm1955, %v1915, 0
      %v1963 = vsel %vm1955, %v1916, 0
      %v1966 = vsel %vm1955, %v1917, 0
      %v1969 = vsel %vm1955, %v1918, 0
      %v1972 = vsel %vm1955, %v1919, 0
      %v1975 = vsel %vm1955, %v1920, 0
      %v1978 = vsel %vm1955, %v1921, 0
      %v1981 = vsel %vm1955, %v1922, 0
      %v1984 = vsel %vm1955, %v1923, 0
      %v1987 = vsel %vm1955, %v1924, 0
      %v1990 = vsel %vm1955, %v1925, 0
      %v1993 = vsel %vm1955, %v1926, 0
      %v1996 = vsel %vm1955, %v1927, 0
      %v1999 = vsel %vm1955, %v1928, 0
      %v2002 = vsel %vm1955, %v1929, 0
      %v2005 = vsel %vm1955, %v1930, 0
      %v2008 = vsel %vm1955, %v1931, 0
      %v2011 = vsel %vm1955, %v1932, 0
      %v2014 = vsel %vm1955, %v1933, 0
      %v2017 = vsel %vm1955, %v1934, 0
      %v2020 = vsel %vm1955, %v1935, 0
      %v2023 = vsel %vm1955, %v1936, 0
      %v2026 = vsel %vm1955, %v1937, 0
      %v2029 = vsel %vm1955, %v1938, 0
      %v2032 = vsel %vm1955, %v1939, 0
      %v2035 = vsel %vm1955, %v1940, 0
      %v2038 = vsel %vm1955, %v1941, 0
      %v2041 = vsel %vm1955, %v1942, 0
      %v2044 = vsel %vm1955, %v1943, 0
      %v2047 = vsel %vm1955, %v1944, 0
      %v2050 = vsel %vm1955, %v1945, 0
      %vm2052 = vcmask 1043456
      %v2054 = vsel %vm2052, %v1950, 0
      %2056 = vmatpush.msra.mxu0 0.0
      %2057 = vmatpush.msra.mxu0 0.0
      %2058 = vmatpush.msra.mxu0 0.0
      %2059 = vmatpush.msra.mxu0 0.0
      %2060 = vmatpush.msra.mxu0 0.0
      %2061 = vmatpush.msra.mxu0 0.0
      %2062 = vmatpush.msra.mxu0 0.0
      %2063 = vmatpush.msra.mxu0 0.0
      %2064 = vmatpush.msra.mxu0 0.0
      %2065 = vmatpush.msra.mxu0 0.0
      %2066 = vmatpush.msra.mxu0 0.0
      %2067 = vmatpush.msra.mxu0 %v2054
      %2068 = vmatpush.msra.mxu0 %v1949
      %2069 = vmatpush.msra.mxu0 %v1948
      %2070 = vmatpush.msra.mxu0 %v1947
      %2071 = vmatpush.msra.mxu0 %v1946
      %2072 = vmatmul.f32.gmra.mxu0 %v1957
      %v2073 = vpop.f32.mrf.mxu0
      %v2074 = vadd.f32 %v1953, %v2073
      %2075 = vmatmul.f32.gmra.mxu0 %v1960
      %v2076 = vpop.f32.mrf.mxu0
      %v2077 = vadd.f32 %v1953, %v2076
      %2078 = vmatmul.f32.gmra.mxu0 %v1963
      %v2079 = vpop.f32.mrf.mxu0
      %v2080 = vadd.f32 %v1953, %v2079
      %2081 = vmatmul.f32.gmra.mxu0 %v1966
      %v2082 = vpop.f32.mrf.mxu0
      %v2083 = vadd.f32 %v1953, %v2082
      %2084 = vmatmul.f32.gmra.mxu0 %v1969
      %v2085 = vpop.f32.mrf.mxu0
      %v2086 = vadd.f32 %v1953, %v2085
      %2087 = vmatmul.f32.gmra.mxu0 %v1972
      %v2088 = vpop.f32.mrf.mxu0
      %v2089 = vadd.f32 %v1953, %v2088
      %2090 = vmatmul.f32.gmra.mxu0 %v1975
      %v2091 = vpop.f32.mrf.mxu0
      %v2092 = vadd.f32 %v1953, %v2091
      %2093 = vmatmul.f32.gmra.mxu0 %v1978
      %v2094 = vpop.f32.mrf.mxu0
      %v2095 = vadd.f32 %v1953, %v2094
      %2096 = vmatmul.f32.gmra.mxu0 %v1981
      %v2097 = vpop.f32.mrf.mxu0
      %v2098 = vadd.f32 %v1953, %v2097
      %2099 = vmatmul.f32.gmra.mxu0 %v1984
      %v2100 = vpop.f32.mrf.mxu0
      %v2101 = vadd.f32 %v1953, %v2100
      %2102 = vmatmul.f32.gmra.mxu0 %v1987
      %v2103 = vpop.f32.mrf.mxu0
      %v2104 = vadd.f32 %v1953, %v2103
      %2105 = vmatmul.f32.gmra.mxu0 %v1990
      %v2106 = vpop.f32.mrf.mxu0
      %v2107 = vadd.f32 %v1953, %v2106
      %2108 = vmatmul.f32.gmra.mxu0 %v1993
      %v2109 = vpop.f32.mrf.mxu0
      %v2110 = vadd.f32 %v1953, %v2109
      %2111 = vmatmul.f32.gmra.mxu0 %v1996
      %v2112 = vpop.f32.mrf.mxu0
      %v2113 = vadd.f32 %v1953, %v2112
      %2114 = vmatmul.f32.gmra.mxu0 %v1999
      %v2115 = vpop.f32.mrf.mxu0
      %v2116 = vadd.f32 %v1953, %v2115
      %2117 = vmatmul.f32.gmra.mxu0 %v2002
      %v2118 = vpop.f32.mrf.mxu0
      %v2119 = vadd.f32 %v1953, %v2118
      %2120 = vmatmul.f32.gmra.mxu0 %v2005
      %v2121 = vpop.f32.mrf.mxu0
      %v2122 = vadd.f32 %v1953, %v2121
      %2123 = vmatmul.f32.gmra.mxu0 %v2008
      %v2124 = vpop.f32.mrf.mxu0
      %v2125 = vadd.f32 %v1953, %v2124
      %2126 = vmatmul.f32.gmra.mxu0 %v2011
      %v2127 = vpop.f32.mrf.mxu0
      %v2128 = vadd.f32 %v1953, %v2127
      %2129 = vmatmul.f32.gmra.mxu0 %v2014
      %v2130 = vpop.f32.mrf.mxu0
      %v2131 = vadd.f32 %v1953, %v2130
      %2132 = vmatmul.f32.gmra.mxu0 %v2017
      %v2133 = vpop.f32.mrf.mxu0
      %v2134 = vadd.f32 %v1953, %v2133
      %2135 = vmatmul.f32.gmra.mxu0 %v2020
      %v2136 = vpop.f32.mrf.mxu0
      %v2137 = vadd.f32 %v1953, %v2136
      %2138 = vmatmul.f32.gmra.mxu0 %v2023
      %v2139 = vpop.f32.mrf.mxu0
      %v2140 = vadd.f32 %v1953, %v2139
      %2141 = vmatmul.f32.gmra.mxu0 %v2026
      %v2142 = vpop.f32.mrf.mxu0
      %v2143 = vadd.f32 %v1953, %v2142
      %2144 = vmatmul.f32.gmra.mxu0 %v2029
      %v2145 = vpop.f32.mrf.mxu0
      %v2146 = vadd.f32 %v1953, %v2145
      %2147 = vmatmul.f32.gmra.mxu0 %v2032
      %v2148 = vpop.f32.mrf.mxu0
      %v2149 = vadd.f32 %v1953, %v2148
      %2150 = vmatmul.f32.gmra.mxu0 %v2035
      %v2151 = vpop.f32.mrf.mxu0
      %v2152 = vadd.f32 %v1953, %v2151
      %2153 = vmatmul.f32.gmra.mxu0 %v2038
      %v2154 = vpop.f32.mrf.mxu0
      %v2155 = vadd.f32 %v1953, %v2154
      %2156 = vmatmul.f32.gmra.mxu0 %v2041
      %v2157 = vpop.f32.mrf.mxu0
      %v2158 = vadd.f32 %v1953, %v2157
      %2159 = vmatmul.f32.gmra.mxu0 %v2044
      %v2160 = vpop.f32.mrf.mxu0
      %v2161 = vadd.f32 %v1953, %v2160
      %2162 = vmatmul.f32.gmra.mxu0 %v2047
      %v2163 = vpop.f32.mrf.mxu0
      %v2164 = vadd.f32 %v1953, %v2163
      %2165 = vmatmul.f32.gmra.mxu0 %v2050
      %v2166 = vpop.f32.mrf.mxu0
      %v2167 = vadd.f32 %v1953, %v2166
      %2168 = vdwg.mxu0
      %v2169 = vmax.f32 %v2074, 0.0
      %v2170 = vmax.f32 %v2077, 0.0
      %v2171 = vmax.f32 %v2080, 0.0
      %v2172 = vmax.f32 %v2083, 0.0
      %v2173 = vmax.f32 %v2086, 0.0
      %v2174 = vmax.f32 %v2089, 0.0
      %v2175 = vmax.f32 %v2092, 0.0
      %v2176 = vmax.f32 %v2095, 0.0
      %v2177 = vmax.f32 %v2098, 0.0
      %v2178 = vmax.f32 %v2101, 0.0
      %v2179 = vmax.f32 %v2104, 0.0
      %v2180 = vmax.f32 %v2107, 0.0
      %v2181 = vmax.f32 %v2110, 0.0
      %v2182 = vmax.f32 %v2113, 0.0
      %v2183 = vmax.f32 %v2116, 0.0
      %v2184 = vmax.f32 %v2119, 0.0
      %v2185 = vmax.f32 %v2122, 0.0
      %v2186 = vmax.f32 %v2125, 0.0
      %v2187 = vmax.f32 %v2128, 0.0
      %v2188 = vmax.f32 %v2131, 0.0
      %v2189 = vmax.f32 %v2134, 0.0
      %v2190 = vmax.f32 %v2137, 0.0
      %v2191 = vmax.f32 %v2140, 0.0
      %v2192 = vmax.f32 %v2143, 0.0
      %v2193 = vmax.f32 %v2146, 0.0
      %v2194 = vmax.f32 %v2149, 0.0
      %v2195 = vmax.f32 %v2152, 0.0
      %v2196 = vmax.f32 %v2155, 0.0
      %v2197 = vmax.f32 %v2158, 0.0
      %v2198 = vmax.f32 %v2161, 0.0
      %v2199 = vmax.f32 %v2164, 0.0
      %v2200 = vmax.f32 %v2167, 0.0
      %vm2201 = vcmask 64512
      %2202 = vst.msk [vmem:[#allocation4] sm:$0xff] %vm2201, 0.0
      %2203 = vst.msk [vmem:[#allocation4 + $0x8] sm:$0xff] %vm2201, 0.0
      %vm2204 = vcmask 58368
      %2205 = vst.msk [vmem:[#allocation4 + $0x10] sm:$0x3] %vm2204, 0.0
      %2206 = vst.msk [vmem:[#allocation4 + $0x18] sm:$0xff] %vm2201, 0.0
      %2207 = vst.msk [vmem:[#allocation4 + $0x20] sm:$0xff] %vm2201, 0.0
      %2208 = vst.msk [vmem:[#allocation4 + $0x28] sm:$0x3] %vm2204, 0.0
      %2209 = vst.msk [vmem:[#allocation4 + $0x30] sm:$0xff] %vm2201, 0.0
      %2210 = vst.msk [vmem:[#allocation4 + $0x38] sm:$0xff] %vm2201, 0.0
      %2211 = vst.msk [vmem:[#allocation4 + $0x40] sm:$0x3] %vm2204, 0.0
      %2212 = vst.msk [vmem:[#allocation4 + $0x48] sm:$0xff] %vm2201, 0.0
      %2213 = vst.msk [vmem:[#allocation4 + $0x50] sm:$0xff] %vm2201, 0.0
      %2214 = vst.msk [vmem:[#allocation4 + $0x58] sm:$0x3] %vm2204, 0.0
      %2215 = vst.msk [vmem:[#allocation4 + $0x60] sm:$0xff] %vm2201, 0.0
      %2216 = vst.msk [vmem:[#allocation4 + $0x68] sm:$0xff] %vm2201, 0.0
      %2217 = vst.msk [vmem:[#allocation4 + $0x70] sm:$0x3] %vm2204, 0.0
      %2218 = vst.msk [vmem:[#allocation4 + $0x78] sm:$0xff] %vm2201, 0.0
      %2219 = vst.msk [vmem:[#allocation4 + $0x80] sm:$0xff] %vm2201, 0.0
      %2220 = vst.msk [vmem:[#allocation4 + $0x88] sm:$0x3] %vm2204, 0.0
      %2221 = vst.msk [vmem:[#allocation4 + $0x90] sm:$0xff] %vm2201, 0.0
      %2222 = vst.msk [vmem:[#allocation4 + $0x98] sm:$0xff] %vm2201, 0.0
      %2223 = vst.msk [vmem:[#allocation4 + $0xa0] sm:$0x3] %vm2204, 0.0
      %2224 = vst.msk [vmem:[#allocation4 + $0xa8] sm:$0xff] %vm2201, 0.0
      %2225 = vst.msk [vmem:[#allocation4 + $0xb0] sm:$0xff] %vm2201, 0.0
      %2226 = vst.msk [vmem:[#allocation4 + $0xb8] sm:$0x3] %vm2204, 0.0
      %2227 = vst.msk [vmem:[#allocation4 + $0xc0] sm:$0xff] %vm2201, 0.0
      %2228 = vst.msk [vmem:[#allocation4 + $0xc8] sm:$0xff] %vm2201, 0.0
      %2229 = vst.msk [vmem:[#allocation4 + $0xd0] sm:$0x3] %vm2204, 0.0
      %2230 = vst.msk [vmem:[#allocation4 + $0xd8] sm:$0xff] %vm2201, 0.0
      %2231 = vst.msk [vmem:[#allocation4 + $0xe0] sm:$0xff] %vm2201, 0.0
      %2232 = vst.msk [vmem:[#allocation4 + $0xe8] sm:$0x3] %vm2204, 0.0
      %2233 = vst.msk [vmem:[#allocation4 + $0xf0] sm:$0xff] %vm2201, 0.0
      %2234 = vst.msk [vmem:[#allocation4 + $0xf8] sm:$0xff] %vm2201, 0.0
      %2235 = vst.msk [vmem:[#allocation4 + $0x100] sm:$0x3] %vm2204, 0.0
      %2236 = vst.msk [vmem:[#allocation4 + $0x108] sm:$0xff] %vm2201, 0.0
      %2237 = vst.msk [vmem:[#allocation4 + $0x110] sm:$0xff] %vm2201, 0.0
      %2238 = vst.msk [vmem:[#allocation4 + $0x118] sm:$0x3] %vm2204, 0.0
      %2239 = vst.msk [vmem:[#allocation4 + $0x120] sm:$0xff] %vm2201, 0.0
      %2240 = vst.msk [vmem:[#allocation4 + $0x128] sm:$0xff] %vm2201, 0.0
      %2241 = vst.msk [vmem:[#allocation4 + $0x130] sm:$0x3] %vm2204, 0.0
      %2242 = vst.msk [vmem:[#allocation4 + $0x138] sm:$0xff] %vm2201, 0.0
      %2243 = vst.msk [vmem:[#allocation4 + $0x140] sm:$0xff] %vm2201, 0.0
      %2244 = vst.msk [vmem:[#allocation4 + $0x148] sm:$0x3] %vm2204, 0.0
      %2245 = vst.msk [vmem:[#allocation4 + $0x150] sm:$0xff] %vm2201, 0.0
      %2246 = vst.msk [vmem:[#allocation4 + $0x158] sm:$0xff] %vm2201, 0.0
      %2247 = vst.msk [vmem:[#allocation4 + $0x160] sm:$0x3] %vm2204, 0.0
      %2248 = vst.msk [vmem:[#allocation4 + $0x168] sm:$0xff] %vm2201, 0.0
      %2249 = vst.msk [vmem:[#allocation4 + $0x170] sm:$0xff] %vm2201, 0.0
      %2250 = vst.msk [vmem:[#allocation4 + $0x178] sm:$0x3] %vm2204, 0.0
      %2251 = vst.msk [vmem:[#allocation4 + $0x180] sm:$0xff] %vm2201, 0.0
      %2252 = vst.msk [vmem:[#allocation4 + $0x188] sm:$0xff] %vm2201, 0.0
      %2253 = vst.msk [vmem:[#allocation4 + $0x190] sm:$0x3] %vm2204, 0.0
      %2254 = vst.msk [vmem:[#allocation4 + $0x198] sm:$0xff] %vm2201, 0.0
      %2255 = vst.msk [vmem:[#allocation4 + $0x1a0] sm:$0xff] %vm2201, 0.0
      %2256 = vst.msk [vmem:[#allocation4 + $0x1a8] sm:$0x3] %vm2204, 0.0
      %s2257 = scalar_lea.vmem [#allocation4], 24
      %2258 = vst.msk [vmem:[%s2257 + $0x1] sm:$0xff] %vm2201, %v2169
      %2259 = vst.msk [vmem:[%s2257 + $0x9] sm:$0xff] %vm2201, %v2170
      %2260 = vst.msk [vmem:[%s2257 + $0x19] sm:$0xff] %vm2201, %v2171
      %2261 = vst.msk [vmem:[%s2257 + $0x21] sm:$0xff] %vm2201, %v2172
      %2262 = vst.msk [vmem:[%s2257 + $0x31] sm:$0xff] %vm2201, %v2173
      %2263 = vst.msk [vmem:[%s2257 + $0x39] sm:$0xff] %vm2201, %v2174
      %2264 = vst.msk [vmem:[%s2257 + $0x49] sm:$0xff] %vm2201, %v2175
      %2265 = vst.msk [vmem:[%s2257 + $0x51] sm:$0xff] %vm2201, %v2176
      %2266 = vst.msk [vmem:[%s2257 + $0x61] sm:$0xff] %vm2201, %v2177
      %2267 = vst.msk [vmem:[%s2257 + $0x69] sm:$0xff] %vm2201, %v2178
      %2268 = vst.msk [vmem:[%s2257 + $0x79] sm:$0xff] %vm2201, %v2179
      %2269 = vst.msk [vmem:[%s2257 + $0x81] sm:$0xff] %vm2201, %v2180
      %2270 = vst.msk [vmem:[%s2257 + $0x91] sm:$0xff] %vm2201, %v2181
      %2271 = vst.msk [vmem:[%s2257 + $0x99] sm:$0xff] %vm2201, %v2182
      %2272 = vst.msk [vmem:[%s2257 + $0xa9] sm:$0xff] %vm2201, %v2183
      %2273 = vst.msk [vmem:[%s2257 + $0xb1] sm:$0xff] %vm2201, %v2184
      %2274 = vst.msk [vmem:[%s2257 + $0xc1] sm:$0xff] %vm2201, %v2185
      %2275 = vst.msk [vmem:[%s2257 + $0xc9] sm:$0xff] %vm2201, %v2186
      %2276 = vst.msk [vmem:[%s2257 + $0xd9] sm:$0xff] %vm2201, %v2187
      %2277 = vst.msk [vmem:[%s2257 + $0xe1] sm:$0xff] %vm2201, %v2188
      %2278 = vst.msk [vmem:[%s2257 + $0xf1] sm:$0xff] %vm2201, %v2189
      %2279 = vst.msk [vmem:[%s2257 + $0xf9] sm:$0xff] %vm2201, %v2190
      %2280 = vst.msk [vmem:[%s2257 + $0x109] sm:$0xff] %vm2201, %v2191
      %2281 = vst.msk [vmem:[%s2257 + $0x111] sm:$0xff] %vm2201, %v2192
      %2282 = vst.msk [vmem:[%s2257 + $0x121] sm:$0xff] %vm2201, %v2193
      %2283 = vst.msk [vmem:[%s2257 + $0x129] sm:$0xff] %vm2201, %v2194
      %2284 = vst.msk [vmem:[%s2257 + $0x139] sm:$0xff] %vm2201, %v2195
      %2285 = vst.msk [vmem:[%s2257 + $0x141] sm:$0xff] %vm2201, %v2196
      %2286 = vst.msk [vmem:[%s2257 + $0x151] sm:$0xff] %vm2201, %v2197
      %2287 = vst.msk [vmem:[%s2257 + $0x159] sm:$0xff] %vm2201, %v2198
      %2288 = vst.msk [vmem:[%s2257 + $0x169] sm:$0xff] %vm2201, %v2199
      %2289 = vst.msk [vmem:[%s2257 + $0x171] sm:$0xff] %vm2201, %v2200
      %v2290 = vld [vmem:[#allocation4] sm:$0xff]
      %v2291 = vld [vmem:[#allocation4 + $0x8] sm:$0xff]
      %v2292 = vld [vmem:[#allocation4 + $0x10] sm:$0x3]
      %v2293 = vld [vmem:[#allocation4 + $0x18] sm:$0xff]
      %v2294 = vld [vmem:[#allocation4 + $0x20] sm:$0xff]
      %v2295 = vld [vmem:[#allocation4 + $0x28] sm:$0x3]
      %v2296 = vld [vmem:[#allocation4 + $0x30] sm:$0xff]
      %v2297 = vld [vmem:[#allocation4 + $0x38] sm:$0xff]
      %v2298 = vld [vmem:[#allocation4 + $0x40] sm:$0x3]
      %v2299 = vld [vmem:[#allocation4 + $0x48] sm:$0xff]
      %v2300 = vld [vmem:[#allocation4 + $0x50] sm:$0xff]
      %v2301 = vld [vmem:[#allocation4 + $0x58] sm:$0x3]
      %v2302 = vld [vmem:[#allocation4 + $0x60] sm:$0xff]
      %v2303 = vld [vmem:[#allocation4 + $0x68] sm:$0xff]
      %v2304 = vld [vmem:[#allocation4 + $0x70] sm:$0x3]
      %v2305 = vld [vmem:[#allocation4 + $0x78] sm:$0xff]
      %v2306 = vld [vmem:[#allocation4 + $0x80] sm:$0xff]
      %v2307 = vld [vmem:[#allocation4 + $0x88] sm:$0x3]
      %v2308 = vld [vmem:[#allocation4 + $0x90] sm:$0xff]
      %v2309 = vld [vmem:[#allocation4 + $0x98] sm:$0xff]
      %v2310 = vld [vmem:[#allocation4 + $0xa0] sm:$0x3]
      %v2311 = vld [vmem:[#allocation4 + $0xa8] sm:$0xff]
      %v2312 = vld [vmem:[#allocation4 + $0xb0] sm:$0xff]
      %v2313 = vld [vmem:[#allocation4 + $0xb8] sm:$0x3]
      %v2314 = vld [vmem:[#allocation4 + $0xc0] sm:$0xff]
      %v2315 = vld [vmem:[#allocation4 + $0xc8] sm:$0xff]
      %v2316 = vld [vmem:[#allocation4 + $0xd0] sm:$0x3]
      %v2317 = vld [vmem:[#allocation4 + $0xd8] sm:$0xff]
      %v2318 = vld [vmem:[#allocation4 + $0xe0] sm:$0xff]
      %v2319 = vld [vmem:[#allocation4 + $0xe8] sm:$0x3]
      %v2320 = vld [vmem:[#allocation4 + $0xf0] sm:$0xff]
      %v2321 = vld [vmem:[#allocation4 + $0xf8] sm:$0xff]
      %v2322 = vld [vmem:[#allocation4 + $0x100] sm:$0x3]
      %v2323 = vld [vmem:[#allocation4 + $0x108] sm:$0xff]
      %v2324 = vld [vmem:[#allocation4 + $0x110] sm:$0xff]
      %v2325 = vld [vmem:[#allocation4 + $0x118] sm:$0x3]
      %v2326 = vld [vmem:[#allocation4 + $0x120] sm:$0xff]
      %v2327 = vld [vmem:[#allocation4 + $0x128] sm:$0xff]
      %v2328 = vld [vmem:[#allocation4 + $0x130] sm:$0x3]
      %v2329 = vld [vmem:[#allocation4 + $0x138] sm:$0xff]
      %v2330 = vld [vmem:[#allocation4 + $0x140] sm:$0xff]
      %v2331 = vld [vmem:[#allocation4 + $0x148] sm:$0x3]
      %v2332 = vld [vmem:[#allocation4 + $0x150] sm:$0xff]
      %v2333 = vld [vmem:[#allocation4 + $0x158] sm:$0xff]
      %v2334 = vld [vmem:[#allocation4 + $0x160] sm:$0x3]
      %v2335 = vld [vmem:[#allocation4 + $0x168] sm:$0xff]
      %v2336 = vld [vmem:[#allocation4 + $0x170] sm:$0xff]
      %v2337 = vld [vmem:[#allocation4 + $0x178] sm:$0x3]
      %v2338 = vld [vmem:[#allocation4 + $0x180] sm:$0xff]
      %v2339 = vld [vmem:[#allocation4 + $0x188] sm:$0xff]
      %v2340 = vld [vmem:[#allocation4 + $0x190] sm:$0x3]
      %v2341 = vld [vmem:[#allocation4 + $0x198] sm:$0xff]
      %v2342 = vld [vmem:[#allocation4 + $0x1a0] sm:$0xff]
      %v2343 = vld [vmem:[#allocation4 + $0x1a8] sm:$0x3]
      %2344 = vst.msk [vmem:[#allocation5] sm:$0xff] %vm2201, %v2290
      %2345 = vst.msk [vmem:[#allocation5 + $0x8] sm:$0xff] %vm2201, %v2291
      %2346 = vst.msk [vmem:[#allocation5 + $0x10] sm:$0xff] %vm2201, %v2293
      %2347 = vst.msk [vmem:[#allocation5 + $0x18] sm:$0xff] %vm2201, %v2294
      %2348 = vst.msk [vmem:[#allocation5 + $0x20] sm:$0xff] %vm2201, %v2296
      %2349 = vst.msk [vmem:[#allocation5 + $0x28] sm:$0xff] %vm2201, %v2297
      %2350 = vst.msk [vmem:[#allocation5 + $0x30] sm:$0xff] %vm2201, %v2299
      %2351 = vst.msk [vmem:[#allocation5 + $0x38] sm:$0xff] %vm2201, %v2300
      %2352 = vst.msk [vmem:[#allocation5 + $0x40] sm:$0xff] %vm2201, %v2302
      %2353 = vst.msk [vmem:[#allocation5 + $0x48] sm:$0xff] %vm2201, %v2303
      %2354 = vst.msk [vmem:[#allocation5 + $0x50] sm:$0xff] %vm2201, %v2305
      %2355 = vst.msk [vmem:[#allocation5 + $0x58] sm:$0xff] %vm2201, %v2306
      %2356 = vst.msk [vmem:[#allocation5 + $0x60] sm:$0xff] %vm2201, %v2308
      %2357 = vst.msk [vmem:[#allocation5 + $0x68] sm:$0xff] %vm2201, %v2309
      %2358 = vst.msk [vmem:[#allocation5 + $0x70] sm:$0xff] %vm2201, %v2311
      %2359 = vst.msk [vmem:[#allocation5 + $0x78] sm:$0xff] %vm2201, %v2312
      %2360 = vst.msk [vmem:[#allocation5 + $0x80] sm:$0xff] %vm2201, %v2314
      %2361 = vst.msk [vmem:[#allocation5 + $0x88] sm:$0xff] %vm2201, %v2315
      %2362 = vst.msk [vmem:[#allocation5 + $0x90] sm:$0xff] %vm2201, %v2317
      %2363 = vst.msk [vmem:[#allocation5 + $0x98] sm:$0xff] %vm2201, %v2318
      %2364 = vst.msk [vmem:[#allocation5 + $0xa0] sm:$0xff] %vm2201, %v2320
      %2365 = vst.msk [vmem:[#allocation5 + $0xa8] sm:$0xff] %vm2201, %v2321
      %2366 = vst.msk [vmem:[#allocation5 + $0xb0] sm:$0xff] %vm2201, %v2323
      %2367 = vst.msk [vmem:[#allocation5 + $0xb8] sm:$0xff] %vm2201, %v2324
      %2368 = vst.msk [vmem:[#allocation5 + $0xc0] sm:$0xff] %vm2201, %v2326
      %2369 = vst.msk [vmem:[#allocation5 + $0xc8] sm:$0xff] %vm2201, %v2327
      %2370 = vst.msk [vmem:[#allocation5 + $0xd0] sm:$0xff] %vm2201, %v2329
      %2371 = vst.msk [vmem:[#allocation5 + $0xd8] sm:$0xff] %vm2201, %v2330
      %2372 = vst.msk [vmem:[#allocation5 + $0xe0] sm:$0xff] %vm2201, %v2332
      %2373 = vst.msk [vmem:[#allocation5 + $0xe8] sm:$0xff] %vm2201, %v2333
      %2374 = vst.msk [vmem:[#allocation5 + $0xf0] sm:$0xff] %vm2201, %v2335
      %2375 = vst.msk [vmem:[#allocation5 + $0xf8] sm:$0xff] %vm2201, %v2336
      %2424 = vrot.lane.b32.xlu0 %v2290, 8
      %v2425 = vpop.permute.xlu0 %2424
      %2426 = vrot.lane.b32.xlu0 %v2291, 8
      %v2427 = vpop.permute.xlu0 %2426
      %2428 = vrot.lane.b32.xlu0 %v2292, 8
      %v2429 = vpop.permute.xlu0 %2428
      %2430 = vrot.lane.b32.xlu0 %v2293, 8
      %v2431 = vpop.permute.xlu0 %2430
      %2432 = vrot.lane.b32.xlu0 %v2294, 8
      %v2433 = vpop.permute.xlu0 %2432
      %2434 = vrot.lane.b32.xlu0 %v2295, 8
      %v2435 = vpop.permute.xlu0 %2434
      %2436 = vrot.lane.b32.xlu0 %v2296, 8
      %v2437 = vpop.permute.xlu0 %2436
      %2438 = vrot.lane.b32.xlu0 %v2297, 8
      %v2439 = vpop.permute.xlu0 %2438
      %2440 = vrot.lane.b32.xlu0 %v2298, 8
      %v2441 = vpop.permute.xlu0 %2440
      %2442 = vrot.lane.b32.xlu0 %v2299, 8
      %v2443 = vpop.permute.xlu0 %2442
      %2444 = vrot.lane.b32.xlu0 %v2300, 8
      %v2445 = vpop.permute.xlu0 %2444
      %2446 = vrot.lane.b32.xlu0 %v2301, 8
      %v2447 = vpop.permute.xlu0 %2446
      %2448 = vrot.lane.b32.xlu0 %v2302, 8
      %v2449 = vpop.permute.xlu0 %2448
      %2450 = vrot.lane.b32.xlu0 %v2303, 8
      %v2451 = vpop.permute.xlu0 %2450
      %2452 = vrot.lane.b32.xlu0 %v2304, 8
      %v2453 = vpop.permute.xlu0 %2452
      %2454 = vrot.lane.b32.xlu0 %v2305, 8
      %v2455 = vpop.permute.xlu0 %2454
      %2456 = vrot.lane.b32.xlu0 %v2306, 8
      %v2457 = vpop.permute.xlu0 %2456
      %2458 = vrot.lane.b32.xlu0 %v2307, 8
      %v2459 = vpop.permute.xlu0 %2458
      %2460 = vrot.lane.b32.xlu0 %v2308, 8
      %v2461 = vpop.permute.xlu0 %2460
      %2462 = vrot.lane.b32.xlu0 %v2309, 8
      %v2463 = vpop.permute.xlu0 %2462
      %2464 = vrot.lane.b32.xlu0 %v2310, 8
      %v2465 = vpop.permute.xlu0 %2464
      %2466 = vrot.lane.b32.xlu0 %v2311, 8
      %v2467 = vpop.permute.xlu0 %2466
      %2468 = vrot.lane.b32.xlu0 %v2312, 8
      %v2469 = vpop.permute.xlu0 %2468
      %2470 = vrot.lane.b32.xlu0 %v2313, 8
      %v2471 = vpop.permute.xlu0 %2470
      %2472 = vrot.lane.b32.xlu0 %v2314, 8
      %v2473 = vpop.permute.xlu0 %2472
      %2474 = vrot.lane.b32.xlu0 %v2315, 8
      %v2475 = vpop.permute.xlu0 %2474
      %2476 = vrot.lane.b32.xlu0 %v2316, 8
      %v2477 = vpop.permute.xlu0 %2476
      %2478 = vrot.lane.b32.xlu0 %v2317, 8
      %v2479 = vpop.permute.xlu0 %2478
      %2480 = vrot.lane.b32.xlu0 %v2318, 8
      %v2481 = vpop.permute.xlu0 %2480
      %2482 = vrot.lane.b32.xlu0 %v2319, 8
      %v2483 = vpop.permute.xlu0 %2482
      %2484 = vrot.lane.b32.xlu0 %v2320, 8
      %v2485 = vpop.permute.xlu0 %2484
      %2486 = vrot.lane.b32.xlu0 %v2321, 8
      %v2487 = vpop.permute.xlu0 %2486
      %2488 = vrot.lane.b32.xlu0 %v2322, 8
      %v2489 = vpop.permute.xlu0 %2488
      %2490 = vrot.lane.b32.xlu0 %v2323, 8
      %v2491 = vpop.permute.xlu0 %2490
      %2492 = vrot.lane.b32.xlu0 %v2324, 8
      %v2493 = vpop.permute.xlu0 %2492
      %2494 = vrot.lane.b32.xlu0 %v2325, 8
      %v2495 = vpop.permute.xlu0 %2494
      %2496 = vrot.lane.b32.xlu0 %v2326, 8
      %v2497 = vpop.permute.xlu0 %2496
      %2498 = vrot.lane.b32.xlu0 %v2327, 8
      %v2499 = vpop.permute.xlu0 %2498
      %2500 = vrot.lane.b32.xlu0 %v2328, 8
      %v2501 = vpop.permute.xlu0 %2500
      %2502 = vrot.lane.b32.xlu0 %v2329, 8
      %v2503 = vpop.permute.xlu0 %2502
      %2504 = vrot.lane.b32.xlu0 %v2330, 8
      %v2505 = vpop.permute.xlu0 %2504
      %2506 = vrot.lane.b32.xlu0 %v2331, 8
      %v2507 = vpop.permute.xlu0 %2506
      %2508 = vrot.lane.b32.xlu0 %v2332, 8
      %v2509 = vpop.permute.xlu0 %2508
      %2510 = vrot.lane.b32.xlu0 %v2333, 8
      %v2511 = vpop.permute.xlu0 %2510
      %2512 = vrot.lane.b32.xlu0 %v2334, 8
      %v2513 = vpop.permute.xlu0 %2512
      %2514 = vrot.lane.b32.xlu0 %v2335, 8
      %v2515 = vpop.permute.xlu0 %2514
      %2516 = vrot.lane.b32.xlu0 %v2336, 8
      %v2517 = vpop.permute.xlu0 %2516
      %2518 = vrot.lane.b32.xlu0 %v2337, 8
      %v2519 = vpop.permute.xlu0 %2518
      %vm2568 = vcmask 130113
      %2569 = vst.msk [vmem:[#allocation5 - $0x1] sm:$0xfe] %vm2568, %v2425
      %vm2570 = vcmask 130112
      %2571 = vst.msk [vmem:[#allocation5 + $0x7] sm:$0xff] %vm2570, %v2427
      %vm2572 = vcmask 122944
      %2573 = vst.msk [vmem:[#allocation5 + $0xf] sm:$0x1] %vm2572, %v2429
      %2574 = vst.msk [vmem:[#allocation5 + $0xf] sm:$0xfe] %vm2568, %v2431
      %2575 = vst.msk [vmem:[#allocation5 + $0x17] sm:$0xff] %vm2570, %v2433
      %2576 = vst.msk [vmem:[#allocation5 + $0x1f] sm:$0x1] %vm2572, %v2435
      %2577 = vst.msk [vmem:[#allocation5 + $0x1f] sm:$0xfe] %vm2568, %v2437
      %2578 = vst.msk [vmem:[#allocation5 + $0x27] sm:$0xff] %vm2570, %v2439
      %2579 = vst.msk [vmem:[#allocation5 + $0x2f] sm:$0x1] %vm2572, %v2441
      %2580 = vst.msk [vmem:[#allocation5 + $0x2f] sm:$0xfe] %vm2568, %v2443
      %2581 = vst.msk [vmem:[#allocation5 + $0x37] sm:$0xff] %vm2570, %v2445
      %2582 = vst.msk [vmem:[#allocation5 + $0x3f] sm:$0x1] %vm2572, %v2447
      %2583 = vst.msk [vmem:[#allocation5 + $0x3f] sm:$0xfe] %vm2568, %v2449
      %2584 = vst.msk [vmem:[#allocation5 + $0x47] sm:$0xff] %vm2570, %v2451
      %2585 = vst.msk [vmem:[#allocation5 + $0x4f] sm:$0x1] %vm2572, %v2453
      %2586 = vst.msk [vmem:[#allocation5 + $0x4f] sm:$0xfe] %vm2568, %v2455
      %2587 = vst.msk [vmem:[#allocation5 + $0x57] sm:$0xff] %vm2570, %v2457
      %2588 = vst.msk [vmem:[#allocation5 + $0x5f] sm:$0x1] %vm2572, %v2459
      %2589 = vst.msk [vmem:[#allocation5 + $0x5f] sm:$0xfe] %vm2568, %v2461
      %2590 = vst.msk [vmem:[#allocation5 + $0x67] sm:$0xff] %vm2570, %v2463
      %2591 = vst.msk [vmem:[#allocation5 + $0x6f] sm:$0x1] %vm2572, %v2465
      %2592 = vst.msk [vmem:[#allocation5 + $0x6f] sm:$0xfe] %vm2568, %v2467
      %2593 = vst.msk [vmem:[#allocation5 + $0x77] sm:$0xff] %vm2570, %v2469
      %2594 = vst.msk [vmem:[#allocation5 + $0x7f] sm:$0x1] %vm2572, %v2471
      %2595 = vst.msk [vmem:[#allocation5 + $0x7f] sm:$0xfe] %vm2568, %v2473
      %2596 = vst.msk [vmem:[#allocation5 + $0x87] sm:$0xff] %vm2570, %v2475
      %2597 = vst.msk [vmem:[#allocation5 + $0x8f] sm:$0x1] %vm2572, %v2477
      %2598 = vst.msk [vmem:[#allocation5 + $0x8f] sm:$0xfe] %vm2568, %v2479
      %2599 = vst.msk [vmem:[#allocation5 + $0x97] sm:$0xff] %vm2570, %v2481
      %2600 = vst.msk [vmem:[#allocation5 + $0x9f] sm:$0x1] %vm2572, %v2483
      %2601 = vst.msk [vmem:[#allocation5 + $0x9f] sm:$0xfe] %vm2568, %v2485
      %2602 = vst.msk [vmem:[#allocation5 + $0xa7] sm:$0xff] %vm2570, %v2487
      %2603 = vst.msk [vmem:[#allocation5 + $0xaf] sm:$0x1] %vm2572, %v2489
      %2604 = vst.msk [vmem:[#allocation5 + $0xaf] sm:$0xfe] %vm2568, %v2491
      %2605 = vst.msk [vmem:[#allocation5 + $0xb7] sm:$0xff] %vm2570, %v2493
      %2606 = vst.msk [vmem:[#allocation5 + $0xbf] sm:$0x1] %vm2572, %v2495
      %2607 = vst.msk [vmem:[#allocation5 + $0xbf] sm:$0xfe] %vm2568, %v2497
      %2608 = vst.msk [vmem:[#allocation5 + $0xc7] sm:$0xff] %vm2570, %v2499
      %2609 = vst.msk [vmem:[#allocation5 + $0xcf] sm:$0x1] %vm2572, %v2501
      %2610 = vst.msk [vmem:[#allocation5 + $0xcf] sm:$0xfe] %vm2568, %v2503
      %2611 = vst.msk [vmem:[#allocation5 + $0xd7] sm:$0xff] %vm2570, %v2505
      %2612 = vst.msk [vmem:[#allocation5 + $0xdf] sm:$0x1] %vm2572, %v2507
      %2613 = vst.msk [vmem:[#allocation5 + $0xdf] sm:$0xfe] %vm2568, %v2509
      %2614 = vst.msk [vmem:[#allocation5 + $0xe7] sm:$0xff] %vm2570, %v2511
      %2615 = vst.msk [vmem:[#allocation5 + $0xef] sm:$0x1] %vm2572, %v2513
      %2616 = vst.msk [vmem:[#allocation5 + $0xef] sm:$0xfe] %vm2568, %v2515
      %2617 = vst.msk [vmem:[#allocation5 + $0xf7] sm:$0xff] %vm2570, %v2517
      %2618 = vst.msk [vmem:[#allocation5 + $0xff] sm:$0x1] %vm2572, %v2519
      %2619 = vrot.lane.b32.xlu0 %v2290, 16
      %v2620 = vpop.permute.xlu0 %2619
      %2621 = vrot.lane.b32.xlu0 %v2291, 16
      %v2622 = vpop.permute.xlu0 %2621
      %2623 = vrot.lane.b32.xlu0 %v2292, 16
      %v2624 = vpop.permute.xlu0 %2623
      %2625 = vrot.lane.b32.xlu0 %v2293, 16
      %v2626 = vpop.permute.xlu0 %2625
      %2627 = vrot.lane.b32.xlu0 %v2294, 16
      %v2628 = vpop.permute.xlu0 %2627
      %2629 = vrot.lane.b32.xlu0 %v2295, 16
      %v2630 = vpop.permute.xlu0 %2629
      %2631 = vrot.lane.b32.xlu0 %v2296, 16
      %v2632 = vpop.permute.xlu0 %2631
      %2633 = vrot.lane.b32.xlu0 %v2297, 16
      %v2634 = vpop.permute.xlu0 %2633
      %2635 = vrot.lane.b32.xlu0 %v2298, 16
      %v2636 = vpop.permute.xlu0 %2635
      %2637 = vrot.lane.b32.xlu0 %v2299, 16
      %v2638 = vpop.permute.xlu0 %2637
      %2639 = vrot.lane.b32.xlu0 %v2300, 16
      %v2640 = vpop.permute.xlu0 %2639
      %2641 = vrot.lane.b32.xlu0 %v2301, 16
      %v2642 = vpop.permute.xlu0 %2641
      %2643 = vrot.lane.b32.xlu0 %v2302, 16
      %v2644 = vpop.permute.xlu0 %2643
      %2645 = vrot.lane.b32.xlu0 %v2303, 16
      %v2646 = vpop.permute.xlu0 %2645
      %2647 = vrot.lane.b32.xlu0 %v2304, 16
      %v2648 = vpop.permute.xlu0 %2647
      %2649 = vrot.lane.b32.xlu0 %v2305, 16
      %v2650 = vpop.permute.xlu0 %2649
      %2651 = vrot.lane.b32.xlu0 %v2306, 16
      %v2652 = vpop.permute.xlu0 %2651
      %2653 = vrot.lane.b32.xlu0 %v2307, 16
      %v2654 = vpop.permute.xlu0 %2653
      %2655 = vrot.lane.b32.xlu0 %v2308, 16
      %v2656 = vpop.permute.xlu0 %2655
      %2657 = vrot.lane.b32.xlu0 %v2309, 16
      %v2658 = vpop.permute.xlu0 %2657
      %2659 = vrot.lane.b32.xlu0 %v2310, 16
      %v2660 = vpop.permute.xlu0 %2659
      %2661 = vrot.lane.b32.xlu0 %v2311, 16
      %v2662 = vpop.permute.xlu0 %2661
      %2663 = vrot.lane.b32.xlu0 %v2312, 16
      %v2664 = vpop.permute.xlu0 %2663
      %2665 = vrot.lane.b32.xlu0 %v2313, 16
      %v2666 = vpop.permute.xlu0 %2665
      %2667 = vrot.lane.b32.xlu0 %v2314, 16
      %v2668 = vpop.permute.xlu0 %2667
      %2669 = vrot.lane.b32.xlu0 %v2315, 16
      %v2670 = vpop.permute.xlu0 %2669
      %2671 = vrot.lane.b32.xlu0 %v2316, 16
      %v2672 = vpop.permute.xlu0 %2671
      %2673 = vrot.lane.b32.xlu0 %v2317, 16
      %v2674 = vpop.permute.xlu0 %2673
      %2675 = vrot.lane.b32.xlu0 %v2318, 16
      %v2676 = vpop.permute.xlu0 %2675
      %2677 = vrot.lane.b32.xlu0 %v2319, 16
      %v2678 = vpop.permute.xlu0 %2677
      %2679 = vrot.lane.b32.xlu0 %v2320, 16
      %v2680 = vpop.permute.xlu0 %2679
      %2681 = vrot.lane.b32.xlu0 %v2321, 16
      %v2682 = vpop.permute.xlu0 %2681
      %2683 = vrot.lane.b32.xlu0 %v2322, 16
      %v2684 = vpop.permute.xlu0 %2683
      %2685 = vrot.lane.b32.xlu0 %v2323, 16
      %v2686 = vpop.permute.xlu0 %2685
      %2687 = vrot.lane.b32.xlu0 %v2324, 16
      %v2688 = vpop.permute.xlu0 %2687
      %2689 = vrot.lane.b32.xlu0 %v2325, 16
      %v2690 = vpop.permute.xlu0 %2689
      %2691 = vrot.lane.b32.xlu0 %v2326, 16
      %v2692 = vpop.permute.xlu0 %2691
      %2693 = vrot.lane.b32.xlu0 %v2327, 16
      %v2694 = vpop.permute.xlu0 %2693
      %2695 = vrot.lane.b32.xlu0 %v2328, 16
      %v2696 = vpop.permute.xlu0 %2695
      %2697 = vrot.lane.b32.xlu0 %v2329, 16
      %v2698 = vpop.permute.xlu0 %2697
      %2699 = vrot.lane.b32.xlu0 %v2330, 16
      %v2700 = vpop.permute.xlu0 %2699
      %2701 = vrot.lane.b32.xlu0 %v2331, 16
      %v2702 = vpop.permute.xlu0 %2701
      %2703 = vrot.lane.b32.xlu0 %v2332, 16
      %v2704 = vpop.permute.xlu0 %2703
      %2705 = vrot.lane.b32.xlu0 %v2333, 16
      %v2706 = vpop.permute.xlu0 %2705
      %2707 = vrot.lane.b32.xlu0 %v2334, 16
      %v2708 = vpop.permute.xlu0 %2707
      %2709 = vrot.lane.b32.xlu0 %v2335, 16
      %v2710 = vpop.permute.xlu0 %2709
      %2711 = vrot.lane.b32.xlu0 %v2336, 16
      %v2712 = vpop.permute.xlu0 %2711
      %2713 = vrot.lane.b32.xlu0 %v2337, 16
      %v2714 = vpop.permute.xlu0 %2713
      %vm2763 = vcmask 195714
      %2764 = vst.msk [vmem:[#allocation5 - $0x2] sm:$0xfc] %vm2763, %v2620
      %vm2765 = vcmask 195712
      %2766 = vst.msk [vmem:[#allocation5 + $0x6] sm:$0xff] %vm2765, %v2622
      %vm2767 = vcmask 189568
      %2768 = vst.msk [vmem:[#allocation5 + $0xe] sm:$0x3] %vm2767, %v2624
      %2769 = vst.msk [vmem:[#allocation5 + $0xe] sm:$0xfc] %vm2763, %v2626
      %2770 = vst.msk [vmem:[#allocation5 + $0x16] sm:$0xff] %vm2765, %v2628
      %2771 = vst.msk [vmem:[#allocation5 + $0x1e] sm:$0x3] %vm2767, %v2630
      %2772 = vst.msk [vmem:[#allocation5 + $0x1e] sm:$0xfc] %vm2763, %v2632
      %2773 = vst.msk [vmem:[#allocation5 + $0x26] sm:$0xff] %vm2765, %v2634
      %2774 = vst.msk [vmem:[#allocation5 + $0x2e] sm:$0x3] %vm2767, %v2636
      %2775 = vst.msk [vmem:[#allocation5 + $0x2e] sm:$0xfc] %vm2763, %v2638
      %2776 = vst.msk [vmem:[#allocation5 + $0x36] sm:$0xff] %vm2765, %v2640
      %2777 = vst.msk [vmem:[#allocation5 + $0x3e] sm:$0x3] %vm2767, %v2642
      %2778 = vst.msk [vmem:[#allocation5 + $0x3e] sm:$0xfc] %vm2763, %v2644
      %2779 = vst.msk [vmem:[#allocation5 + $0x46] sm:$0xff] %vm2765, %v2646
      %2780 = vst.msk [vmem:[#allocation5 + $0x4e] sm:$0x3] %vm2767, %v2648
      %2781 = vst.msk [vmem:[#allocation5 + $0x4e] sm:$0xfc] %vm2763, %v2650
      %2782 = vst.msk [vmem:[#allocation5 + $0x56] sm:$0xff] %vm2765, %v2652
      %2783 = vst.msk [vmem:[#allocation5 + $0x5e] sm:$0x3] %vm2767, %v2654
      %2784 = vst.msk [vmem:[#allocation5 + $0x5e] sm:$0xfc] %vm2763, %v2656
      %2785 = vst.msk [vmem:[#allocation5 + $0x66] sm:$0xff] %vm2765, %v2658
      %2786 = vst.msk [vmem:[#allocation5 + $0x6e] sm:$0x3] %vm2767, %v2660
      %2787 = vst.msk [vmem:[#allocation5 + $0x6e] sm:$0xfc] %vm2763, %v2662
      %2788 = vst.msk [vmem:[#allocation5 + $0x76] sm:$0xff] %vm2765, %v2664
      %2789 = vst.msk [vmem:[#allocation5 + $0x7e] sm:$0x3] %vm2767, %v2666
      %2790 = vst.msk [vmem:[#allocation5 + $0x7e] sm:$0xfc] %vm2763, %v2668
      %2791 = vst.msk [vmem:[#allocation5 + $0x86] sm:$0xff] %vm2765, %v2670
      %2792 = vst.msk [vmem:[#allocation5 + $0x8e] sm:$0x3] %vm2767, %v2672
      %2793 = vst.msk [vmem:[#allocation5 + $0x8e] sm:$0xfc] %vm2763, %v2674
      %2794 = vst.msk [vmem:[#allocation5 + $0x96] sm:$0xff] %vm2765, %v2676
      %2795 = vst.msk [vmem:[#allocation5 + $0x9e] sm:$0x3] %vm2767, %v2678
      %2796 = vst.msk [vmem:[#allocation5 + $0x9e] sm:$0xfc] %vm2763, %v2680
      %2797 = vst.msk [vmem:[#allocation5 + $0xa6] sm:$0xff] %vm2765, %v2682
      %2798 = vst.msk [vmem:[#allocation5 + $0xae] sm:$0x3] %vm2767, %v2684
      %2799 = vst.msk [vmem:[#allocation5 + $0xae] sm:$0xfc] %vm2763, %v2686
      %2800 = vst.msk [vmem:[#allocation5 + $0xb6] sm:$0xff] %vm2765, %v2688
      %2801 = vst.msk [vmem:[#allocation5 + $0xbe] sm:$0x3] %vm2767, %v2690
      %2802 = vst.msk [vmem:[#allocation5 + $0xbe] sm:$0xfc] %vm2763, %v2692
      %2803 = vst.msk [vmem:[#allocation5 + $0xc6] sm:$0xff] %vm2765, %v2694
      %2804 = vst.msk [vmem:[#allocation5 + $0xce] sm:$0x3] %vm2767, %v2696
      %2805 = vst.msk [vmem:[#allocation5 + $0xce] sm:$0xfc] %vm2763, %v2698
      %2806 = vst.msk [vmem:[#allocation5 + $0xd6] sm:$0xff] %vm2765, %v2700
      %2807 = vst.msk [vmem:[#allocation5 + $0xde] sm:$0x3] %vm2767, %v2702
      %2808 = vst.msk [vmem:[#allocation5 + $0xde] sm:$0xfc] %vm2763, %v2704
      %2809 = vst.msk [vmem:[#allocation5 + $0xe6] sm:$0xff] %vm2765, %v2706
      %2810 = vst.msk [vmem:[#allocation5 + $0xee] sm:$0x3] %vm2767, %v2708
      %2811 = vst.msk [vmem:[#allocation5 + $0xee] sm:$0xfc] %vm2763, %v2710
      %2812 = vst.msk [vmem:[#allocation5 + $0xf6] sm:$0xff] %vm2765, %v2712
      %2813 = vst.msk [vmem:[#allocation5 + $0xfe] sm:$0x3] %vm2767, %v2714
      %2816 = vrot.lane.b32.xlu0 %v2293, 24
      %v2817 = vpop.permute.xlu0 %2816
      %2818 = vrot.lane.b32.xlu0 %v2294, 24
      %v2819 = vpop.permute.xlu0 %2818
      %2820 = vrot.lane.b32.xlu0 %v2296, 24
      %v2821 = vpop.permute.xlu0 %2820
      %2822 = vrot.lane.b32.xlu0 %v2297, 24
      %v2823 = vpop.permute.xlu0 %2822
      %2824 = vrot.lane.b32.xlu0 %v2299, 24
      %v2825 = vpop.permute.xlu0 %2824
      %2826 = vrot.lane.b32.xlu0 %v2300, 24
      %v2827 = vpop.permute.xlu0 %2826
      %2828 = vrot.lane.b32.xlu0 %v2302, 24
      %v2829 = vpop.permute.xlu0 %2828
      %2830 = vrot.lane.b32.xlu0 %v2303, 24
      %v2831 = vpop.permute.xlu0 %2830
      %2832 = vrot.lane.b32.xlu0 %v2305, 24
      %v2833 = vpop.permute.xlu0 %2832
      %2834 = vrot.lane.b32.xlu0 %v2306, 24
      %v2835 = vpop.permute.xlu0 %2834
      %2836 = vrot.lane.b32.xlu0 %v2308, 24
      %v2837 = vpop.permute.xlu0 %2836
      %2838 = vrot.lane.b32.xlu0 %v2309, 24
      %v2839 = vpop.permute.xlu0 %2838
      %2840 = vrot.lane.b32.xlu0 %v2311, 24
      %v2841 = vpop.permute.xlu0 %2840
      %2842 = vrot.lane.b32.xlu0 %v2312, 24
      %v2843 = vpop.permute.xlu0 %2842
      %2844 = vrot.lane.b32.xlu0 %v2314, 24
      %v2845 = vpop.permute.xlu0 %2844
      %2846 = vrot.lane.b32.xlu0 %v2315, 24
      %v2847 = vpop.permute.xlu0 %2846
      %2848 = vrot.lane.b32.xlu0 %v2317, 24
      %v2849 = vpop.permute.xlu0 %2848
      %2850 = vrot.lane.b32.xlu0 %v2318, 24
      %v2851 = vpop.permute.xlu0 %2850
      %2852 = vrot.lane.b32.xlu0 %v2320, 24
      %v2853 = vpop.permute.xlu0 %2852
      %2854 = vrot.lane.b32.xlu0 %v2321, 24
      %v2855 = vpop.permute.xlu0 %2854
      %2856 = vrot.lane.b32.xlu0 %v2323, 24
      %v2857 = vpop.permute.xlu0 %2856
      %2858 = vrot.lane.b32.xlu0 %v2324, 24
      %v2859 = vpop.permute.xlu0 %2858
      %2860 = vrot.lane.b32.xlu0 %v2326, 24
      %v2861 = vpop.permute.xlu0 %2860
      %2862 = vrot.lane.b32.xlu0 %v2327, 24
      %v2863 = vpop.permute.xlu0 %2862
      %2864 = vrot.lane.b32.xlu0 %v2329, 24
      %v2865 = vpop.permute.xlu0 %2864
      %2866 = vrot.lane.b32.xlu0 %v2330, 24
      %v2867 = vpop.permute.xlu0 %2866
      %2868 = vrot.lane.b32.xlu0 %v2332, 24
      %v2869 = vpop.permute.xlu0 %2868
      %2870 = vrot.lane.b32.xlu0 %v2333, 24
      %v2871 = vpop.permute.xlu0 %2870
      %2872 = vrot.lane.b32.xlu0 %v2335, 24
      %v2873 = vpop.permute.xlu0 %2872
      %2874 = vrot.lane.b32.xlu0 %v2336, 24
      %v2875 = vpop.permute.xlu0 %2874
      %2876 = vrot.lane.b32.xlu0 %v2338, 24
      %v2877 = vpop.permute.xlu0 %2876
      %2878 = vrot.lane.b32.xlu0 %v2339, 24
      %v2879 = vpop.permute.xlu0 %2878
      %vm2912 = vcmask 261312
      %2913 = vst.msk [vmem:[#allocation5] sm:$0xff] %vm2912, %v2817
      %2914 = vst.msk [vmem:[#allocation5 + $0x8] sm:$0xff] %vm2912, %v2819
      %2915 = vst.msk [vmem:[#allocation5 + $0x10] sm:$0xff] %vm2912, %v2821
      %2916 = vst.msk [vmem:[#allocation5 + $0x18] sm:$0xff] %vm2912, %v2823
      %2917 = vst.msk [vmem:[#allocation5 + $0x20] sm:$0xff] %vm2912, %v2825
      %2918 = vst.msk [vmem:[#allocation5 + $0x28] sm:$0xff] %vm2912, %v2827
      %2919 = vst.msk [vmem:[#allocation5 + $0x30] sm:$0xff] %vm2912, %v2829
      %2920 = vst.msk [vmem:[#allocation5 + $0x38] sm:$0xff] %vm2912, %v2831
      %2921 = vst.msk [vmem:[#allocation5 + $0x40] sm:$0xff] %vm2912, %v2833
      %2922 = vst.msk [vmem:[#allocation5 + $0x48] sm:$0xff] %vm2912, %v2835
      %2923 = vst.msk [vmem:[#allocation5 + $0x50] sm:$0xff] %vm2912, %v2837
      %2924 = vst.msk [vmem:[#allocation5 + $0x58] sm:$0xff] %vm2912, %v2839
      %2925 = vst.msk [vmem:[#allocation5 + $0x60] sm:$0xff] %vm2912, %v2841
      %2926 = vst.msk [vmem:[#allocation5 + $0x68] sm:$0xff] %vm2912, %v2843
      %2927 = vst.msk [vmem:[#allocation5 + $0x70] sm:$0xff] %vm2912, %v2845
      %2928 = vst.msk [vmem:[#allocation5 + $0x78] sm:$0xff] %vm2912, %v2847
      %2929 = vst.msk [vmem:[#allocation5 + $0x80] sm:$0xff] %vm2912, %v2849
      %2930 = vst.msk [vmem:[#allocation5 + $0x88] sm:$0xff] %vm2912, %v2851
      %2931 = vst.msk [vmem:[#allocation5 + $0x90] sm:$0xff] %vm2912, %v2853
      %2932 = vst.msk [vmem:[#allocation5 + $0x98] sm:$0xff] %vm2912, %v2855
      %2933 = vst.msk [vmem:[#allocation5 + $0xa0] sm:$0xff] %vm2912, %v2857
      %2934 = vst.msk [vmem:[#allocation5 + $0xa8] sm:$0xff] %vm2912, %v2859
      %2935 = vst.msk [vmem:[#allocation5 + $0xb0] sm:$0xff] %vm2912, %v2861
      %2936 = vst.msk [vmem:[#allocation5 + $0xb8] sm:$0xff] %vm2912, %v2863
      %2937 = vst.msk [vmem:[#allocation5 + $0xc0] sm:$0xff] %vm2912, %v2865
      %2938 = vst.msk [vmem:[#allocation5 + $0xc8] sm:$0xff] %vm2912, %v2867
      %2939 = vst.msk [vmem:[#allocation5 + $0xd0] sm:$0xff] %vm2912, %v2869
      %2940 = vst.msk [vmem:[#allocation5 + $0xd8] sm:$0xff] %vm2912, %v2871
      %2941 = vst.msk [vmem:[#allocation5 + $0xe0] sm:$0xff] %vm2912, %v2873
      %2942 = vst.msk [vmem:[#allocation5 + $0xe8] sm:$0xff] %vm2912, %v2875
      %2943 = vst.msk [vmem:[#allocation5 + $0xf0] sm:$0xff] %vm2912, %v2877
      %2944 = vst.msk [vmem:[#allocation5 + $0xf8] sm:$0xff] %vm2912, %v2879
      %2946 = vrot.lane.b32.xlu0 %v2293, 32
      %v2947 = vpop.permute.xlu0 %2946
      %2948 = vrot.lane.b32.xlu0 %v2294, 32
      %v2949 = vpop.permute.xlu0 %2948
      %2950 = vrot.lane.b32.xlu0 %v2295, 32
      %v2951 = vpop.permute.xlu0 %2950
      %2952 = vrot.lane.b32.xlu0 %v2296, 32
      %v2953 = vpop.permute.xlu0 %2952
      %2954 = vrot.lane.b32.xlu0 %v2297, 32
      %v2955 = vpop.permute.xlu0 %2954
      %2956 = vrot.lane.b32.xlu0 %v2298, 32
      %v2957 = vpop.permute.xlu0 %2956
      %2958 = vrot.lane.b32.xlu0 %v2299, 32
      %v2959 = vpop.permute.xlu0 %2958
      %2960 = vrot.lane.b32.xlu0 %v2300, 32
      %v2961 = vpop.permute.xlu0 %2960
      %2962 = vrot.lane.b32.xlu0 %v2301, 32
      %v2963 = vpop.permute.xlu0 %2962
      %2964 = vrot.lane.b32.xlu0 %v2302, 32
      %v2965 = vpop.permute.xlu0 %2964
      %2966 = vrot.lane.b32.xlu0 %v2303, 32
      %v2967 = vpop.permute.xlu0 %2966
      %2968 = vrot.lane.b32.xlu0 %v2304, 32
      %v2969 = vpop.permute.xlu0 %2968
      %2970 = vrot.lane.b32.xlu0 %v2305, 32
      %v2971 = vpop.permute.xlu0 %2970
      %2972 = vrot.lane.b32.xlu0 %v2306, 32
      %v2973 = vpop.permute.xlu0 %2972
      %2974 = vrot.lane.b32.xlu0 %v2307, 32
      %v2975 = vpop.permute.xlu0 %2974
      %2976 = vrot.lane.b32.xlu0 %v2308, 32
      %v2977 = vpop.permute.xlu0 %2976
      %2978 = vrot.lane.b32.xlu0 %v2309, 32
      %v2979 = vpop.permute.xlu0 %2978
      %2980 = vrot.lane.b32.xlu0 %v2310, 32
      %v2981 = vpop.permute.xlu0 %2980
      %2982 = vrot.lane.b32.xlu0 %v2311, 32
      %v2983 = vpop.permute.xlu0 %2982
      %2984 = vrot.lane.b32.xlu0 %v2312, 32
      %v2985 = vpop.permute.xlu0 %2984
      %2986 = vrot.lane.b32.xlu0 %v2313, 32
      %v2987 = vpop.permute.xlu0 %2986
      %2988 = vrot.lane.b32.xlu0 %v2314, 32
      %v2989 = vpop.permute.xlu0 %2988
      %2990 = vrot.lane.b32.xlu0 %v2315, 32
      %v2991 = vpop.permute.xlu0 %2990
      %2992 = vrot.lane.b32.xlu0 %v2316, 32
      %v2993 = vpop.permute.xlu0 %2992
      %2994 = vrot.lane.b32.xlu0 %v2317, 32
      %v2995 = vpop.permute.xlu0 %2994
      %2996 = vrot.lane.b32.xlu0 %v2318, 32
      %v2997 = vpop.permute.xlu0 %2996
      %2998 = vrot.lane.b32.xlu0 %v2319, 32
      %v2999 = vpop.permute.xlu0 %2998
      %3000 = vrot.lane.b32.xlu0 %v2320, 32
      %v3001 = vpop.permute.xlu0 %3000
      %3002 = vrot.lane.b32.xlu0 %v2321, 32
      %v3003 = vpop.permute.xlu0 %3002
      %3004 = vrot.lane.b32.xlu0 %v2322, 32
      %v3005 = vpop.permute.xlu0 %3004
      %3006 = vrot.lane.b32.xlu0 %v2323, 32
      %v3007 = vpop.permute.xlu0 %3006
      %3008 = vrot.lane.b32.xlu0 %v2324, 32
      %v3009 = vpop.permute.xlu0 %3008
      %3010 = vrot.lane.b32.xlu0 %v2325, 32
      %v3011 = vpop.permute.xlu0 %3010
      %3012 = vrot.lane.b32.xlu0 %v2326, 32
      %v3013 = vpop.permute.xlu0 %3012
      %3014 = vrot.lane.b32.xlu0 %v2327, 32
      %v3015 = vpop.permute.xlu0 %3014
      %3016 = vrot.lane.b32.xlu0 %v2328, 32
      %v3017 = vpop.permute.xlu0 %3016
      %3018 = vrot.lane.b32.xlu0 %v2329, 32
      %v3019 = vpop.permute.xlu0 %3018
      %3020 = vrot.lane.b32.xlu0 %v2330, 32
      %v3021 = vpop.permute.xlu0 %3020
      %3022 = vrot.lane.b32.xlu0 %v2331, 32
      %v3023 = vpop.permute.xlu0 %3022
      %3024 = vrot.lane.b32.xlu0 %v2332, 32
      %v3025 = vpop.permute.xlu0 %3024
      %3026 = vrot.lane.b32.xlu0 %v2333, 32
      %v3027 = vpop.permute.xlu0 %3026
      %3028 = vrot.lane.b32.xlu0 %v2334, 32
      %v3029 = vpop.permute.xlu0 %3028
      %3030 = vrot.lane.b32.xlu0 %v2335, 32
      %v3031 = vpop.permute.xlu0 %3030
      %3032 = vrot.lane.b32.xlu0 %v2336, 32
      %v3033 = vpop.permute.xlu0 %3032
      %3034 = vrot.lane.b32.xlu0 %v2337, 32
      %v3035 = vpop.permute.xlu0 %3034
      %3036 = vrot.lane.b32.xlu0 %v2338, 32
      %v3037 = vpop.permute.xlu0 %3036
      %3038 = vrot.lane.b32.xlu0 %v2339, 32
      %v3039 = vpop.permute.xlu0 %3038
      %3040 = vrot.lane.b32.xlu0 %v2340, 32
      %v3041 = vpop.permute.xlu0 %3040
      %vm3090 = vcmask 326913
      %3091 = vst.msk [vmem:[#allocation5 - $0x1] sm:$0xfe] %vm3090, %v2947
      %vm3092 = vcmask 326912
      %3093 = vst.msk [vmem:[#allocation5 + $0x7] sm:$0xff] %vm3092, %v2949
      %vm3094 = vcmask 319744
      %3095 = vst.msk [vmem:[#allocation5 + $0xf] sm:$0x1] %vm3094, %v2951
      %3096 = vst.msk [vmem:[#allocation5 + $0xf] sm:$0xfe] %vm3090, %v2953
      %3097 = vst.msk [vmem:[#allocation5 + $0x17] sm:$0xff] %vm3092, %v2955
      %3098 = vst.msk [vmem:[#allocation5 + $0x1f] sm:$0x1] %vm3094, %v2957
      %3099 = vst.msk [vmem:[#allocation5 + $0x1f] sm:$0xfe] %vm3090, %v2959
      %3100 = vst.msk [vmem:[#allocation5 + $0x27] sm:$0xff] %vm3092, %v2961
      %3101 = vst.msk [vmem:[#allocation5 + $0x2f] sm:$0x1] %vm3094, %v2963
      %3102 = vst.msk [vmem:[#allocation5 + $0x2f] sm:$0xfe] %vm3090, %v2965
      %3103 = vst.msk [vmem:[#allocation5 + $0x37] sm:$0xff] %vm3092, %v2967
      %3104 = vst.msk [vmem:[#allocation5 + $0x3f] sm:$0x1] %vm3094, %v2969
      %3105 = vst.msk [vmem:[#allocation5 + $0x3f] sm:$0xfe] %vm3090, %v2971
      %3106 = vst.msk [vmem:[#allocation5 + $0x47] sm:$0xff] %vm3092, %v2973
      %3107 = vst.msk [vmem:[#allocation5 + $0x4f] sm:$0x1] %vm3094, %v2975
      %3108 = vst.msk [vmem:[#allocation5 + $0x4f] sm:$0xfe] %vm3090, %v2977
      %3109 = vst.msk [vmem:[#allocation5 + $0x57] sm:$0xff] %vm3092, %v2979
      %3110 = vst.msk [vmem:[#allocation5 + $0x5f] sm:$0x1] %vm3094, %v2981
      %3111 = vst.msk [vmem:[#allocation5 + $0x5f] sm:$0xfe] %vm3090, %v2983
      %3112 = vst.msk [vmem:[#allocation5 + $0x67] sm:$0xff] %vm3092, %v2985
      %3113 = vst.msk [vmem:[#allocation5 + $0x6f] sm:$0x1] %vm3094, %v2987
      %3114 = vst.msk [vmem:[#allocation5 + $0x6f] sm:$0xfe] %vm3090, %v2989
      %3115 = vst.msk [vmem:[#allocation5 + $0x77] sm:$0xff] %vm3092, %v2991
      %3116 = vst.msk [vmem:[#allocation5 + $0x7f] sm:$0x1] %vm3094, %v2993
      %3117 = vst.msk [vmem:[#allocation5 + $0x7f] sm:$0xfe] %vm3090, %v2995
      %3118 = vst.msk [vmem:[#allocation5 + $0x87] sm:$0xff] %vm3092, %v2997
      %3119 = vst.msk [vmem:[#allocation5 + $0x8f] sm:$0x1] %vm3094, %v2999
      %3120 = vst.msk [vmem:[#allocation5 + $0x8f] sm:$0xfe] %vm3090, %v3001
      %3121 = vst.msk [vmem:[#allocation5 + $0x97] sm:$0xff] %vm3092, %v3003
      %3122 = vst.msk [vmem:[#allocation5 + $0x9f] sm:$0x1] %vm3094, %v3005
      %3123 = vst.msk [vmem:[#allocation5 + $0x9f] sm:$0xfe] %vm3090, %v3007
      %3124 = vst.msk [vmem:[#allocation5 + $0xa7] sm:$0xff] %vm3092, %v3009
      %3125 = vst.msk [vmem:[#allocation5 + $0xaf] sm:$0x1] %vm3094, %v3011
      %3126 = vst.msk [vmem:[#allocation5 + $0xaf] sm:$0xfe] %vm3090, %v3013
      %3127 = vst.msk [vmem:[#allocation5 + $0xb7] sm:$0xff] %vm3092, %v3015
      %3128 = vst.msk [vmem:[#allocation5 + $0xbf] sm:$0x1] %vm3094, %v3017
      %3129 = vst.msk [vmem:[#allocation5 + $0xbf] sm:$0xfe] %vm3090, %v3019
      %3130 = vst.msk [vmem:[#allocation5 + $0xc7] sm:$0xff] %vm3092, %v3021
      %3131 = vst.msk [vmem:[#allocation5 + $0xcf] sm:$0x1] %vm3094, %v3023
      %3132 = vst.msk [vmem:[#allocation5 + $0xcf] sm:$0xfe] %vm3090, %v3025
      %3133 = vst.msk [vmem:[#allocation5 + $0xd7] sm:$0xff] %vm3092, %v3027
      %3134 = vst.msk [vmem:[#allocation5 + $0xdf] sm:$0x1] %vm3094, %v3029
      %3135 = vst.msk [vmem:[#allocation5 + $0xdf] sm:$0xfe] %vm3090, %v3031
      %3136 = vst.msk [vmem:[#allocation5 + $0xe7] sm:$0xff] %vm3092, %v3033
      %3137 = vst.msk [vmem:[#allocation5 + $0xef] sm:$0x1] %vm3094, %v3035
      %3138 = vst.msk [vmem:[#allocation5 + $0xef] sm:$0xfe] %vm3090, %v3037
      %3139 = vst.msk [vmem:[#allocation5 + $0xf7] sm:$0xff] %vm3092, %v3039
      %3140 = vst.msk [vmem:[#allocation5 + $0xff] sm:$0x1] %vm3094, %v3041
      %3141 = vrot.lane.b32.xlu0 %v2293, 40
      %v3142 = vpop.permute.xlu0 %3141
      %3143 = vrot.lane.b32.xlu0 %v2294, 40
      %v3144 = vpop.permute.xlu0 %3143
      %3145 = vrot.lane.b32.xlu0 %v2295, 40
      %v3146 = vpop.permute.xlu0 %3145
      %3147 = vrot.lane.b32.xlu0 %v2296, 40
      %v3148 = vpop.permute.xlu0 %3147
      %3149 = vrot.lane.b32.xlu0 %v2297, 40
      %v3150 = vpop.permute.xlu0 %3149
      %3151 = vrot.lane.b32.xlu0 %v2298, 40
      %v3152 = vpop.permute.xlu0 %3151
      %3153 = vrot.lane.b32.xlu0 %v2299, 40
      %v3154 = vpop.permute.xlu0 %3153
      %3155 = vrot.lane.b32.xlu0 %v2300, 40
      %v3156 = vpop.permute.xlu0 %3155
      %3157 = vrot.lane.b32.xlu0 %v2301, 40
      %v3158 = vpop.permute.xlu0 %3157
      %3159 = vrot.lane.b32.xlu0 %v2302, 40
      %v3160 = vpop.permute.xlu0 %3159
      %3161 = vrot.lane.b32.xlu0 %v2303, 40
      %v3162 = vpop.permute.xlu0 %3161
      %3163 = vrot.lane.b32.xlu0 %v2304, 40
      %v3164 = vpop.permute.xlu0 %3163
      %3165 = vrot.lane.b32.xlu0 %v2305, 40
      %v3166 = vpop.permute.xlu0 %3165
      %3167 = vrot.lane.b32.xlu0 %v2306, 40
      %v3168 = vpop.permute.xlu0 %3167
      %3169 = vrot.lane.b32.xlu0 %v2307, 40
      %v3170 = vpop.permute.xlu0 %3169
      %3171 = vrot.lane.b32.xlu0 %v2308, 40
      %v3172 = vpop.permute.xlu0 %3171
      %3173 = vrot.lane.b32.xlu0 %v2309, 40
      %v3174 = vpop.permute.xlu0 %3173
      %3175 = vrot.lane.b32.xlu0 %v2310, 40
      %v3176 = vpop.permute.xlu0 %3175
      %3177 = vrot.lane.b32.xlu0 %v2311, 40
      %v3178 = vpop.permute.xlu0 %3177
      %3179 = vrot.lane.b32.xlu0 %v2312, 40
      %v3180 = vpop.permute.xlu0 %3179
      %3181 = vrot.lane.b32.xlu0 %v2313, 40
      %v3182 = vpop.permute.xlu0 %3181
      %3183 = vrot.lane.b32.xlu0 %v2314, 40
      %v3184 = vpop.permute.xlu0 %3183
      %3185 = vrot.lane.b32.xlu0 %v2315, 40
      %v3186 = vpop.permute.xlu0 %3185
      %3187 = vrot.lane.b32.xlu0 %v2316, 40
      %v3188 = vpop.permute.xlu0 %3187
      %3189 = vrot.lane.b32.xlu0 %v2317, 40
      %v3190 = vpop.permute.xlu0 %3189
      %3191 = vrot.lane.b32.xlu0 %v2318, 40
      %v3192 = vpop.permute.xlu0 %3191
      %3193 = vrot.lane.b32.xlu0 %v2319, 40
      %v3194 = vpop.permute.xlu0 %3193
      %3195 = vrot.lane.b32.xlu0 %v2320, 40
      %v3196 = vpop.permute.xlu0 %3195
      %3197 = vrot.lane.b32.xlu0 %v2321, 40
      %v3198 = vpop.permute.xlu0 %3197
      %3199 = vrot.lane.b32.xlu0 %v2322, 40
      %v3200 = vpop.permute.xlu0 %3199
      %3201 = vrot.lane.b32.xlu0 %v2323, 40
      %v3202 = vpop.permute.xlu0 %3201
      %3203 = vrot.lane.b32.xlu0 %v2324, 40
      %v3204 = vpop.permute.xlu0 %3203
      %3205 = vrot.lane.b32.xlu0 %v2325, 40
      %v3206 = vpop.permute.xlu0 %3205
      %3207 = vrot.lane.b32.xlu0 %v2326, 40
      %v3208 = vpop.permute.xlu0 %3207
      %3209 = vrot.lane.b32.xlu0 %v2327, 40
      %v3210 = vpop.permute.xlu0 %3209
      %3211 = vrot.lane.b32.xlu0 %v2328, 40
      %v3212 = vpop.permute.xlu0 %3211
      %3213 = vrot.lane.b32.xlu0 %v2329, 40
      %v3214 = vpop.permute.xlu0 %3213
      %3215 = vrot.lane.b32.xlu0 %v2330, 40
      %v3216 = vpop.permute.xlu0 %3215
      %3217 = vrot.lane.b32.xlu0 %v2331, 40
      %v3218 = vpop.permute.xlu0 %3217
      %3219 = vrot.lane.b32.xlu0 %v2332, 40
      %v3220 = vpop.permute.xlu0 %3219
      %3221 = vrot.lane.b32.xlu0 %v2333, 40
      %v3222 = vpop.permute.xlu0 %3221
      %3223 = vrot.lane.b32.xlu0 %v2334, 40
      %v3224 = vpop.permute.xlu0 %3223
      %3225 = vrot.lane.b32.xlu0 %v2335, 40
      %v3226 = vpop.permute.xlu0 %3225
      %3227 = vrot.lane.b32.xlu0 %v2336, 40
      %v3228 = vpop.permute.xlu0 %3227
      %3229 = vrot.lane.b32.xlu0 %v2337, 40
      %v3230 = vpop.permute.xlu0 %3229
      %3231 = vrot.lane.b32.xlu0 %v2338, 40
      %v3232 = vpop.permute.xlu0 %3231
      %3233 = vrot.lane.b32.xlu0 %v2339, 40
      %v3234 = vpop.permute.xlu0 %3233
      %3235 = vrot.lane.b32.xlu0 %v2340, 40
      %v3236 = vpop.permute.xlu0 %3235
      %vm3285 = vcmask 392514
      %3286 = vst.msk [vmem:[#allocation5 - $0x2] sm:$0xfc] %vm3285, %v3142
      %vm3287 = vcmask 392512
      %3288 = vst.msk [vmem:[#allocation5 + $0x6] sm:$0xff] %vm3287, %v3144
      %vm3289 = vcmask 386368
      %3290 = vst.msk [vmem:[#allocation5 + $0xe] sm:$0x3] %vm3289, %v3146
      %3291 = vst.msk [vmem:[#allocation5 + $0xe] sm:$0xfc] %vm3285, %v3148
      %3292 = vst.msk [vmem:[#allocation5 + $0x16] sm:$0xff] %vm3287, %v3150
      %3293 = vst.msk [vmem:[#allocation5 + $0x1e] sm:$0x3] %vm3289, %v3152
      %3294 = vst.msk [vmem:[#allocation5 + $0x1e] sm:$0xfc] %vm3285, %v3154
      %3295 = vst.msk [vmem:[#allocation5 + $0x26] sm:$0xff] %vm3287, %v3156
      %3296 = vst.msk [vmem:[#allocation5 + $0x2e] sm:$0x3] %vm3289, %v3158
      %3297 = vst.msk [vmem:[#allocation5 + $0x2e] sm:$0xfc] %vm3285, %v3160
      %3298 = vst.msk [vmem:[#allocation5 + $0x36] sm:$0xff] %vm3287, %v3162
      %3299 = vst.msk [vmem:[#allocation5 + $0x3e] sm:$0x3] %vm3289, %v3164
      %3300 = vst.msk [vmem:[#allocation5 + $0x3e] sm:$0xfc] %vm3285, %v3166
      %3301 = vst.msk [vmem:[#allocation5 + $0x46] sm:$0xff] %vm3287, %v3168
      %3302 = vst.msk [vmem:[#allocation5 + $0x4e] sm:$0x3] %vm3289, %v3170
      %3303 = vst.msk [vmem:[#allocation5 + $0x4e] sm:$0xfc] %vm3285, %v3172
      %3304 = vst.msk [vmem:[#allocation5 + $0x56] sm:$0xff] %vm3287, %v3174
      %3305 = vst.msk [vmem:[#allocation5 + $0x5e] sm:$0x3] %vm3289, %v3176
      %3306 = vst.msk [vmem:[#allocation5 + $0x5e] sm:$0xfc] %vm3285, %v3178
      %3307 = vst.msk [vmem:[#allocation5 + $0x66] sm:$0xff] %vm3287, %v3180
      %3308 = vst.msk [vmem:[#allocation5 + $0x6e] sm:$0x3] %vm3289, %v3182
      %3309 = vst.msk [vmem:[#allocation5 + $0x6e] sm:$0xfc] %vm3285, %v3184
      %3310 = vst.msk [vmem:[#allocation5 + $0x76] sm:$0xff] %vm3287, %v3186
      %3311 = vst.msk [vmem:[#allocation5 + $0x7e] sm:$0x3] %vm3289, %v3188
      %3312 = vst.msk [vmem:[#allocation5 + $0x7e] sm:$0xfc] %vm3285, %v3190
      %3313 = vst.msk [vmem:[#allocation5 + $0x86] sm:$0xff] %vm3287, %v3192
      %3314 = vst.msk [vmem:[#allocation5 + $0x8e] sm:$0x3] %vm3289, %v3194
      %3315 = vst.msk [vmem:[#allocation5 + $0x8e] sm:$0xfc] %vm3285, %v3196
      %3316 = vst.msk [vmem:[#allocation5 + $0x96] sm:$0xff] %vm3287, %v3198
      %3317 = vst.msk [vmem:[#allocation5 + $0x9e] sm:$0x3] %vm3289, %v3200
      %3318 = vst.msk [vmem:[#allocation5 + $0x9e] sm:$0xfc] %vm3285, %v3202
      %3319 = vst.msk [vmem:[#allocation5 + $0xa6] sm:$0xff] %vm3287, %v3204
      %3320 = vst.msk [vmem:[#allocation5 + $0xae] sm:$0x3] %vm3289, %v3206
      %3321 = vst.msk [vmem:[#allocation5 + $0xae] sm:$0xfc] %vm3285, %v3208
      %3322 = vst.msk [vmem:[#allocation5 + $0xb6] sm:$0xff] %vm3287, %v3210
      %3323 = vst.msk [vmem:[#allocation5 + $0xbe] sm:$0x3] %vm3289, %v3212
      %3324 = vst.msk [vmem:[#allocation5 + $0xbe] sm:$0xfc] %vm3285, %v3214
      %3325 = vst.msk [vmem:[#allocation5 + $0xc6] sm:$0xff] %vm3287, %v3216
      %3326 = vst.msk [vmem:[#allocation5 + $0xce] sm:$0x3] %vm3289, %v3218
      %3327 = vst.msk [vmem:[#allocation5 + $0xce] sm:$0xfc] %vm3285, %v3220
      %3328 = vst.msk [vmem:[#allocation5 + $0xd6] sm:$0xff] %vm3287, %v3222
      %3329 = vst.msk [vmem:[#allocation5 + $0xde] sm:$0x3] %vm3289, %v3224
      %3330 = vst.msk [vmem:[#allocation5 + $0xde] sm:$0xfc] %vm3285, %v3226
      %3331 = vst.msk [vmem:[#allocation5 + $0xe6] sm:$0xff] %vm3287, %v3228
      %3332 = vst.msk [vmem:[#allocation5 + $0xee] sm:$0x3] %vm3289, %v3230
      %3333 = vst.msk [vmem:[#allocation5 + $0xee] sm:$0xfc] %vm3285, %v3232
      %3334 = vst.msk [vmem:[#allocation5 + $0xf6] sm:$0xff] %vm3287, %v3234
      %3335 = vst.msk [vmem:[#allocation5 + $0xfe] sm:$0x3] %vm3289, %v3236
      %3338 = vrot.lane.b32.xlu0 %v2296, 48
      %v3339 = vpop.permute.xlu0 %3338
      %3340 = vrot.lane.b32.xlu0 %v2297, 48
      %v3341 = vpop.permute.xlu0 %3340
      %3342 = vrot.lane.b32.xlu0 %v2299, 48
      %v3343 = vpop.permute.xlu0 %3342
      %3344 = vrot.lane.b32.xlu0 %v2300, 48
      %v3345 = vpop.permute.xlu0 %3344
      %3346 = vrot.lane.b32.xlu0 %v2302, 48
      %v3347 = vpop.permute.xlu0 %3346
      %3348 = vrot.lane.b32.xlu0 %v2303, 48
      %v3349 = vpop.permute.xlu0 %3348
      %3350 = vrot.lane.b32.xlu0 %v2305, 48
      %v3351 = vpop.permute.xlu0 %3350
      %3352 = vrot.lane.b32.xlu0 %v2306, 48
      %v3353 = vpop.permute.xlu0 %3352
      %3354 = vrot.lane.b32.xlu0 %v2308, 48
      %v3355 = vpop.permute.xlu0 %3354
      %3356 = vrot.lane.b32.xlu0 %v2309, 48
      %v3357 = vpop.permute.xlu0 %3356
      %3358 = vrot.lane.b32.xlu0 %v2311, 48
      %v3359 = vpop.permute.xlu0 %3358
      %3360 = vrot.lane.b32.xlu0 %v2312, 48
      %v3361 = vpop.permute.xlu0 %3360
      %3362 = vrot.lane.b32.xlu0 %v2314, 48
      %v3363 = vpop.permute.xlu0 %3362
      %3364 = vrot.lane.b32.xlu0 %v2315, 48
      %v3365 = vpop.permute.xlu0 %3364
      %3366 = vrot.lane.b32.xlu0 %v2317, 48
      %v3367 = vpop.permute.xlu0 %3366
      %3368 = vrot.lane.b32.xlu0 %v2318, 48
      %v3369 = vpop.permute.xlu0 %3368
      %3370 = vrot.lane.b32.xlu0 %v2320, 48
      %v3371 = vpop.permute.xlu0 %3370
      %3372 = vrot.lane.b32.xlu0 %v2321, 48
      %v3373 = vpop.permute.xlu0 %3372
      %3374 = vrot.lane.b32.xlu0 %v2323, 48
      %v3375 = vpop.permute.xlu0 %3374
      %3376 = vrot.lane.b32.xlu0 %v2324, 48
      %v3377 = vpop.permute.xlu0 %3376
      %3378 = vrot.lane.b32.xlu0 %v2326, 48
      %v3379 = vpop.permute.xlu0 %3378
      %3380 = vrot.lane.b32.xlu0 %v2327, 48
      %v3381 = vpop.permute.xlu0 %3380
      %3382 = vrot.lane.b32.xlu0 %v2329, 48
      %v3383 = vpop.permute.xlu0 %3382
      %3384 = vrot.lane.b32.xlu0 %v2330, 48
      %v3385 = vpop.permute.xlu0 %3384
      %3386 = vrot.lane.b32.xlu0 %v2332, 48
      %v3387 = vpop.permute.xlu0 %3386
      %3388 = vrot.lane.b32.xlu0 %v2333, 48
      %v3389 = vpop.permute.xlu0 %3388
      %3390 = vrot.lane.b32.xlu0 %v2335, 48
      %v3391 = vpop.permute.xlu0 %3390
      %3392 = vrot.lane.b32.xlu0 %v2336, 48
      %v3393 = vpop.permute.xlu0 %3392
      %3394 = vrot.lane.b32.xlu0 %v2338, 48
      %v3395 = vpop.permute.xlu0 %3394
      %3396 = vrot.lane.b32.xlu0 %v2339, 48
      %v3397 = vpop.permute.xlu0 %3396
      %3398 = vrot.lane.b32.xlu0 %v2341, 48
      %v3399 = vpop.permute.xlu0 %3398
      %3400 = vrot.lane.b32.xlu0 %v2342, 48
      %v3401 = vpop.permute.xlu0 %3400
      %vm3434 = vcmask 458112
      %3435 = vst.msk [vmem:[#allocation5] sm:$0xff] %vm3434, %v3339
      %3436 = vst.msk [vmem:[#allocation5 + $0x8] sm:$0xff] %vm3434, %v3341
      %3437 = vst.msk [vmem:[#allocation5 + $0x10] sm:$0xff] %vm3434, %v3343
      %3438 = vst.msk [vmem:[#allocation5 + $0x18] sm:$0xff] %vm3434, %v3345
      %3439 = vst.msk [vmem:[#allocation5 + $0x20] sm:$0xff] %vm3434, %v3347
      %3440 = vst.msk [vmem:[#allocation5 + $0x28] sm:$0xff] %vm3434, %v3349
      %3441 = vst.msk [vmem:[#allocation5 + $0x30] sm:$0xff] %vm3434, %v3351
      %3442 = vst.msk [vmem:[#allocation5 + $0x38] sm:$0xff] %vm3434, %v3353
      %3443 = vst.msk [vmem:[#allocation5 + $0x40] sm:$0xff] %vm3434, %v3355
      %3444 = vst.msk [vmem:[#allocation5 + $0x48] sm:$0xff] %vm3434, %v3357
      %3445 = vst.msk [vmem:[#allocation5 + $0x50] sm:$0xff] %vm3434, %v3359
      %3446 = vst.msk [vmem:[#allocation5 + $0x58] sm:$0xff] %vm3434, %v3361
      %3447 = vst.msk [vmem:[#allocation5 + $0x60] sm:$0xff] %vm3434, %v3363
      %3448 = vst.msk [vmem:[#allocation5 + $0x68] sm:$0xff] %vm3434, %v3365
      %3449 = vst.msk [vmem:[#allocation5 + $0x70] sm:$0xff] %vm3434, %v3367
      %3450 = vst.msk [vmem:[#allocation5 + $0x78] sm:$0xff] %vm3434, %v3369
      %3451 = vst.msk [vmem:[#allocation5 + $0x80] sm:$0xff] %vm3434, %v3371
      %3452 = vst.msk [vmem:[#allocation5 + $0x88] sm:$0xff] %vm3434, %v3373
      %3453 = vst.msk [vmem:[#allocation5 + $0x90] sm:$0xff] %vm3434, %v3375
      %3454 = vst.msk [vmem:[#allocation5 + $0x98] sm:$0xff] %vm3434, %v3377
      %3455 = vst.msk [vmem:[#allocation5 + $0xa0] sm:$0xff] %vm3434, %v3379
      %3456 = vst.msk [vmem:[#allocation5 + $0xa8] sm:$0xff] %vm3434, %v3381
      %3457 = vst.msk [vmem:[#allocation5 + $0xb0] sm:$0xff] %vm3434, %v3383
      %3458 = vst.msk [vmem:[#allocation5 + $0xb8] sm:$0xff] %vm3434, %v3385
      %3459 = vst.msk [vmem:[#allocation5 + $0xc0] sm:$0xff] %vm3434, %v3387
      %3460 = vst.msk [vmem:[#allocation5 + $0xc8] sm:$0xff] %vm3434, %v3389
      %3461 = vst.msk [vmem:[#allocation5 + $0xd0] sm:$0xff] %vm3434, %v3391
      %3462 = vst.msk [vmem:[#allocation5 + $0xd8] sm:$0xff] %vm3434, %v3393
      %3463 = vst.msk [vmem:[#allocation5 + $0xe0] sm:$0xff] %vm3434, %v3395
      %3464 = vst.msk [vmem:[#allocation5 + $0xe8] sm:$0xff] %vm3434, %v3397
      %3465 = vst.msk [vmem:[#allocation5 + $0xf0] sm:$0xff] %vm3434, %v3399
      %3466 = vst.msk [vmem:[#allocation5 + $0xf8] sm:$0xff] %vm3434, %v3401
      %3468 = vrot.lane.b32.xlu0 %v2296, 56
      %v3469 = vpop.permute.xlu0 %3468
      %3470 = vrot.lane.b32.xlu0 %v2297, 56
      %v3471 = vpop.permute.xlu0 %3470
      %3472 = vrot.lane.b32.xlu0 %v2298, 56
      %v3473 = vpop.permute.xlu0 %3472
      %3474 = vrot.lane.b32.xlu0 %v2299, 56
      %v3475 = vpop.permute.xlu0 %3474
      %3476 = vrot.lane.b32.xlu0 %v2300, 56
      %v3477 = vpop.permute.xlu0 %3476
      %3478 = vrot.lane.b32.xlu0 %v2301, 56
      %v3479 = vpop.permute.xlu0 %3478
      %3480 = vrot.lane.b32.xlu0 %v2302, 56
      %v3481 = vpop.permute.xlu0 %3480
      %3482 = vrot.lane.b32.xlu0 %v2303, 56
      %v3483 = vpop.permute.xlu0 %3482
      %3484 = vrot.lane.b32.xlu0 %v2304, 56
      %v3485 = vpop.permute.xlu0 %3484
      %3486 = vrot.lane.b32.xlu0 %v2305, 56
      %v3487 = vpop.permute.xlu0 %3486
      %3488 = vrot.lane.b32.xlu0 %v2306, 56
      %v3489 = vpop.permute.xlu0 %3488
      %3490 = vrot.lane.b32.xlu0 %v2307, 56
      %v3491 = vpop.permute.xlu0 %3490
      %3492 = vrot.lane.b32.xlu0 %v2308, 56
      %v3493 = vpop.permute.xlu0 %3492
      %3494 = vrot.lane.b32.xlu0 %v2309, 56
      %v3495 = vpop.permute.xlu0 %3494
      %3496 = vrot.lane.b32.xlu0 %v2310, 56
      %v3497 = vpop.permute.xlu0 %3496
      %3498 = vrot.lane.b32.xlu0 %v2311, 56
      %v3499 = vpop.permute.xlu0 %3498
      %3500 = vrot.lane.b32.xlu0 %v2312, 56
      %v3501 = vpop.permute.xlu0 %3500
      %3502 = vrot.lane.b32.xlu0 %v2313, 56
      %v3503 = vpop.permute.xlu0 %3502
      %3504 = vrot.lane.b32.xlu0 %v2314, 56
      %v3505 = vpop.permute.xlu0 %3504
      %3506 = vrot.lane.b32.xlu0 %v2315, 56
      %v3507 = vpop.permute.xlu0 %3506
      %3508 = vrot.lane.b32.xlu0 %v2316, 56
      %v3509 = vpop.permute.xlu0 %3508
      %3510 = vrot.lane.b32.xlu0 %v2317, 56
      %v3511 = vpop.permute.xlu0 %3510
      %3512 = vrot.lane.b32.xlu0 %v2318, 56
      %v3513 = vpop.permute.xlu0 %3512
      %3514 = vrot.lane.b32.xlu0 %v2319, 56
      %v3515 = vpop.permute.xlu0 %3514
      %3516 = vrot.lane.b32.xlu0 %v2320, 56
      %v3517 = vpop.permute.xlu0 %3516
      %3518 = vrot.lane.b32.xlu0 %v2321, 56
      %v3519 = vpop.permute.xlu0 %3518
      %3520 = vrot.lane.b32.xlu0 %v2322, 56
      %v3521 = vpop.permute.xlu0 %3520
      %3522 = vrot.lane.b32.xlu0 %v2323, 56
      %v3523 = vpop.permute.xlu0 %3522
      %3524 = vrot.lane.b32.xlu0 %v2324, 56
      %v3525 = vpop.permute.xlu0 %3524
      %3526 = vrot.lane.b32.xlu0 %v2325, 56
      %v3527 = vpop.permute.xlu0 %3526
      %3528 = vrot.lane.b32.xlu0 %v2326, 56
      %v3529 = vpop.permute.xlu0 %3528
      %3530 = vrot.lane.b32.xlu0 %v2327, 56
      %v3531 = vpop.permute.xlu0 %3530
      %3532 = vrot.lane.b32.xlu0 %v2328, 56
      %v3533 = vpop.permute.xlu0 %3532
      %3534 = vrot.lane.b32.xlu0 %v2329, 56
      %v3535 = vpop.permute.xlu0 %3534
      %3536 = vrot.lane.b32.xlu0 %v2330, 56
      %v3537 = vpop.permute.xlu0 %3536
      %3538 = vrot.lane.b32.xlu0 %v2331, 56
      %v3539 = vpop.permute.xlu0 %3538
      %3540 = vrot.lane.b32.xlu0 %v2332, 56
      %v3541 = vpop.permute.xlu0 %3540
      %3542 = vrot.lane.b32.xlu0 %v2333, 56
      %v3543 = vpop.permute.xlu0 %3542
      %3544 = vrot.lane.b32.xlu0 %v2334, 56
      %v3545 = vpop.permute.xlu0 %3544
      %3546 = vrot.lane.b32.xlu0 %v2335, 56
      %v3547 = vpop.permute.xlu0 %3546
      %3548 = vrot.lane.b32.xlu0 %v2336, 56
      %v3549 = vpop.permute.xlu0 %3548
      %3550 = vrot.lane.b32.xlu0 %v2337, 56
      %v3551 = vpop.permute.xlu0 %3550
      %3552 = vrot.lane.b32.xlu0 %v2338, 56
      %v3553 = vpop.permute.xlu0 %3552
      %3554 = vrot.lane.b32.xlu0 %v2339, 56
      %v3555 = vpop.permute.xlu0 %3554
      %3556 = vrot.lane.b32.xlu0 %v2340, 56
      %v3557 = vpop.permute.xlu0 %3556
      %3558 = vrot.lane.b32.xlu0 %v2341, 56
      %v3559 = vpop.permute.xlu0 %3558
      %3560 = vrot.lane.b32.xlu0 %v2342, 56
      %v3561 = vpop.permute.xlu0 %3560
      %3562 = vrot.lane.b32.xlu0 %v2343, 56
      %v3563 = vpop.permute.xlu0 %3562
      %vm3612 = vcmask 523713
      %3613 = vst.msk [vmem:[#allocation5 - $0x1] sm:$0xfe] %vm3612, %v3469
      %vm3614 = vcmask 523712
      %3615 = vst.msk [vmem:[#allocation5 + $0x7] sm:$0xff] %vm3614, %v3471
      %vm3616 = vcmask 516544
      %3617 = vst.msk [vmem:[#allocation5 + $0xf] sm:$0x1] %vm3616, %v3473
      %3618 = vst.msk [vmem:[#allocation5 + $0xf] sm:$0xfe] %vm3612, %v3475
      %3619 = vst.msk [vmem:[#allocation5 + $0x17] sm:$0xff] %vm3614, %v3477
      %3620 = vst.msk [vmem:[#allocation5 + $0x1f] sm:$0x1] %vm3616, %v3479
      %3621 = vst.msk [vmem:[#allocation5 + $0x1f] sm:$0xfe] %vm3612, %v3481
      %3622 = vst.msk [vmem:[#allocation5 + $0x27] sm:$0xff] %vm3614, %v3483
      %3623 = vst.msk [vmem:[#allocation5 + $0x2f] sm:$0x1] %vm3616, %v3485
      %3624 = vst.msk [vmem:[#allocation5 + $0x2f] sm:$0xfe] %vm3612, %v3487
      %3625 = vst.msk [vmem:[#allocation5 + $0x37] sm:$0xff] %vm3614, %v3489
      %3626 = vst.msk [vmem:[#allocation5 + $0x3f] sm:$0x1] %vm3616, %v3491
      %3627 = vst.msk [vmem:[#allocation5 + $0x3f] sm:$0xfe] %vm3612, %v3493
      %3628 = vst.msk [vmem:[#allocation5 + $0x47] sm:$0xff] %vm3614, %v3495
      %3629 = vst.msk [vmem:[#allocation5 + $0x4f] sm:$0x1] %vm3616, %v3497
      %3630 = vst.msk [vmem:[#allocation5 + $0x4f] sm:$0xfe] %vm3612, %v3499
      %3631 = vst.msk [vmem:[#allocation5 + $0x57] sm:$0xff] %vm3614, %v3501
      %3632 = vst.msk [vmem:[#allocation5 + $0x5f] sm:$0x1] %vm3616, %v3503
      %3633 = vst.msk [vmem:[#allocation5 + $0x5f] sm:$0xfe] %vm3612, %v3505
      %3634 = vst.msk [vmem:[#allocation5 + $0x67] sm:$0xff] %vm3614, %v3507
      %3635 = vst.msk [vmem:[#allocation5 + $0x6f] sm:$0x1] %vm3616, %v3509
      %3636 = vst.msk [vmem:[#allocation5 + $0x6f] sm:$0xfe] %vm3612, %v3511
      %3637 = vst.msk [vmem:[#allocation5 + $0x77] sm:$0xff] %vm3614, %v3513
      %3638 = vst.msk [vmem:[#allocation5 + $0x7f] sm:$0x1] %vm3616, %v3515
      %3639 = vst.msk [vmem:[#allocation5 + $0x7f] sm:$0xfe] %vm3612, %v3517
      %3640 = vst.msk [vmem:[#allocation5 + $0x87] sm:$0xff] %vm3614, %v3519
      %3641 = vst.msk [vmem:[#allocation5 + $0x8f] sm:$0x1] %vm3616, %v3521
      %3642 = vst.msk [vmem:[#allocation5 + $0x8f] sm:$0xfe] %vm3612, %v3523
      %3643 = vst.msk [vmem:[#allocation5 + $0x97] sm:$0xff] %vm3614, %v3525
      %3644 = vst.msk [vmem:[#allocation5 + $0x9f] sm:$0x1] %vm3616, %v3527
      %3645 = vst.msk [vmem:[#allocation5 + $0x9f] sm:$0xfe] %vm3612, %v3529
      %3646 = vst.msk [vmem:[#allocation5 + $0xa7] sm:$0xff] %vm3614, %v3531
      %3647 = vst.msk [vmem:[#allocation5 + $0xaf] sm:$0x1] %vm3616, %v3533
      %3648 = vst.msk [vmem:[#allocation5 + $0xaf] sm:$0xfe] %vm3612, %v3535
      %3649 = vst.msk [vmem:[#allocation5 + $0xb7] sm:$0xff] %vm3614, %v3537
      %3650 = vst.msk [vmem:[#allocation5 + $0xbf] sm:$0x1] %vm3616, %v3539
      %3651 = vst.msk [vmem:[#allocation5 + $0xbf] sm:$0xfe] %vm3612, %v3541
      %3652 = vst.msk [vmem:[#allocation5 + $0xc7] sm:$0xff] %vm3614, %v3543
      %3653 = vst.msk [vmem:[#allocation5 + $0xcf] sm:$0x1] %vm3616, %v3545
      %3654 = vst.msk [vmem:[#allocation5 + $0xcf] sm:$0xfe] %vm3612, %v3547
      %3655 = vst.msk [vmem:[#allocation5 + $0xd7] sm:$0xff] %vm3614, %v3549
      %3656 = vst.msk [vmem:[#allocation5 + $0xdf] sm:$0x1] %vm3616, %v3551
      %3657 = vst.msk [vmem:[#allocation5 + $0xdf] sm:$0xfe] %vm3612, %v3553
      %3658 = vst.msk [vmem:[#allocation5 + $0xe7] sm:$0xff] %vm3614, %v3555
      %3659 = vst.msk [vmem:[#allocation5 + $0xef] sm:$0x1] %vm3616, %v3557
      %3660 = vst.msk [vmem:[#allocation5 + $0xef] sm:$0xfe] %vm3612, %v3559
      %3661 = vst.msk [vmem:[#allocation5 + $0xf7] sm:$0xff] %vm3614, %v3561
      %3662 = vst.msk [vmem:[#allocation5 + $0xff] sm:$0x1] %vm3616, %v3563
      %3663 = vrot.lane.b32.xlu0 %v2296, 64
      %v3664 = vpop.permute.xlu0 %3663
      %3665 = vrot.lane.b32.xlu0 %v2297, 64
      %v3666 = vpop.permute.xlu0 %3665
      %3667 = vrot.lane.b32.xlu0 %v2298, 64
      %v3668 = vpop.permute.xlu0 %3667
      %3669 = vrot.lane.b32.xlu0 %v2299, 64
      %v3670 = vpop.permute.xlu0 %3669
      %3671 = vrot.lane.b32.xlu0 %v2300, 64
      %v3672 = vpop.permute.xlu0 %3671
      %3673 = vrot.lane.b32.xlu0 %v2301, 64
      %v3674 = vpop.permute.xlu0 %3673
      %3675 = vrot.lane.b32.xlu0 %v2302, 64
      %v3676 = vpop.permute.xlu0 %3675
      %3677 = vrot.lane.b32.xlu0 %v2303, 64
      %v3678 = vpop.permute.xlu0 %3677
      %3679 = vrot.lane.b32.xlu0 %v2304, 64
      %v3680 = vpop.permute.xlu0 %3679
      %3681 = vrot.lane.b32.xlu0 %v2305, 64
      %v3682 = vpop.permute.xlu0 %3681
      %3683 = vrot.lane.b32.xlu0 %v2306, 64
      %v3684 = vpop.permute.xlu0 %3683
      %3685 = vrot.lane.b32.xlu0 %v2307, 64
      %v3686 = vpop.permute.xlu0 %3685
      %3687 = vrot.lane.b32.xlu0 %v2308, 64
      %v3688 = vpop.permute.xlu0 %3687
      %3689 = vrot.lane.b32.xlu0 %v2309, 64
      %v3690 = vpop.permute.xlu0 %3689
      %3691 = vrot.lane.b32.xlu0 %v2310, 64
      %v3692 = vpop.permute.xlu0 %3691
      %3693 = vrot.lane.b32.xlu0 %v2311, 64
      %v3694 = vpop.permute.xlu0 %3693
      %3695 = vrot.lane.b32.xlu0 %v2312, 64
      %v3696 = vpop.permute.xlu0 %3695
      %3697 = vrot.lane.b32.xlu0 %v2313, 64
      %v3698 = vpop.permute.xlu0 %3697
      %3699 = vrot.lane.b32.xlu0 %v2314, 64
      %v3700 = vpop.permute.xlu0 %3699
      %3701 = vrot.lane.b32.xlu0 %v2315, 64
      %v3702 = vpop.permute.xlu0 %3701
      %3703 = vrot.lane.b32.xlu0 %v2316, 64
      %v3704 = vpop.permute.xlu0 %3703
      %3705 = vrot.lane.b32.xlu0 %v2317, 64
      %v3706 = vpop.permute.xlu0 %3705
      %3707 = vrot.lane.b32.xlu0 %v2318, 64
      %v3708 = vpop.permute.xlu0 %3707
      %3709 = vrot.lane.b32.xlu0 %v2319, 64
      %v3710 = vpop.permute.xlu0 %3709
      %3711 = vrot.lane.b32.xlu0 %v2320, 64
      %v3712 = vpop.permute.xlu0 %3711
      %3713 = vrot.lane.b32.xlu0 %v2321, 64
      %v3714 = vpop.permute.xlu0 %3713
      %3715 = vrot.lane.b32.xlu0 %v2322, 64
      %v3716 = vpop.permute.xlu0 %3715
      %3717 = vrot.lane.b32.xlu0 %v2323, 64
      %v3718 = vpop.permute.xlu0 %3717
      %3719 = vrot.lane.b32.xlu0 %v2324, 64
      %v3720 = vpop.permute.xlu0 %3719
      %3721 = vrot.lane.b32.xlu0 %v2325, 64
      %v3722 = vpop.permute.xlu0 %3721
      %3723 = vrot.lane.b32.xlu0 %v2326, 64
      %v3724 = vpop.permute.xlu0 %3723
      %3725 = vrot.lane.b32.xlu0 %v2327, 64
      %v3726 = vpop.permute.xlu0 %3725
      %3727 = vrot.lane.b32.xlu0 %v2328, 64
      %v3728 = vpop.permute.xlu0 %3727
      %3729 = vrot.lane.b32.xlu0 %v2329, 64
      %v3730 = vpop.permute.xlu0 %3729
      %3731 = vrot.lane.b32.xlu0 %v2330, 64
      %v3732 = vpop.permute.xlu0 %3731
      %3733 = vrot.lane.b32.xlu0 %v2331, 64
      %v3734 = vpop.permute.xlu0 %3733
      %3735 = vrot.lane.b32.xlu0 %v2332, 64
      %v3736 = vpop.permute.xlu0 %3735
      %3737 = vrot.lane.b32.xlu0 %v2333, 64
      %v3738 = vpop.permute.xlu0 %3737
      %3739 = vrot.lane.b32.xlu0 %v2334, 64
      %v3740 = vpop.permute.xlu0 %3739
      %3741 = vrot.lane.b32.xlu0 %v2335, 64
      %v3742 = vpop.permute.xlu0 %3741
      %3743 = vrot.lane.b32.xlu0 %v2336, 64
      %v3744 = vpop.permute.xlu0 %3743
      %3745 = vrot.lane.b32.xlu0 %v2337, 64
      %v3746 = vpop.permute.xlu0 %3745
      %3747 = vrot.lane.b32.xlu0 %v2338, 64
      %v3748 = vpop.permute.xlu0 %3747
      %3749 = vrot.lane.b32.xlu0 %v2339, 64
      %v3750 = vpop.permute.xlu0 %3749
      %3751 = vrot.lane.b32.xlu0 %v2340, 64
      %v3752 = vpop.permute.xlu0 %3751
      %3753 = vrot.lane.b32.xlu0 %v2341, 64
      %v3754 = vpop.permute.xlu0 %3753
      %3755 = vrot.lane.b32.xlu0 %v2342, 64
      %v3756 = vpop.permute.xlu0 %3755
      %3757 = vrot.lane.b32.xlu0 %v2343, 64
      %v3758 = vpop.permute.xlu0 %3757
      %vm3807 = vcmask 589314
      %3808 = vst.msk [vmem:[#allocation5 - $0x2] sm:$0xfc] %vm3807, %v3664
      %vm3809 = vcmask 589312
      %3810 = vst.msk [vmem:[#allocation5 + $0x6] sm:$0xff] %vm3809, %v3666
      %vm3811 = vcmask 583168
      %3812 = vst.msk [vmem:[#allocation5 + $0xe] sm:$0x3] %vm3811, %v3668
      %3813 = vst.msk [vmem:[#allocation5 + $0xe] sm:$0xfc] %vm3807, %v3670
      %3814 = vst.msk [vmem:[#allocation5 + $0x16] sm:$0xff] %vm3809, %v3672
      %3815 = vst.msk [vmem:[#allocation5 + $0x1e] sm:$0x3] %vm3811, %v3674
      %3816 = vst.msk [vmem:[#allocation5 + $0x1e] sm:$0xfc] %vm3807, %v3676
      %3817 = vst.msk [vmem:[#allocation5 + $0x26] sm:$0xff] %vm3809, %v3678
      %3818 = vst.msk [vmem:[#allocation5 + $0x2e] sm:$0x3] %vm3811, %v3680
      %3819 = vst.msk [vmem:[#allocation5 + $0x2e] sm:$0xfc] %vm3807, %v3682
      %3820 = vst.msk [vmem:[#allocation5 + $0x36] sm:$0xff] %vm3809, %v3684
      %3821 = vst.msk [vmem:[#allocation5 + $0x3e] sm:$0x3] %vm3811, %v3686
      %3822 = vst.msk [vmem:[#allocation5 + $0x3e] sm:$0xfc] %vm3807, %v3688
      %3823 = vst.msk [vmem:[#allocation5 + $0x46] sm:$0xff] %vm3809, %v3690
      %3824 = vst.msk [vmem:[#allocation5 + $0x4e] sm:$0x3] %vm3811, %v3692
      %3825 = vst.msk [vmem:[#allocation5 + $0x4e] sm:$0xfc] %vm3807, %v3694
      %3826 = vst.msk [vmem:[#allocation5 + $0x56] sm:$0xff] %vm3809, %v3696
      %3827 = vst.msk [vmem:[#allocation5 + $0x5e] sm:$0x3] %vm3811, %v3698
      %3828 = vst.msk [vmem:[#allocation5 + $0x5e] sm:$0xfc] %vm3807, %v3700
      %3829 = vst.msk [vmem:[#allocation5 + $0x66] sm:$0xff] %vm3809, %v3702
      %3830 = vst.msk [vmem:[#allocation5 + $0x6e] sm:$0x3] %vm3811, %v3704
      %3831 = vst.msk [vmem:[#allocation5 + $0x6e] sm:$0xfc] %vm3807, %v3706
      %3832 = vst.msk [vmem:[#allocation5 + $0x76] sm:$0xff] %vm3809, %v3708
      %3833 = vst.msk [vmem:[#allocation5 + $0x7e] sm:$0x3] %vm3811, %v3710
      %3834 = vst.msk [vmem:[#allocation5 + $0x7e] sm:$0xfc] %vm3807, %v3712
      %3835 = vst.msk [vmem:[#allocation5 + $0x86] sm:$0xff] %vm3809, %v3714
      %3836 = vst.msk [vmem:[#allocation5 + $0x8e] sm:$0x3] %vm3811, %v3716
      %3837 = vst.msk [vmem:[#allocation5 + $0x8e] sm:$0xfc] %vm3807, %v3718
      %3838 = vst.msk [vmem:[#allocation5 + $0x96] sm:$0xff] %vm3809, %v3720
      %3839 = vst.msk [vmem:[#allocation5 + $0x9e] sm:$0x3] %vm3811, %v3722
      %3840 = vst.msk [vmem:[#allocation5 + $0x9e] sm:$0xfc] %vm3807, %v3724
      %3841 = vst.msk [vmem:[#allocation5 + $0xa6] sm:$0xff] %vm3809, %v3726
      %3842 = vst.msk [vmem:[#allocation5 + $0xae] sm:$0x3] %vm3811, %v3728
      %3843 = vst.msk [vmem:[#allocation5 + $0xae] sm:$0xfc] %vm3807, %v3730
      %3844 = vst.msk [vmem:[#allocation5 + $0xb6] sm:$0xff] %vm3809, %v3732
      %3845 = vst.msk [vmem:[#allocation5 + $0xbe] sm:$0x3] %vm3811, %v3734
      %3846 = vst.msk [vmem:[#allocation5 + $0xbe] sm:$0xfc] %vm3807, %v3736
      %3847 = vst.msk [vmem:[#allocation5 + $0xc6] sm:$0xff] %vm3809, %v3738
      %3848 = vst.msk [vmem:[#allocation5 + $0xce] sm:$0x3] %vm3811, %v3740
      %3849 = vst.msk [vmem:[#allocation5 + $0xce] sm:$0xfc] %vm3807, %v3742
      %3850 = vst.msk [vmem:[#allocation5 + $0xd6] sm:$0xff] %vm3809, %v3744
      %3851 = vst.msk [vmem:[#allocation5 + $0xde] sm:$0x3] %vm3811, %v3746
      %3852 = vst.msk [vmem:[#allocation5 + $0xde] sm:$0xfc] %vm3807, %v3748
      %3853 = vst.msk [vmem:[#allocation5 + $0xe6] sm:$0xff] %vm3809, %v3750
      %3854 = vst.msk [vmem:[#allocation5 + $0xee] sm:$0x3] %vm3811, %v3752
      %3855 = vst.msk [vmem:[#allocation5 + $0xee] sm:$0xfc] %vm3807, %v3754
      %3856 = vst.msk [vmem:[#allocation5 + $0xf6] sm:$0xff] %vm3809, %v3756
      %3857 = vst.msk [vmem:[#allocation5 + $0xfe] sm:$0x3] %vm3811, %v3758
      %v3858 = vld [vmem:[#allocation5] sm:$0xff]
      %v3859 = vld [vmem:[#allocation5 + $0x8] sm:$0xff]
      %v3860 = vld [vmem:[#allocation5 + $0x10] sm:$0xff]
      %v3861 = vld [vmem:[#allocation5 + $0x18] sm:$0xff]
      %v3862 = vld [vmem:[#allocation5 + $0x20] sm:$0xff]
      %v3863 = vld [vmem:[#allocation5 + $0x28] sm:$0xff]
      %v3864 = vld [vmem:[#allocation5 + $0x30] sm:$0xff]
      %v3865 = vld [vmem:[#allocation5 + $0x38] sm:$0xff]
      %v3866 = vld [vmem:[#allocation5 + $0x40] sm:$0xff]
      %v3867 = vld [vmem:[#allocation5 + $0x48] sm:$0xff]
      %v3868 = vld [vmem:[#allocation5 + $0x50] sm:$0xff]
      %v3869 = vld [vmem:[#allocation5 + $0x58] sm:$0xff]
      %v3870 = vld [vmem:[#allocation5 + $0x60] sm:$0xff]
      %v3871 = vld [vmem:[#allocation5 + $0x68] sm:$0xff]
      %v3872 = vld [vmem:[#allocation5 + $0x70] sm:$0xff]
      %v3873 = vld [vmem:[#allocation5 + $0x78] sm:$0xff]
      %v3874 = vld [vmem:[#allocation5 + $0x80] sm:$0xff]
      %v3875 = vld [vmem:[#allocation5 + $0x88] sm:$0xff]
      %v3876 = vld [vmem:[#allocation5 + $0x90] sm:$0xff]
      %v3877 = vld [vmem:[#allocation5 + $0x98] sm:$0xff]
      %v3878 = vld [vmem:[#allocation5 + $0xa0] sm:$0xff]
      %v3879 = vld [vmem:[#allocation5 + $0xa8] sm:$0xff]
      %v3880 = vld [vmem:[#allocation5 + $0xb0] sm:$0xff]
      %v3881 = vld [vmem:[#allocation5 + $0xb8] sm:$0xff]
      %v3882 = vld [vmem:[#allocation5 + $0xc0] sm:$0xff]
      %v3883 = vld [vmem:[#allocation5 + $0xc8] sm:$0xff]
      %v3884 = vld [vmem:[#allocation5 + $0xd0] sm:$0xff]
      %v3885 = vld [vmem:[#allocation5 + $0xd8] sm:$0xff]
      %v3886 = vld [vmem:[#allocation5 + $0xe0] sm:$0xff]
      %v3887 = vld [vmem:[#allocation5 + $0xe8] sm:$0xff]
      %v3888 = vld [vmem:[#allocation5 + $0xf0] sm:$0xff]
      %v3889 = vld [vmem:[#allocation5 + $0xf8] sm:$0xff]
      %v3890 = vld [vmem:[%s3] sm:$0xff]
      %v3891 = vld [vmem:[%s3 + $0x8] sm:$0xff]
      %v3892 = vld [vmem:[%s3 + $0x10] sm:$0xff]
      %v3893 = vld [vmem:[%s3 + $0x18] sm:$0xff]
      %v3894 = vld [vmem:[%s3 + $0x20] sm:$0xff]
      %v3895 = vld [vmem:[%s3 + $0x28] sm:$0xff]
      %v3896 = vld [vmem:[%s3 + $0x30] sm:$0xff]
      %v3897 = vld [vmem:[%s3 + $0x38] sm:$0xff]
      %v3898 = vld [vmem:[%s3 + $0x40] sm:$0xff]
      %v3899 = vld [vmem:[%s4] sm:$0x1]
      %v3901 = vperm.slane %v3899, 0
      %vm3903 = vcmask 588800
      %v3905 = vsel %vm3903, %v3858, 0
      %v3908 = vsel %vm3903, %v3859, 0
      %v3911 = vsel %vm3903, %v3860, 0
      %v3914 = vsel %vm3903, %v3861, 0
      %v3917 = vsel %vm3903, %v3862, 0
      %v3920 = vsel %vm3903, %v3863, 0
      %v3923 = vsel %vm3903, %v3864, 0
      %v3926 = vsel %vm3903, %v3865, 0
      %v3929 = vsel %vm3903, %v3866, 0
      %v3932 = vsel %vm3903, %v3867, 0
      %v3935 = vsel %vm3903, %v3868, 0
      %v3938 = vsel %vm3903, %v3869, 0
      %v3941 = vsel %vm3903, %v3870, 0
      %v3944 = vsel %vm3903, %v3871, 0
      %v3947 = vsel %vm3903, %v3872, 0
      %v3950 = vsel %vm3903, %v3873, 0
      %v3953 = vsel %vm3903, %v3874, 0
      %v3956 = vsel %vm3903, %v3875, 0
      %v3959 = vsel %vm3903, %v3876, 0
      %v3962 = vsel %vm3903, %v3877, 0
      %v3965 = vsel %vm3903, %v3878, 0
      %v3968 = vsel %vm3903, %v3879, 0
      %v3971 = vsel %vm3903, %v3880, 0
      %v3974 = vsel %vm3903, %v3881, 0
      %v3977 = vsel %vm3903, %v3882, 0
      %v3980 = vsel %vm3903, %v3883, 0
      %v3983 = vsel %vm3903, %v3884, 0
      %v3986 = vsel %vm3903, %v3885, 0
      %v3989 = vsel %vm3903, %v3886, 0
      %v3992 = vsel %vm3903, %v3887, 0
      %v3995 = vsel %vm3903, %v3888, 0
      %v3998 = vsel %vm3903, %v3889, 0
      %4000 = vmatpush.msra.mxu0 0.0
      %4001 = vmatpush.msra.mxu0 0.0
      %4002 = vmatpush.msra.mxu0 0.0
      %4003 = vmatpush.msra.mxu0 0.0
      %4004 = vmatpush.msra.mxu0 0.0
      %4005 = vmatpush.msra.mxu0 0.0
      %4006 = vmatpush.msra.mxu0 0.0
      %4007 = vmatpush.msra.mxu0 %v3898
      %4008 = vmatpush.msra.mxu0 %v3897
      %4009 = vmatpush.msra.mxu0 %v3896
      %4010 = vmatpush.msra.mxu0 %v3895
      %4011 = vmatpush.msra.mxu0 %v3894
      %4012 = vmatpush.msra.mxu0 %v3893
      %4013 = vmatpush.msra.mxu0 %v3892
      %4014 = vmatpush.msra.mxu0 %v3891
      %4015 = vmatpush.msra.mxu0 %v3890
      %4016 = vmatmul.f32.gmra.mxu0 %v3905
      %v4017 = vpop.f32.mrf.mxu0
      %v4018 = vadd.f32 %v3901, %v4017
      %4019 = vmatmul.f32.gmra.mxu0 %v3908
      %v4020 = vpop.f32.mrf.mxu0
      %v4021 = vadd.f32 %v3901, %v4020
      %4022 = vmatmul.f32.gmra.mxu0 %v3911
      %v4023 = vpop.f32.mrf.mxu0
      %v4024 = vadd.f32 %v3901, %v4023
      %4025 = vmatmul.f32.gmra.mxu0 %v3914
      %v4026 = vpop.f32.mrf.mxu0
      %v4027 = vadd.f32 %v3901, %v4026
      %4028 = vmatmul.f32.gmra.mxu0 %v3917
      %v4029 = vpop.f32.mrf.mxu0
      %v4030 = vadd.f32 %v3901, %v4029
      %4031 = vmatmul.f32.gmra.mxu0 %v3920
      %v4032 = vpop.f32.mrf.mxu0
      %v4033 = vadd.f32 %v3901, %v4032
      %4034 = vmatmul.f32.gmra.mxu0 %v3923
      %v4035 = vpop.f32.mrf.mxu0
      %v4036 = vadd.f32 %v3901, %v4035
      %4037 = vmatmul.f32.gmra.mxu0 %v3926
      %v4038 = vpop.f32.mrf.mxu0
      %v4039 = vadd.f32 %v3901, %v4038
      %4040 = vmatmul.f32.gmra.mxu0 %v3929
      %v4041 = vpop.f32.mrf.mxu0
      %v4042 = vadd.f32 %v3901, %v4041
      %4043 = vmatmul.f32.gmra.mxu0 %v3932
      %v4044 = vpop.f32.mrf.mxu0
      %v4045 = vadd.f32 %v3901, %v4044
      %4046 = vmatmul.f32.gmra.mxu0 %v3935
      %v4047 = vpop.f32.mrf.mxu0
      %v4048 = vadd.f32 %v3901, %v4047
      %4049 = vmatmul.f32.gmra.mxu0 %v3938
      %v4050 = vpop.f32.mrf.mxu0
      %v4051 = vadd.f32 %v3901, %v4050
      %4052 = vmatmul.f32.gmra.mxu0 %v3941
      %v4053 = vpop.f32.mrf.mxu0
      %v4054 = vadd.f32 %v3901, %v4053
      %4055 = vmatmul.f32.gmra.mxu0 %v3944
      %v4056 = vpop.f32.mrf.mxu0
      %v4057 = vadd.f32 %v3901, %v4056
      %4058 = vmatmul.f32.gmra.mxu0 %v3947
      %v4059 = vpop.f32.mrf.mxu0
      %v4060 = vadd.f32 %v3901, %v4059
      %4061 = vmatmul.f32.gmra.mxu0 %v3950
      %v4062 = vpop.f32.mrf.mxu0
      %v4063 = vadd.f32 %v3901, %v4062
      %4064 = vmatmul.f32.gmra.mxu0 %v3953
      %v4065 = vpop.f32.mrf.mxu0
      %v4066 = vadd.f32 %v3901, %v4065
      %4067 = vmatmul.f32.gmra.mxu0 %v3956
      %v4068 = vpop.f32.mrf.mxu0
      %v4069 = vadd.f32 %v3901, %v4068
      %4070 = vmatmul.f32.gmra.mxu0 %v3959
      %v4071 = vpop.f32.mrf.mxu0
      %v4072 = vadd.f32 %v3901, %v4071
      %4073 = vmatmul.f32.gmra.mxu0 %v3962
      %v4074 = vpop.f32.mrf.mxu0
      %v4075 = vadd.f32 %v3901, %v4074
      %4076 = vmatmul.f32.gmra.mxu0 %v3965
      %v4077 = vpop.f32.mrf.mxu0
      %v4078 = vadd.f32 %v3901, %v4077
      %4079 = vmatmul.f32.gmra.mxu0 %v3968
      %v4080 = vpop.f32.mrf.mxu0
      %v4081 = vadd.f32 %v3901, %v4080
      %4082 = vmatmul.f32.gmra.mxu0 %v3971
      %v4083 = vpop.f32.mrf.mxu0
      %v4084 = vadd.f32 %v3901, %v4083
      %4085 = vmatmul.f32.gmra.mxu0 %v3974
      %v4086 = vpop.f32.mrf.mxu0
      %v4087 = vadd.f32 %v3901, %v4086
      %4088 = vmatmul.f32.gmra.mxu0 %v3977
      %v4089 = vpop.f32.mrf.mxu0
      %v4090 = vadd.f32 %v3901, %v4089
      %4091 = vmatmul.f32.gmra.mxu0 %v3980
      %v4092 = vpop.f32.mrf.mxu0
      %v4093 = vadd.f32 %v3901, %v4092
      %4094 = vmatmul.f32.gmra.mxu0 %v3983
      %v4095 = vpop.f32.mrf.mxu0
      %v4096 = vadd.f32 %v3901, %v4095
      %4097 = vmatmul.f32.gmra.mxu0 %v3986
      %v4098 = vpop.f32.mrf.mxu0
      %v4099 = vadd.f32 %v3901, %v4098
      %4100 = vmatmul.f32.gmra.mxu0 %v3989
      %v4101 = vpop.f32.mrf.mxu0
      %v4102 = vadd.f32 %v3901, %v4101
      %4103 = vmatmul.f32.gmra.mxu0 %v3992
      %v4104 = vpop.f32.mrf.mxu0
      %v4105 = vadd.f32 %v3901, %v4104
      %4106 = vmatmul.f32.gmra.mxu0 %v3995
      %v4107 = vpop.f32.mrf.mxu0
      %v4108 = vadd.f32 %v3901, %v4107
      %4109 = vmatmul.f32.gmra.mxu0 %v3998
      %v4110 = vpop.f32.mrf.mxu0
      %v4111 = vadd.f32 %v3901, %v4110
      %4112 = vdwg.mxu0
      %v4113 = vmax.f32 %v4018, 0.0
      %v4114 = vmax.f32 %v4021, 0.0
      %v4115 = vmax.f32 %v4024, 0.0
      %v4116 = vmax.f32 %v4027, 0.0
      %v4117 = vmax.f32 %v4030, 0.0
      %v4118 = vmax.f32 %v4033, 0.0
      %v4119 = vmax.f32 %v4036, 0.0
      %v4120 = vmax.f32 %v4039, 0.0
      %v4121 = vmax.f32 %v4042, 0.0
      %v4122 = vmax.f32 %v4045, 0.0
      %v4123 = vmax.f32 %v4048, 0.0
      %v4124 = vmax.f32 %v4051, 0.0
      %v4125 = vmax.f32 %v4054, 0.0
      %v4126 = vmax.f32 %v4057, 0.0
      %v4127 = vmax.f32 %v4060, 0.0
      %v4128 = vmax.f32 %v4063, 0.0
      %v4129 = vmax.f32 %v4066, 0.0
      %v4130 = vmax.f32 %v4069, 0.0
      %v4131 = vmax.f32 %v4072, 0.0
      %v4132 = vmax.f32 %v4075, 0.0
      %v4133 = vmax.f32 %v4078, 0.0
      %v4134 = vmax.f32 %v4081, 0.0
      %v4135 = vmax.f32 %v4084, 0.0
      %v4136 = vmax.f32 %v4087, 0.0
      %v4137 = vmax.f32 %v4090, 0.0
      %v4138 = vmax.f32 %v4093, 0.0
      %v4139 = vmax.f32 %v4096, 0.0
      %v4140 = vmax.f32 %v4099, 0.0
      %v4141 = vmax.f32 %v4102, 0.0
      %v4142 = vmax.f32 %v4105, 0.0
      %v4143 = vmax.f32 %v4108, 0.0
      %v4144 = vmax.f32 %v4111, 0.0
      %vm4145 = vcmask 130048
      %4146 = vst.msk [vmem:[%s224] sm:$0xff] %vm4145, %v4113
      %4147 = vst.msk [vmem:[%s224 + $0x8] sm:$0xff] %vm4145, %v4114
      %4148 = vst.msk [vmem:[%s224 + $0x10] sm:$0xff] %vm4145, %v4115
      %4149 = vst.msk [vmem:[%s224 + $0x18] sm:$0xff] %vm4145, %v4116
      %4150 = vst.msk [vmem:[%s224 + $0x20] sm:$0xff] %vm4145, %v4117
      %4151 = vst.msk [vmem:[%s224 + $0x28] sm:$0xff] %vm4145, %v4118
      %4152 = vst.msk [vmem:[%s224 + $0x30] sm:$0xff] %vm4145, %v4119
      %4153 = vst.msk [vmem:[%s224 + $0x38] sm:$0xff] %vm4145, %v4120
      %4154 = vst.msk [vmem:[%s224 + $0x40] sm:$0xff] %vm4145, %v4121
      %4155 = vst.msk [vmem:[%s224 + $0x48] sm:$0xff] %vm4145, %v4122
      %4156 = vst.msk [vmem:[%s224 + $0x50] sm:$0xff] %vm4145, %v4123
      %4157 = vst.msk [vmem:[%s224 + $0x58] sm:$0xff] %vm4145, %v4124
      %4158 = vst.msk [vmem:[%s224 + $0x60] sm:$0xff] %vm4145, %v4125
      %4159 = vst.msk [vmem:[%s224 + $0x68] sm:$0xff] %vm4145, %v4126
      %4160 = vst.msk [vmem:[%s224 + $0x70] sm:$0xff] %vm4145, %v4127
      %4161 = vst.msk [vmem:[%s224 + $0x78] sm:$0xff] %vm4145, %v4128
      %4162 = vst.msk [vmem:[%s224 + $0x80] sm:$0xff] %vm4145, %v4129
      %4163 = vst.msk [vmem:[%s224 + $0x88] sm:$0xff] %vm4145, %v4130
      %4164 = vst.msk [vmem:[%s224 + $0x90] sm:$0xff] %vm4145, %v4131
      %4165 = vst.msk [vmem:[%s224 + $0x98] sm:$0xff] %vm4145, %v4132
      %4166 = vst.msk [vmem:[%s224 + $0xa0] sm:$0xff] %vm4145, %v4133
      %4167 = vst.msk [vmem:[%s224 + $0xa8] sm:$0xff] %vm4145, %v4134
      %4168 = vst.msk [vmem:[%s224 + $0xb0] sm:$0xff] %vm4145, %v4135
      %4169 = vst.msk [vmem:[%s224 + $0xb8] sm:$0xff] %vm4145, %v4136
      %4170 = vst.msk [vmem:[%s224 + $0xc0] sm:$0xff] %vm4145, %v4137
      %4171 = vst.msk [vmem:[%s224 + $0xc8] sm:$0xff] %vm4145, %v4138
      %4172 = vst.msk [vmem:[%s224 + $0xd0] sm:$0xff] %vm4145, %v4139
      %4173 = vst.msk [vmem:[%s224 + $0xd8] sm:$0xff] %vm4145, %v4140
      %4174 = vst.msk [vmem:[%s224 + $0xe0] sm:$0xff] %vm4145, %v4141
      %4175 = vst.msk [vmem:[%s224 + $0xe8] sm:$0xff] %vm4145, %v4142
      %4176 = vst.msk [vmem:[%s224 + $0xf0] sm:$0xff] %vm4145, %v4143
      %4177 = vst.msk [vmem:[%s224 + $0xf8] sm:$0xff] %vm4145, %v4144
      %p4178 = scmp.lt.s32.totalorder %s16, 1
      %s4179 = scalar_select %p4178, %s16, 1
      %s4180 = smul.addr %s4179, 32
      %s4181 = smul.addr %s4180, 8
      %s4182 = scalar_lea.vmem %s5, %s4181
      // Predicated region
      $region41: #{decoder_block_forward.1} parent=39 // pred_check
        %p4183 = pneg %p144
      $region42: #{decoder_block_forward.1} parent=39 // pred_check_branch
        %4185 = sbr.rel (%p4183) target = $region44
      $region43: #{decoder_block_forward.1} parent=39 // pred_region
        _
      $region44: #{decoder_block_forward.1} parent=39 // pred_fallthru
        _
    $region40: #{decoder_block_forward.1} parent=5 // pred_fallthru
      _
    %p4186 = scmp.le.s32.totalorder 2, %s11
    // Predicated region
    $region45: #{decoder_block_forward.1} parent=5 // pred_check
      %p4187 = pneg %p4186
    $region46: #{decoder_block_forward.1} parent=5 // pred_check_branch
      %4189 = sbr.rel (%p4187) target = $region48
    $region47: #{decoder_block_forward.1} parent=5 // pred_region
      %s4190 = ssub.s32 %s11, 2
      // Predicated region
      $region49: #{decoder_block_forward.1} parent=47 // pred_check
        %p4191 = pneg %p150
      $region50: #{decoder_block_forward.1} parent=47 // pred_check_branch
        %4193 = sbr.rel (%p4191) target = $region52
      $region51: #{decoder_block_forward.1} parent=47 // pred_region
        %p4194 = scmp.lt.s32.totalorder %s17, 1
        %s4195 = scalar_select %p4194, %s17, 1
        %s4196 = smul.addr %s4195, 32
        %s4197 = smul.addr %s4196, 8
        %s4198 = scalar_lea.vmem %s5, %s4197
      $region52: #{decoder_block_forward.1} parent=47 // pred_fallthru
        _
    $region48: #{decoder_block_forward.1} parent=5 // pred_fallthru
      _
  $region6: #{decoder_block_forward.1} parent=0 // loop_footer
    %s15 = sadd.s32 1, %s11
  $region7: #{decoder_block_forward.1} parent=0 // loop_footer_branch
    %10 = sbr.rel target = $region3
  $region8: #{decoder_block_forward.1} parent=0 // loop_exit
    _

</llo_original>
